<compile_context>
chip_gen: v5e
topology: v5e:2x2
jax: 0.10.0
libtpu: 0.0.40
codegen_flags: <defaults>
</compile_context>

<pallas_src>
import jax
import jax.numpy as jnp
from jax.experimental import pallas as pl
from jax.experimental.pallas import tpu as pltpu


def _round_up(x, m):
    return (x + m - 1) // m * m


def ncf_mlp_kernel(ue_ref, ie_ref, w1u_ref, w1i_ref, b1_ref,
                   w2_ref, b2_ref, w3_ref, out_ref):
    """Fused MLP on one batch tile.

    ue/ie: [TB, E] (bf16)   w1u/w1i: [E, H1] (bf16)   b1: [1, H1] (f32)
    w2: [H1, H2] (bf16)     b2: [1, H2] (f32)         w3: [1, H2] (f32)
    out: [1, TB] (f32, lane-dense -- batch on the lane axis)
    """
    # Layer 1: relu(ue @ W1u + ie @ W1i + b1), f32 accumulation on the MXU.
    h1 = jnp.dot(ue_ref[...], w1u_ref[...], preferred_element_type=jnp.float32)
    h1 = h1 + jnp.dot(ie_ref[...], w1i_ref[...],
                      preferred_element_type=jnp.float32)
    h1 = jnp.maximum(h1 + b1_ref[...], 0.0)                     # [TB, H1] f32

    # Layer 2: relu(h1 @ W2 + b2). Feed the MXU in bf16, accumulate in f32.
    h2 = jnp.dot(h1.astype(w2_ref.dtype), w2_ref[...],
                 preferred_element_type=jnp.float32)
    h2 = jnp.maximum(h2 + b2_ref[...], 0.0)                     # [TB, H2] f32

    # Output head (H2 -> 1): VPU multiply + lane-axis reduction instead of a
    # degenerate N=1 MXU matmul. Result is written lane-dense as [1, TB].
    o = jnp.sum(h2 * w3_ref[...], axis=-1)                      # [TB] f32
    out_ref[...] = o[None, :]                                   # [1, TB]


def _choose_tile(B, tb):
    """Pick the batch tile size.

    - Small B (< 512): one tile covering the whole batch (sublane-aligned).
    - Moderate B that would otherwise fit a single tile: split into two
      lane-aligned tiles so the "parallel" batch axis feeds both TensorCores
      on v7x (harmless on v5e/v6e).
    - Multi-tile: tb kept a multiple of 128 so the (1, tb) lane-dense output
      block stores unmasked.
    """
    if B <= tb:
        if B >= 512:
            return _round_up(pl.cdiv(B, 2), 128)
        return _round_up(max(B, 1), 8)
    return max(_round_up(tb, 128), 128)


def prepare_params(params, compute_dtype=jnp.bfloat16):
    """One-time (per-model) parameter prep for the kernel path.

    - Embedding tables and W1/W2 are cast to bf16 once; the per-call gather
      then reads half the HBM bytes and no per-call convert is needed.
    - W1 is split into user/item halves so the concatenated x is never
      materialized in HBM.
    - user/item bias tables are flattened to 1-D for the wrapper gather.
    """
    E = params["user_embedding"].shape[1]
    H2 = params["w2"].shape[1]
    return {
        "user_embedding": params["user_embedding"].astype(compute_dtype),
        "item_embedding": params["item_embedding"].astype(compute_dtype),
        "user_bias": params["user_bias"][:, 0],                  # [U+1] f32
        "item_bias": params["item_bias"][:, 0],                  # [I+1] f32
        "w1u": params["w1"][:E].astype(compute_dtype),           # [E, H1]
        "w1i": params["w1"][E:].astype(compute_dtype),           # [E, H1]
        "b1": params["b1"],                                      # [1, H1] f32
        "w2": params["w2"].astype(compute_dtype),                # [H1, H2]
        "b2": params["b2"],                                      # [1, H2] f32
        "w3": params["w3"].reshape(1, H2),                       # [1, H2] f32
        "b3": params["b3"][0, 0],                                # scalar f32
    }


def ncf_forward(prepared, user_ids, item_ids, *, tb=1024):
    """Full EnhancedNCF forward pass. Returns shape [B] float32."""
    # --- glue (plain JAX): embedding / bias gathers (tables already bf16) ---
    ue = jnp.take(prepared["user_embedding"], user_ids, axis=0)  # [B, E] bf16
    ie = jnp.take(prepared["item_embedding"], item_ids, axis=0)  # [B, E] bf16
    ub = jnp.take(prepared["user_bias"], user_ids, axis=0)       # [B] f32
    ib = jnp.take(prepared["item_bias"], item_ids, axis=0)       # [B] f32

    B, E = ue.shape
    H1, H2 = prepared["w2"].shape

    tb = _choose_tile(B, tb)
    num_tiles = pl.cdiv(B, tb)
    b_pad = num_tiles * tb
    # No input padding: the last tile may read rows past B (undefined data).
    # Those rows feed no cross-row reduction and their output lanes are sliced
    # off below, so this is safe and avoids an HBM copy of both [B, E] arrays.

    mlp_out = pl.pallas_call(
        ncf_mlp_kernel,
        out_shape=jax.ShapeDtypeStruct((1, b_pad), jnp.float32),
        grid=(num_tiles,),
        in_specs=[
            # Streamed per-tile activations (software pipelined).
            pl.BlockSpec((tb, E), lambda i: (i, 0)),     # user_emb tile
            pl.BlockSpec((tb, E), lambda i: (i, 0)),     # item_emb tile
            # Weights / biases: constant index_map -> resident in VMEM.
            pl.BlockSpec((E, H1), lambda i: (0, 0)),     # W1_user
            pl.BlockSpec((E, H1), lambda i: (0, 0)),     # W1_item
            pl.BlockSpec((1, H1), lambda i: (0, 0)),     # b1
            pl.BlockSpec((H1, H2), lambda i: (0, 0)),    # W2
            pl.BlockSpec((1, H2), lambda i: (0, 0)),     # b2
            pl.BlockSpec((1, H2), lambda i: (0, 0)),     # w3 row
        ],
        # Lane-dense output: batch on the lane axis, tile i -> lanes [i*tb, ...).
        out_specs=pl.BlockSpec((1, tb), lambda i: (0, i)),
        compiler_params=pltpu.CompilerParams(
            dimension_semantics=("parallel",),
            vmem_limit_bytes=32 << 20,
        ),
    )(ue, ie, prepared["w1u"], prepared["w1i"], prepared["b1"],
      prepared["w2"], prepared["b2"], prepared["w3"])

    out = mlp_out[0, :B]
    # Fold the output-layer bias and per-example user/item biases here: fuses
    # into surrounding XLA ops and avoids width-1 masked loads in the kernel.
    return out + prepared["b3"] + ub + ib


def init_params(key, num_users, num_items, embedding_dim=64, hidden_dims=(128, 64)):
    """Deterministic synthetic parameter init (shapes match the nn.Module)."""
    ks = jax.random.split(key, 10)
    p = {}
    p["user_embedding"] = (
        jax.random.normal(ks[0], (num_users + 1, embedding_dim), jnp.float32) * 0.1)
    p["item_embedding"] = (
        jax.random.normal(ks[1], (num_items + 1, embedding_dim), jnp.float32) * 0.1)
    p["user_bias"] = jax.random.normal(ks[2], (num_users + 1, 1), jnp.float32) * 0.01
    p["item_bias"] = jax.random.normal(ks[3], (num_items + 1, 1), jnp.float32) * 0.01

    in_dim = embedding_dim * 2
    h1, h2 = hidden_dims
    # Linear weights stored as [in, out] (transposed vs. PyTorch's [out, in]).
    p["w1"] = jax.random.normal(ks[4], (in_dim, h1), jnp.float32) * (1.0 / jnp.sqrt(in_dim))
    p["b1"] = jnp.zeros((1, h1), jnp.float32)
    p["w2"] = jax.random.normal(ks[5], (h1, h2), jnp.float32) * (1.0 / jnp.sqrt(h1))
    p["b2"] = jnp.zeros((1, h2), jnp.float32)
    p["w3"] = jax.random.normal(ks[6], (h2, 1), jnp.float32) * (1.0 / jnp.sqrt(h2))
    p["b3"] = jnp.zeros((1, 1), jnp.float32)
    return p


def reference_forward(params, user_ids, item_ids, compute_dtype=None):
    """Pure-JAX reference mirroring the PyTorch forward (eval mode).

    With compute_dtype=bf16 it applies the same input casts as the kernel
    (for a tight numerical check); with None it is the full-f32 reference.
    """
    ue = jnp.take(params["user_embedding"], user_ids, axis=0)
    ie = jnp.take(params["item_embedding"], item_ids, axis=0)
    ub = jnp.take(params["user_bias"], user_ids, axis=0)[:, 0]
    ib = jnp.take(params["item_bias"], item_ids, axis=0)[:, 0]
    x = jnp.concatenate([ue, ie], axis=1)
    w1, w2 = params["w1"], params["w2"]
    if compute_dtype is not None:
        x, w1, w2 = x.astype(compute_dtype), w1.astype(compute_dtype), w2.astype(compute_dtype)
    h = jnp.maximum(jnp.dot(x, w1, preferred_element_type=jnp.float32)
                    + params["b1"], 0.0)
    if compute_dtype is not None:
        h = h.astype(compute_dtype)
    h = jnp.maximum(jnp.dot(h, w2, preferred_element_type=jnp.float32)
                    + params["b2"], 0.0)
    o = jnp.dot(h, params["w3"], preferred_element_type=jnp.float32) + params["b3"]
    return o[:, 0] + ub + ib


def _check(out, params, user_ids, item_ids):
    # Tight check vs. a reference using the same bf16 input casts.
    ref_matched = reference_forward(params, user_ids, item_ids,
                                    compute_dtype=jnp.bfloat16)
    assert jnp.allclose(out, ref_matched, atol=1e-2, rtol=1e-2), (
        float(jnp.max(jnp.abs(out - ref_matched))))
    # Looser sanity check vs. the full-f32 PyTorch-equivalent forward.
    ref_f32 = reference_forward(params, user_ids, item_ids)
    assert jnp.allclose(out, ref_f32, atol=6e-2, rtol=6e-2), (
        float(jnp.max(jnp.abs(out - ref_f32))))


if __name__ == "__main__":
    key = jax.random.PRNGKey(0)
    k_param, k_u, k_i = jax.random.split(key, 3)

    num_users, num_items = 32, 64
    params = init_params(k_param, num_users, num_items,
                         embedding_dim=64, hidden_dims=(128, 64))
    prepared = prepare_params(params)

    # Case 1: small batch, single tile with a partial (unpadded) last block.
    batch = 500
    user_ids = jax.random.randint(k_u, (batch,), 0, num_users + 1, dtype=jnp.int32)
    item_ids = jax.random.randint(k_i, (batch,), 0, num_items + 1, dtype=jnp.int32)
    out = jax.block_until_ready(ncf_forward(prepared, user_ids, item_ids))
    assert out.shape == (batch,)
    _check(out, params, user_ids, item_ids)

    # Case 2: same batch, forced multi-tile grid (4 tiles, partial last tile).
    out_small_tiles = jax.block_until_ready(
        ncf_forward(prepared, user_ids, item_ids, tb=128))
    assert out_small_tiles.shape == (batch,)
    _check(out_small_tiles, params, user_ids, item_ids)

    # Case 3: moderate batch exercising the 2-tile megacore split (B >= 512).
    batch2 = 600
    k_u2, k_i2 = jax.random.split(jax.random.PRNGKey(1), 2)
    user_ids2 = jax.random.randint(k_u2, (batch2,), 0, num_users + 1, dtype=jnp.int32)
    item_ids2 = jax.random.randint(k_i2, (batch2,), 0, num_items + 1, dtype=jnp.int32)
    out2 = jax.block_until_ready(ncf_forward(prepared, user_ids2, item_ids2))
    assert out2.shape == (batch2,)
    _check(out2, params, user_ids2, item_ids2)

    print("KERNEL_OK")
</pallas_src>

<mosaic_0001>
module attributes {stable_mosaic.version = 11 : i64} {
  func.func @ncf_mlp_kernel(%arg0: i32, %arg1: memref<504x64xbf16, #tpu.memory_space<vmem>>, %arg2: memref<504x64xbf16, #tpu.memory_space<vmem>>, %arg3: memref<64x128xbf16, #tpu.memory_space<vmem>>, %arg4: memref<64x128xbf16, #tpu.memory_space<vmem>>, %arg5: memref<1x128xf32, #tpu.memory_space<vmem>>, %arg6: memref<128x64xbf16, #tpu.memory_space<vmem>>, %arg7: memref<1x64xf32, #tpu.memory_space<vmem>>, %arg8: memref<1x64xf32, #tpu.memory_space<vmem>>, %arg9: memref<1x504xf32, #tpu.memory_space<vmem>>) attributes {dimension_semantics = [#tpu.dimension_semantics<parallel>], iteration_bounds = array<i64: 1>, scalar_prefetch = 0 : i64, scratch_operands = 0 : i64, tpu.core_type = #tpu.core_type<tc>, window_params = [{transform_indices = @transform_0, window_bounds = array<i64: 504, 64>}, {transform_indices = @transform_1, window_bounds = array<i64: 504, 64>}, {pipeline_mode = #tpu.pipeline_mode<synchronous>, transform_indices = @transform_2, window_bounds = array<i64: 64, 128>}, {pipeline_mode = #tpu.pipeline_mode<synchronous>, transform_indices = @transform_3, window_bounds = array<i64: 64, 128>}, {pipeline_mode = #tpu.pipeline_mode<synchronous>, transform_indices = @transform_4, window_bounds = array<i64: 1, 128>}, {pipeline_mode = #tpu.pipeline_mode<synchronous>, transform_indices = @transform_5, window_bounds = array<i64: 128, 64>}, {pipeline_mode = #tpu.pipeline_mode<synchronous>, transform_indices = @transform_6, window_bounds = array<i64: 1, 64>}, {pipeline_mode = #tpu.pipeline_mode<synchronous>, transform_indices = @transform_7, window_bounds = array<i64: 1, 64>}, {transform_indices = @transform_8, window_bounds = array<i64: 1, 504>}]} {
    %c0 = arith.constant 0 : index
    %c0_0 = arith.constant 0 : index
    %0 = vector.load %arg1[%c0, %c0_0] : memref<504x64xbf16, #tpu.memory_space<vmem>>, vector<504x64xbf16>
    %c0_1 = arith.constant 0 : index
    %c0_2 = arith.constant 0 : index
    %1 = vector.load %arg3[%c0_1, %c0_2] : memref<64x128xbf16, #tpu.memory_space<vmem>>, vector<64x128xbf16>
    %cst = arith.constant dense<0.000000e+00> : vector<504x128xf32>
    %2 = tpu.matmul %0, %1, %cst {dimension_numbers = #tpu.dot_dimension_numbers<[1], [0], [0], [1], [0, 0, 1, 1], [], []>} : vector<504x64xbf16>, vector<64x128xbf16>, vector<504x128xf32> -> vector<504x128xf32>
    %c0_3 = arith.constant 0 : index
    %c0_4 = arith.constant 0 : index
    %3 = vector.load %arg2[%c0_3, %c0_4] : memref<504x64xbf16, #tpu.memory_space<vmem>>, vector<504x64xbf16>
    %c0_5 = arith.constant 0 : index
    %c0_6 = arith.constant 0 : index
    %4 = vector.load %arg4[%c0_5, %c0_6] : memref<64x128xbf16, #tpu.memory_space<vmem>>, vector<64x128xbf16>
    %cst_7 = arith.constant dense<0.000000e+00> : vector<504x128xf32>
    %5 = tpu.matmul %3, %4, %cst_7 {dimension_numbers = #tpu.dot_dimension_numbers<[1], [0], [0], [1], [0, 0, 1, 1], [], []>} : vector<504x64xbf16>, vector<64x128xbf16>, vector<504x128xf32> -> vector<504x128xf32>
    %6 = arith.addf %2, %5 : vector<504x128xf32>
    %c0_8 = arith.constant 0 : index
    %c0_9 = arith.constant 0 : index
    %7 = vector.load %arg5[%c0_8, %c0_9] : memref<1x128xf32, #tpu.memory_space<vmem>>, vector<1x128xf32>
    %8 = vector.broadcast %7 : vector<1x128xf32> to vector<504x128xf32>
    %9 = arith.addf %6, %8 : vector<504x128xf32>
    %cst_10 = arith.constant 0.000000e+00 : f32
    %10 = vector.broadcast %cst_10 : f32 to vector<504x128xf32>
    %11 = arith.maximumf %9, %10 : vector<504x128xf32>
    %12 = arith.truncf %11 : vector<504x128xf32> to vector<504x128xbf16>
    %c0_11 = arith.constant 0 : index
    %c0_12 = arith.constant 0 : index
    %13 = vector.load %arg6[%c0_11, %c0_12] : memref<128x64xbf16, #tpu.memory_space<vmem>>, vector<128x64xbf16>
    %cst_13 = arith.constant dense<0.000000e+00> : vector<504x64xf32>
    %14 = tpu.matmul %12, %13, %cst_13 {dimension_numbers = #tpu.dot_dimension_numbers<[1], [0], [0], [1], [0, 0, 1, 1], [], []>} : vector<504x128xbf16>, vector<128x64xbf16>, vector<504x64xf32> -> vector<504x64xf32>
    %c0_14 = arith.constant 0 : index
    %c0_15 = arith.constant 0 : index
    %15 = vector.load %arg7[%c0_14, %c0_15] : memref<1x64xf32, #tpu.memory_space<vmem>>, vector<1x64xf32>
    %16 = vector.broadcast %15 : vector<1x64xf32> to vector<504x64xf32>
    %17 = arith.addf %14, %16 : vector<504x64xf32>
    %cst_16 = arith.constant 0.000000e+00 : f32
    %18 = vector.broadcast %cst_16 : f32 to vector<504x64xf32>
    %19 = arith.maximumf %17, %18 : vector<504x64xf32>
    %c0_17 = arith.constant 0 : index
    %c0_18 = arith.constant 0 : index
    %20 = vector.load %arg8[%c0_17, %c0_18] : memref<1x64xf32, #tpu.memory_space<vmem>>, vector<1x64xf32>
    %21 = vector.broadcast %20 : vector<1x64xf32> to vector<504x64xf32>
    %22 = arith.mulf %19, %21 : vector<504x64xf32>
    %cst_19 = arith.constant dense<0.000000e+00> : vector<504xf32>
    %23 = vector.multi_reduction <add>, %22, %cst_19 [1] : vector<504x64xf32> to vector<504xf32>
    %24 = vector.shape_cast %23 : vector<504xf32> to vector<1x504xf32>
    %c0_20 = arith.constant 0 : index
    %c0_21 = arith.constant 0 : index
    %25 = vector.load %arg9[%c0_20, %c0_21] : memref<1x504xf32, #tpu.memory_space<vmem>>, vector<1x504xf32>
    tpu.vector_store %arg9[%c0_20, %c0_21], %24 {strides = array<i32>} : memref<1x504xf32, #tpu.memory_space<vmem>>, vector<1x504xf32>,
    return
  }
  func.func @transform_0(%arg0: i32) -> (i32, i32) {
    %c0_i32 = arith.constant 0 : i32
    %c0_i32_0 = arith.constant 0 : i32
    return %arg0, %c0_i32 : i32, i32
  }
  func.func @transform_1(%arg0: i32) -> (i32, i32) {
    %c0_i32 = arith.constant 0 : i32
    %c0_i32_0 = arith.constant 0 : i32
    return %arg0, %c0_i32 : i32, i32
  }
  func.func @transform_2(%arg0: i32) -> (i32, i32) {
    %c0_i32 = arith.constant 0 : i32
    %c0_i32_0 = arith.constant 0 : i32
    %c0_i32_1 = arith.constant 0 : i32
    return %c0_i32, %c0_i32_0 : i32, i32
  }
  func.func @transform_3(%arg0: i32) -> (i32, i32) {
    %c0_i32 = arith.constant 0 : i32
    %c0_i32_0 = arith.constant 0 : i32
    %c0_i32_1 = arith.constant 0 : i32
    return %c0_i32, %c0_i32_0 : i32, i32
  }
  func.func @transform_4(%arg0: i32) -> (i32, i32) {
    %c0_i32 = arith.constant 0 : i32
    %c0_i32_0 = arith.constant 0 : i32
    %c0_i32_1 = arith.constant 0 : i32
    return %c0_i32, %c0_i32_0 : i32, i32
  }
  func.func @transform_5(%arg0: i32) -> (i32, i32) {
    %c0_i32 = arith.constant 0 : i32
    %c0_i32_0 = arith.constant 0 : i32
    %c0_i32_1 = arith.constant 0 : i32
    return %c0_i32, %c0_i32_0 : i32, i32
  }
  func.func @transform_6(%arg0: i32) -> (i32, i32) {
    %c0_i32 = arith.constant 0 : i32
    %c0_i32_0 = arith.constant 0 : i32
    %c0_i32_1 = arith.constant 0 : i32
    return %c0_i32, %c0_i32_0 : i32, i32
  }
  func.func @transform_7(%arg0: i32) -> (i32, i32) {
    %c0_i32 = arith.constant 0 : i32
    %c0_i32_0 = arith.constant 0 : i32
    %c0_i32_1 = arith.constant 0 : i32
    return %c0_i32, %c0_i32_0 : i32, i32
  }
  func.func @transform_8(%arg0: i32) -> (i32, i32) {
    %c0_i32 = arith.constant 0 : i32
    %c0_i32_0 = arith.constant 0 : i32
    return %c0_i32, %arg0 : i32, i32
  }
}

</mosaic_0001>

<llo_original>
// kernel: tpu_custom_call.1
$region0: #{tpu_custom_call.1}
  #allocation0 [shape = 'u32[]', space=smem, size = 0x4, offset = 0x4, fixed_abs, tag = 'smem constant byte address 0x4 - core index']
  #allocation1 [shape = 'u32[72,128]{1,0:T(1,128)}', space=vmem, size = 0x9000, scoped, tag = 'internal scratch']
  %s0 = inlined_call_operand.vmem [shape: bf16[500,64], index: 0, kind: input, shape index: {}]
  %s1 = inlined_call_operand.vmem [shape: bf16[500,64], index: 1, kind: input, shape index: {}]
  %s2 = inlined_call_operand.vmem [shape: bf16[64,128], index: 2, kind: input, shape index: {}]
  %s3 = inlined_call_operand.vmem [shape: bf16[64,128], index: 3, kind: input, shape index: {}]
  %s4 = inlined_call_operand.vmem [shape: f32[1,128], index: 4, kind: input, shape index: {}]
  %s5 = inlined_call_operand.vmem [shape: bf16[128,64], index: 5, kind: input, shape index: {}]
  %s6 = inlined_call_operand.vmem [shape: f32[1,64], index: 6, kind: input, shape index: {}]
  %s7 = inlined_call_operand.vmem [shape: f32[1,64], index: 7, kind: input, shape index: {}]
  %s8 = inlined_call_operand.hbm [shape: f32[1,504], index: 8, kind: output, shape index: {}]
  %s9 = sld [smem:[#allocation0]]
  $region42: #{tpu_custom_call.1} parent=0
    _
  %s11 = ssub.s32 1, %s9
  %s12 = scalar_select 0, %s11, %s9
  $region1: #{tpu_custom_call.1} parent=0
    #allocation2 [shape = 'u8[2048]{0}', space=vmem, size = 0x800, scoped, tag = 'output window, operand 0, single buffered']
    #allocation3 [shape = 's32[1]{0}', space=sflag, size = 0x4, scoped, tag = 'scoped memory for tpu_custom_call.1']
    %13 = vsyncpa [#allocation3], 0
    // Predicated region
    $region2: #{tpu_custom_call.1} parent=1 // pred_check
      _
    $region3: #{tpu_custom_call.1} parent=1 // pred_check_branch
      %15 = sbr.rel (0) target = $region5
    $region4: #{tpu_custom_call.1} parent=1 // pred_region
      _
    $region5: #{tpu_custom_call.1} parent=1 // pred_fallthru
      _
    // Predicated region
    $region6: #{tpu_custom_call.1} parent=1 // pred_check
      _
    $region7: #{tpu_custom_call.1} parent=1 // pred_check_branch
      %17 = sbr.rel (0) target = $region9
    $region8: #{tpu_custom_call.1} parent=1 // pred_region
      _
    $region9: #{tpu_custom_call.1} parent=1 // pred_fallthru
      _
    // Predicated region
    $region10: #{tpu_custom_call.1} parent=1 // pred_check
      _
    $region11: #{tpu_custom_call.1} parent=1 // pred_check_branch
      %19 = sbr.rel (0) target = $region13
    $region12: #{tpu_custom_call.1} parent=1 // pred_region
      _
    $region13: #{tpu_custom_call.1} parent=1 // pred_fallthru
      _
    // Predicated region
    $region14: #{tpu_custom_call.1} parent=1 // pred_check
      _
    $region15: #{tpu_custom_call.1} parent=1 // pred_check_branch
      %21 = sbr.rel (0) target = $region17
    $region16: #{tpu_custom_call.1} parent=1 // pred_region
      _
    $region17: #{tpu_custom_call.1} parent=1 // pred_fallthru
      _
    // Predicated region
    $region18: #{tpu_custom_call.1} parent=1 // pred_check
      _
    $region19: #{tpu_custom_call.1} parent=1 // pred_check_branch
      %23 = sbr.rel (0) target = $region21
    $region20: #{tpu_custom_call.1} parent=1 // pred_region
      _
    $region21: #{tpu_custom_call.1} parent=1 // pred_fallthru
      _
    // Predicated region
    $region22: #{tpu_custom_call.1} parent=1 // pred_check
      _
    $region23: #{tpu_custom_call.1} parent=1 // pred_check_branch
      %25 = sbr.rel (0) target = $region25
    $region24: #{tpu_custom_call.1} parent=1 // pred_region
      _
    $region25: #{tpu_custom_call.1} parent=1 // pred_fallthru
      _
    // Predicated region
    $region26: #{tpu_custom_call.1} parent=1 // pred_check
      _
    $region27: #{tpu_custom_call.1} parent=1 // pred_check_branch
      %27 = sbr.rel (0) target = $region29
    $region28: #{tpu_custom_call.1} parent=1 // pred_region
      _
    $region29: #{tpu_custom_call.1} parent=1 // pred_fallthru
      _
    // Predicated region
    $region30: #{tpu_custom_call.1} parent=1 // pred_check
      _
    $region31: #{tpu_custom_call.1} parent=1 // pred_check_branch
      %29 = sbr.rel (0) target = $region33
    $region32: #{tpu_custom_call.1} parent=1 // pred_region
      _
    $region33: #{tpu_custom_call.1} parent=1 // pred_fallthru
      _
    %v31 = vld [vmem:[%s0] sm:$0xf]
    %v32 = vld [vmem:[%s0 + $0x4] sm:$0xf]
    %v33 = vld [vmem:[%s0 + $0x8] sm:$0xf]
    %v34 = vld [vmem:[%s0 + $0xc] sm:$0xf]
    %v35 = vld [vmem:[%s0 + $0x10] sm:$0xf]
    %v36 = vld [vmem:[%s0 + $0x14] sm:$0xf]
    %v37 = vld [vmem:[%s0 + $0x18] sm:$0xf]
    %v38 = vld [vmem:[%s0 + $0x1c] sm:$0xf]
    %v39 = vld [vmem:[%s0 + $0x20] sm:$0xf]
    %v40 = vld [vmem:[%s0 + $0x24] sm:$0xf]
    %v41 = vld [vmem:[%s0 + $0x28] sm:$0xf]
    %v42 = vld [vmem:[%s0 + $0x2c] sm:$0xf]
    %v43 = vld [vmem:[%s0 + $0x30] sm:$0xf]
    %v44 = vld [vmem:[%s0 + $0x34] sm:$0xf]
    %v45 = vld [vmem:[%s0 + $0x38] sm:$0xf]
    %v46 = vld [vmem:[%s0 + $0x3c] sm:$0xf]
    %v47 = vld [vmem:[%s0 + $0x40] sm:$0xf]
    %v48 = vld [vmem:[%s0 + $0x44] sm:$0xf]
    %v49 = vld [vmem:[%s0 + $0x48] sm:$0xf]
    %v50 = vld [vmem:[%s0 + $0x4c] sm:$0xf]
    %v51 = vld [vmem:[%s0 + $0x50] sm:$0xf]
    %v52 = vld [vmem:[%s0 + $0x54] sm:$0xf]
    %v53 = vld [vmem:[%s0 + $0x58] sm:$0xf]
    %v54 = vld [vmem:[%s0 + $0x5c] sm:$0xf]
    %v55 = vld [vmem:[%s0 + $0x60] sm:$0xf]
    %v56 = vld [vmem:[%s0 + $0x64] sm:$0xf]
    %v57 = vld [vmem:[%s0 + $0x68] sm:$0xf]
    %v58 = vld [vmem:[%s0 + $0x6c] sm:$0xf]
    %v59 = vld [vmem:[%s0 + $0x70] sm:$0xf]
    %v60 = vld [vmem:[%s0 + $0x74] sm:$0xf]
    %v61 = vld [vmem:[%s0 + $0x78] sm:$0xf]
    %v62 = vld [vmem:[%s0 + $0x7c] sm:$0xf]
    %v63 = vld [vmem:[%s0 + $0x80] sm:$0xf]
    %v64 = vld [vmem:[%s0 + $0x84] sm:$0xf]
    %v65 = vld [vmem:[%s0 + $0x88] sm:$0xf]
    %v66 = vld [vmem:[%s0 + $0x8c] sm:$0xf]
    %v67 = vld [vmem:[%s0 + $0x90] sm:$0xf]
    %v68 = vld [vmem:[%s0 + $0x94] sm:$0xf]
    %v69 = vld [vmem:[%s0 + $0x98] sm:$0xf]
    %v70 = vld [vmem:[%s0 + $0x9c] sm:$0xf]
    %v71 = vld [vmem:[%s0 + $0xa0] sm:$0xf]
    %v72 = vld [vmem:[%s0 + $0xa4] sm:$0xf]
    %v73 = vld [vmem:[%s0 + $0xa8] sm:$0xf]
    %v74 = vld [vmem:[%s0 + $0xac] sm:$0xf]
    %v75 = vld [vmem:[%s0 + $0xb0] sm:$0xf]
    %v76 = vld [vmem:[%s0 + $0xb4] sm:$0xf]
    %v77 = vld [vmem:[%s0 + $0xb8] sm:$0xf]
    %v78 = vld [vmem:[%s0 + $0xbc] sm:$0xf]
    %v79 = vld [vmem:[%s0 + $0xc0] sm:$0xf]
    %v80 = vld [vmem:[%s0 + $0xc4] sm:$0xf]
    %v81 = vld [vmem:[%s0 + $0xc8] sm:$0xf]
    %v82 = vld [vmem:[%s0 + $0xcc] sm:$0xf]
    %v83 = vld [vmem:[%s0 + $0xd0] sm:$0xf]
    %v84 = vld [vmem:[%s0 + $0xd4] sm:$0xf]
    %v85 = vld [vmem:[%s0 + $0xd8] sm:$0xf]
    %v86 = vld [vmem:[%s0 + $0xdc] sm:$0xf]
    %v87 = vld [vmem:[%s0 + $0xe0] sm:$0xf]
    %v88 = vld [vmem:[%s0 + $0xe4] sm:$0xf]
    %v89 = vld [vmem:[%s0 + $0xe8] sm:$0xf]
    %v90 = vld [vmem:[%s0 + $0xec] sm:$0xf]
    %v91 = vld [vmem:[%s0 + $0xf0] sm:$0xf]
    %v92 = vld [vmem:[%s0 + $0xf4] sm:$0xf]
    %v93 = vld [vmem:[%s0 + $0xf8] sm:$0xf]
    %v94 = vld [vmem:[%s2] sm:$0xf]
    %v95 = vld [vmem:[%s2 + $0x4] sm:$0xf]
    %v96 = vld [vmem:[%s2 + $0x8] sm:$0xf]
    %v97 = vld [vmem:[%s2 + $0xc] sm:$0xf]
    %v98 = vld [vmem:[%s2 + $0x10] sm:$0xf]
    %v99 = vld [vmem:[%s2 + $0x14] sm:$0xf]
    %v100 = vld [vmem:[%s2 + $0x18] sm:$0xf]
    %v101 = vld [vmem:[%s2 + $0x1c] sm:$0xf]
    %v102 = vld [vmem:[%s1] sm:$0xf]
    %v103 = vld [vmem:[%s1 + $0x4] sm:$0xf]
    %v104 = vld [vmem:[%s1 + $0x8] sm:$0xf]
    %v105 = vld [vmem:[%s1 + $0xc] sm:$0xf]
    %v106 = vld [vmem:[%s1 + $0x10] sm:$0xf]
    %v107 = vld [vmem:[%s1 + $0x14] sm:$0xf]
    %v108 = vld [vmem:[%s1 + $0x18] sm:$0xf]
    %v109 = vld [vmem:[%s1 + $0x1c] sm:$0xf]
    %v110 = vld [vmem:[%s1 + $0x20] sm:$0xf]
    %v111 = vld [vmem:[%s1 + $0x24] sm:$0xf]
    %v112 = vld [vmem:[%s1 + $0x28] sm:$0xf]
    %v113 = vld [vmem:[%s1 + $0x2c] sm:$0xf]
    %v114 = vld [vmem:[%s1 + $0x30] sm:$0xf]
    %v115 = vld [vmem:[%s1 + $0x34] sm:$0xf]
    %v116 = vld [vmem:[%s1 + $0x38] sm:$0xf]
    %v117 = vld [vmem:[%s1 + $0x3c] sm:$0xf]
    %v118 = vld [vmem:[%s1 + $0x40] sm:$0xf]
    %v119 = vld [vmem:[%s1 + $0x44] sm:$0xf]
    %v120 = vld [vmem:[%s1 + $0x48] sm:$0xf]
    %v121 = vld [vmem:[%s1 + $0x4c] sm:$0xf]
    %v122 = vld [vmem:[%s1 + $0x50] sm:$0xf]
    %v123 = vld [vmem:[%s1 + $0x54] sm:$0xf]
    %v124 = vld [vmem:[%s1 + $0x58] sm:$0xf]
    %v125 = vld [vmem:[%s1 + $0x5c] sm:$0xf]
    %v126 = vld [vmem:[%s1 + $0x60] sm:$0xf]
    %v127 = vld [vmem:[%s1 + $0x64] sm:$0xf]
    %v128 = vld [vmem:[%s1 + $0x68] sm:$0xf]
    %v129 = vld [vmem:[%s1 + $0x6c] sm:$0xf]
    %v130 = vld [vmem:[%s1 + $0x70] sm:$0xf]
    %v131 = vld [vmem:[%s1 + $0x74] sm:$0xf]
    %v132 = vld [vmem:[%s1 + $0x78] sm:$0xf]
    %v133 = vld [vmem:[%s1 + $0x7c] sm:$0xf]
    %v134 = vld [vmem:[%s1 + $0x80] sm:$0xf]
    %v135 = vld [vmem:[%s1 + $0x84] sm:$0xf]
    %v136 = vld [vmem:[%s1 + $0x88] sm:$0xf]
    %v137 = vld [vmem:[%s1 + $0x8c] sm:$0xf]
    %v138 = vld [vmem:[%s1 + $0x90] sm:$0xf]
    %v139 = vld [vmem:[%s1 + $0x94] sm:$0xf]
    %v140 = vld [vmem:[%s1 + $0x98] sm:$0xf]
    %v141 = vld [vmem:[%s1 + $0x9c] sm:$0xf]
    %v142 = vld [vmem:[%s1 + $0xa0] sm:$0xf]
    %v143 = vld [vmem:[%s1 + $0xa4] sm:$0xf]
    %v144 = vld [vmem:[%s1 + $0xa8] sm:$0xf]
    %v145 = vld [vmem:[%s1 + $0xac] sm:$0xf]
    %v146 = vld [vmem:[%s1 + $0xb0] sm:$0xf]
    %v147 = vld [vmem:[%s1 + $0xb4] sm:$0xf]
    %v148 = vld [vmem:[%s1 + $0xb8] sm:$0xf]
    %v149 = vld [vmem:[%s1 + $0xbc] sm:$0xf]
    %v150 = vld [vmem:[%s1 + $0xc0] sm:$0xf]
    %v151 = vld [vmem:[%s1 + $0xc4] sm:$0xf]
    %v152 = vld [vmem:[%s1 + $0xc8] sm:$0xf]
    %v153 = vld [vmem:[%s1 + $0xcc] sm:$0xf]
    %v154 = vld [vmem:[%s1 + $0xd0] sm:$0xf]
    %v155 = vld [vmem:[%s1 + $0xd4] sm:$0xf]
    %v156 = vld [vmem:[%s1 + $0xd8] sm:$0xf]
    %v157 = vld [vmem:[%s1 + $0xdc] sm:$0xf]
    %v158 = vld [vmem:[%s1 + $0xe0] sm:$0xf]
    %v159 = vld [vmem:[%s1 + $0xe4] sm:$0xf]
    %v160 = vld [vmem:[%s1 + $0xe8] sm:$0xf]
    %v161 = vld [vmem:[%s1 + $0xec] sm:$0xf]
    %v162 = vld [vmem:[%s1 + $0xf0] sm:$0xf]
    %v163 = vld [vmem:[%s1 + $0xf4] sm:$0xf]
    %v164 = vld [vmem:[%s1 + $0xf8] sm:$0xf]
    %v165 = vld [vmem:[%s3] sm:$0xf]
    %v166 = vld [vmem:[%s3 + $0x4] sm:$0xf]
    %v167 = vld [vmem:[%s3 + $0x8] sm:$0xf]
    %v168 = vld [vmem:[%s3 + $0xc] sm:$0xf]
    %v169 = vld [vmem:[%s3 + $0x10] sm:$0xf]
    %v170 = vld [vmem:[%s3 + $0x14] sm:$0xf]
    %v171 = vld [vmem:[%s3 + $0x18] sm:$0xf]
    %v172 = vld [vmem:[%s3 + $0x1c] sm:$0xf]
    %v236 = vunpack.c.l.b16 %v102
    %v237 = vunpack.c.l.b16 %v103
    %v238 = vunpack.c.l.b16 %v104
    %v239 = vunpack.c.l.b16 %v105
    %v240 = vunpack.c.l.b16 %v106
    %v241 = vunpack.c.l.b16 %v107
    %v242 = vunpack.c.l.b16 %v108
    %v243 = vunpack.c.l.b16 %v109
    %v244 = vunpack.c.l.b16 %v110
    %v245 = vunpack.c.l.b16 %v111
    %v246 = vunpack.c.l.b16 %v112
    %v247 = vunpack.c.l.b16 %v113
    %v248 = vunpack.c.l.b16 %v114
    %v249 = vunpack.c.l.b16 %v115
    %v250 = vunpack.c.l.b16 %v116
    %v251 = vunpack.c.l.b16 %v117
    %v252 = vunpack.c.l.b16 %v118
    %v253 = vunpack.c.l.b16 %v119
    %v254 = vunpack.c.l.b16 %v120
    %v255 = vunpack.c.l.b16 %v121
    %v256 = vunpack.c.l.b16 %v122
    %v257 = vunpack.c.l.b16 %v123
    %v258 = vunpack.c.l.b16 %v124
    %v259 = vunpack.c.l.b16 %v125
    %v260 = vunpack.c.l.b16 %v126
    %v261 = vunpack.c.l.b16 %v127
    %v262 = vunpack.c.l.b16 %v128
    %v263 = vunpack.c.l.b16 %v129
    %v264 = vunpack.c.l.b16 %v130
    %v265 = vunpack.c.l.b16 %v131
    %v266 = vunpack.c.l.b16 %v132
    %v267 = vunpack.c.l.b16 %v133
    %v268 = vunpack.c.l.b16 %v134
    %v269 = vunpack.c.l.b16 %v135
    %v270 = vunpack.c.l.b16 %v136
    %v271 = vunpack.c.l.b16 %v137
    %v272 = vunpack.c.l.b16 %v138
    %v273 = vunpack.c.l.b16 %v139
    %v274 = vunpack.c.l.b16 %v140
    %v275 = vunpack.c.l.b16 %v141
    %v276 = vunpack.c.l.b16 %v142
    %v277 = vunpack.c.l.b16 %v143
    %v278 = vunpack.c.l.b16 %v144
    %v279 = vunpack.c.l.b16 %v145
    %v280 = vunpack.c.l.b16 %v146
    %v281 = vunpack.c.l.b16 %v147
    %v282 = vunpack.c.l.b16 %v148
    %v283 = vunpack.c.l.b16 %v149
    %v284 = vunpack.c.l.b16 %v150
    %v285 = vunpack.c.l.b16 %v151
    %v286 = vunpack.c.l.b16 %v152
    %v287 = vunpack.c.l.b16 %v153
    %v288 = vunpack.c.l.b16 %v154
    %v289 = vunpack.c.l.b16 %v155
    %v290 = vunpack.c.l.b16 %v156
    %v291 = vunpack.c.l.b16 %v157
    %v292 = vunpack.c.l.b16 %v158
    %v293 = vunpack.c.l.b16 %v159
    %v294 = vunpack.c.l.b16 %v160
    %v295 = vunpack.c.l.b16 %v161
    %v296 = vunpack.c.l.b16 %v162
    %v297 = vunpack.c.l.b16 %v163
    %v298 = vunpack.c.l.b16 %v164
    %v299 = vpack.c.b16 %v237, %v236
    %v300 = vpack.c.b16 %v239, %v238
    %v301 = vpack.c.b16 %v241, %v240
    %v302 = vpack.c.b16 %v243, %v242
    %v303 = vpack.c.b16 %v245, %v244
    %v304 = vpack.c.b16 %v247, %v246
    %v305 = vpack.c.b16 %v249, %v248
    %v306 = vpack.c.b16 %v251, %v250
    %v307 = vpack.c.b16 %v253, %v252
    %v308 = vpack.c.b16 %v255, %v254
    %v309 = vpack.c.b16 %v257, %v256
    %v310 = vpack.c.b16 %v259, %v258
    %v311 = vpack.c.b16 %v261, %v260
    %v312 = vpack.c.b16 %v263, %v262
    %v313 = vpack.c.b16 %v265, %v264
    %v314 = vpack.c.b16 %v267, %v266
    %v315 = vpack.c.b16 %v269, %v268
    %v316 = vpack.c.b16 %v271, %v270
    %v317 = vpack.c.b16 %v273, %v272
    %v318 = vpack.c.b16 %v275, %v274
    %v319 = vpack.c.b16 %v277, %v276
    %v320 = vpack.c.b16 %v279, %v278
    %v321 = vpack.c.b16 %v281, %v280
    %v322 = vpack.c.b16 %v283, %v282
    %v323 = vpack.c.b16 %v285, %v284
    %v324 = vpack.c.b16 %v287, %v286
    %v325 = vpack.c.b16 %v289, %v288
    %v326 = vpack.c.b16 %v291, %v290
    %v327 = vpack.c.b16 %v293, %v292
    %v328 = vpack.c.b16 %v295, %v294
    %v329 = vpack.c.b16 %v297, %v296
    %v330 = vpack.c.b16 %v298, %v298
    %v339 = vunpack.c.l.b16 %v165
    %v340 = vunpack.c.l.b16 %v166
    %v341 = vunpack.c.l.b16 %v167
    %v342 = vunpack.c.l.b16 %v168
    %v343 = vunpack.c.l.b16 %v169
    %v344 = vunpack.c.l.b16 %v170
    %v345 = vunpack.c.l.b16 %v171
    %v346 = vunpack.c.l.b16 %v172
    %v347 = vpack.c.b16 %v340, %v339
    %v348 = vpack.c.b16 %v342, %v341
    %v349 = vpack.c.b16 %v344, %v343
    %v350 = vpack.c.b16 %v346, %v345
    %vm355 = vcmask 523264
    %v357 = vsel %vm355, %v299, 0
    %v360 = vsel %vm355, %v300, 0
    %v363 = vsel %vm355, %v301, 0
    %v366 = vsel %vm355, %v302, 0
    %v369 = vsel %vm355, %v303, 0
    %v372 = vsel %vm355, %v304, 0
    %v375 = vsel %vm355, %v305, 0
    %v378 = vsel %vm355, %v306, 0
    %v381 = vsel %vm355, %v307, 0
    %v384 = vsel %vm355, %v308, 0
    %v387 = vsel %vm355, %v309, 0
    %v390 = vsel %vm355, %v310, 0
    %v393 = vsel %vm355, %v311, 0
    %v396 = vsel %vm355, %v312, 0
    %v399 = vsel %vm355, %v313, 0
    %v402 = vsel %vm355, %v314, 0
    %v405 = vsel %vm355, %v315, 0
    %v408 = vsel %vm355, %v316, 0
    %v411 = vsel %vm355, %v317, 0
    %v414 = vsel %vm355, %v318, 0
    %v417 = vsel %vm355, %v319, 0
    %v420 = vsel %vm355, %v320, 0
    %v423 = vsel %vm355, %v321, 0
    %v426 = vsel %vm355, %v322, 0
    %v429 = vsel %vm355, %v323, 0
    %v432 = vsel %vm355, %v324, 0
    %v435 = vsel %vm355, %v325, 0
    %v438 = vsel %vm355, %v326, 0
    %v441 = vsel %vm355, %v327, 0
    %v444 = vsel %vm355, %v328, 0
    %v447 = vsel %vm355, %v329, 0
    %v450 = vsel %vm355, %v330, 0
    %452 = vmatpush.bf16.msra.mxu0 0
    %453 = vmatpush.bf16.msra.mxu0 0
    %454 = vmatpush.bf16.msra.mxu0 0
    %455 = vmatpush.bf16.msra.mxu0 0
    %456 = vmatpush.bf16.msra.mxu0 %v350
    %457 = vmatpush.bf16.msra.mxu0 %v349
    %458 = vmatpush.bf16.msra.mxu0 %v348
    %459 = vmatpush.bf16.msra.mxu0 %v347
    %460 = vmatmul.bf16.gmra.mxu0 %v357
    %v461 = vpop.f32.mrf.mxu0
    %v462 = vadd.f32 0.0, %v461
    %v463 = vpop.f32.mrf.mxu0
    %v464 = vadd.f32 0.0, %v463
    %465 = vmatmul.bf16.gmra.mxu0 %v360
    %v466 = vpop.f32.mrf.mxu0
    %v467 = vadd.f32 0.0, %v466
    %v468 = vpop.f32.mrf.mxu0
    %v469 = vadd.f32 0.0, %v468
    %470 = vmatmul.bf16.gmra.mxu0 %v363
    %v471 = vpop.f32.mrf.mxu0
    %v472 = vadd.f32 0.0, %v471
    %v473 = vpop.f32.mrf.mxu0
    %v474 = vadd.f32 0.0, %v473
    %475 = vmatmul.bf16.gmra.mxu0 %v366
    %v476 = vpop.f32.mrf.mxu0
    %v477 = vadd.f32 0.0, %v476
    %v478 = vpop.f32.mrf.mxu0
    %v479 = vadd.f32 0.0, %v478
    %480 = vmatmul.bf16.gmra.mxu0 %v369
    %v481 = vpop.f32.mrf.mxu0
    %v482 = vadd.f32 0.0, %v481
    %v483 = vpop.f32.mrf.mxu0
    %v484 = vadd.f32 0.0, %v483
    %485 = vmatmul.bf16.gmra.mxu0 %v372
    %v486 = vpop.f32.mrf.mxu0
    %v487 = vadd.f32 0.0, %v486
    %v488 = vpop.f32.mrf.mxu0
    %v489 = vadd.f32 0.0, %v488
    %490 = vmatmul.bf16.gmra.mxu0 %v375
    %v491 = vpop.f32.mrf.mxu0
    %v492 = vadd.f32 0.0, %v491
    %v493 = vpop.f32.mrf.mxu0
    %v494 = vadd.f32 0.0, %v493
    %495 = vmatmul.bf16.gmra.mxu0 %v378
    %v496 = vpop.f32.mrf.mxu0
    %v497 = vadd.f32 0.0, %v496
    %v498 = vpop.f32.mrf.mxu0
    %v499 = vadd.f32 0.0, %v498
    %500 = vmatmul.bf16.gmra.mxu0 %v381
    %v501 = vpop.f32.mrf.mxu0
    %v502 = vadd.f32 0.0, %v501
    %v503 = vpop.f32.mrf.mxu0
    %v504 = vadd.f32 0.0, %v503
    %505 = vmatmul.bf16.gmra.mxu0 %v384
    %v506 = vpop.f32.mrf.mxu0
    %v507 = vadd.f32 0.0, %v506
    %v508 = vpop.f32.mrf.mxu0
    %v509 = vadd.f32 0.0, %v508
    %510 = vmatmul.bf16.gmra.mxu0 %v387
    %v511 = vpop.f32.mrf.mxu0
    %v512 = vadd.f32 0.0, %v511
    %v513 = vpop.f32.mrf.mxu0
    %v514 = vadd.f32 0.0, %v513
    %515 = vmatmul.bf16.gmra.mxu0 %v390
    %v516 = vpop.f32.mrf.mxu0
    %v517 = vadd.f32 0.0, %v516
    %v518 = vpop.f32.mrf.mxu0
    %v519 = vadd.f32 0.0, %v518
    %520 = vmatmul.bf16.gmra.mxu0 %v393
    %v521 = vpop.f32.mrf.mxu0
    %v522 = vadd.f32 0.0, %v521
    %v523 = vpop.f32.mrf.mxu0
    %v524 = vadd.f32 0.0, %v523
    %525 = vmatmul.bf16.gmra.mxu0 %v396
    %v526 = vpop.f32.mrf.mxu0
    %v527 = vadd.f32 0.0, %v526
    %v528 = vpop.f32.mrf.mxu0
    %v529 = vadd.f32 0.0, %v528
    %530 = vmatmul.bf16.gmra.mxu0 %v399
    %v531 = vpop.f32.mrf.mxu0
    %v532 = vadd.f32 0.0, %v531
    %v533 = vpop.f32.mrf.mxu0
    %v534 = vadd.f32 0.0, %v533
    %535 = vmatmul.bf16.gmra.mxu0 %v402
    %v536 = vpop.f32.mrf.mxu0
    %v537 = vadd.f32 0.0, %v536
    %v538 = vpop.f32.mrf.mxu0
    %v539 = vadd.f32 0.0, %v538
    %540 = vmatmul.bf16.gmra.mxu0 %v405
    %v541 = vpop.f32.mrf.mxu0
    %v542 = vadd.f32 0.0, %v541
    %v543 = vpop.f32.mrf.mxu0
    %v544 = vadd.f32 0.0, %v543
    %545 = vmatmul.bf16.gmra.mxu0 %v408
    %v546 = vpop.f32.mrf.mxu0
    %v547 = vadd.f32 0.0, %v546
    %v548 = vpop.f32.mrf.mxu0
    %v549 = vadd.f32 0.0, %v548
    %550 = vmatmul.bf16.gmra.mxu0 %v411
    %v551 = vpop.f32.mrf.mxu0
    %v552 = vadd.f32 0.0, %v551
    %v553 = vpop.f32.mrf.mxu0
    %v554 = vadd.f32 0.0, %v553
    %555 = vmatmul.bf16.gmra.mxu0 %v414
    %v556 = vpop.f32.mrf.mxu0
    %v557 = vadd.f32 0.0, %v556
    %v558 = vpop.f32.mrf.mxu0
    %v559 = vadd.f32 0.0, %v558
    %560 = vmatmul.bf16.gmra.mxu0 %v417
    %v561 = vpop.f32.mrf.mxu0
    %v562 = vadd.f32 0.0, %v561
    %v563 = vpop.f32.mrf.mxu0
    %v564 = vadd.f32 0.0, %v563
    %565 = vmatmul.bf16.gmra.mxu0 %v420
    %v566 = vpop.f32.mrf.mxu0
    %v567 = vadd.f32 0.0, %v566
    %v568 = vpop.f32.mrf.mxu0
    %v569 = vadd.f32 0.0, %v568
    %570 = vmatmul.bf16.gmra.mxu0 %v423
    %v571 = vpop.f32.mrf.mxu0
    %v572 = vadd.f32 0.0, %v571
    %v573 = vpop.f32.mrf.mxu0
    %v574 = vadd.f32 0.0, %v573
    %575 = vmatmul.bf16.gmra.mxu0 %v426
    %v576 = vpop.f32.mrf.mxu0
    %v577 = vadd.f32 0.0, %v576
    %v578 = vpop.f32.mrf.mxu0
    %v579 = vadd.f32 0.0, %v578
    %580 = vmatmul.bf16.gmra.mxu0 %v429
    %v581 = vpop.f32.mrf.mxu0
    %v582 = vadd.f32 0.0, %v581
    %v583 = vpop.f32.mrf.mxu0
    %v584 = vadd.f32 0.0, %v583
    %585 = vmatmul.bf16.gmra.mxu0 %v432
    %v586 = vpop.f32.mrf.mxu0
    %v587 = vadd.f32 0.0, %v586
    %v588 = vpop.f32.mrf.mxu0
    %v589 = vadd.f32 0.0, %v588
    %590 = vmatmul.bf16.gmra.mxu0 %v435
    %v591 = vpop.f32.mrf.mxu0
    %v592 = vadd.f32 0.0, %v591
    %v593 = vpop.f32.mrf.mxu0
    %v594 = vadd.f32 0.0, %v593
    %595 = vmatmul.bf16.gmra.mxu0 %v438
    %v596 = vpop.f32.mrf.mxu0
    %v597 = vadd.f32 0.0, %v596
    %v598 = vpop.f32.mrf.mxu0
    %v599 = vadd.f32 0.0, %v598
    %600 = vmatmul.bf16.gmra.mxu0 %v441
    %v601 = vpop.f32.mrf.mxu0
    %v602 = vadd.f32 0.0, %v601
    %v603 = vpop.f32.mrf.mxu0
    %v604 = vadd.f32 0.0, %v603
    %605 = vmatmul.bf16.gmra.mxu0 %v444
    %v606 = vpop.f32.mrf.mxu0
    %v607 = vadd.f32 0.0, %v606
    %v608 = vpop.f32.mrf.mxu0
    %v609 = vadd.f32 0.0, %v608
    %610 = vmatmul.bf16.gmra.mxu0 %v447
    %v611 = vpop.f32.mrf.mxu0
    %v612 = vadd.f32 0.0, %v611
    %v613 = vpop.f32.mrf.mxu0
    %v614 = vadd.f32 0.0, %v613
    %615 = vmatmul.bf16.gmra.mxu0 %v450
    %v616 = vpop.f32.mrf.mxu0
    %v617 = vadd.f32 0.0, %v616
    %v618 = vpop.f32.mrf.mxu0
    %619 = vdwg.mxu0
    %v683 = vunpack.c.l.b16 %v31
    %v684 = vunpack.c.l.b16 %v32
    %v685 = vunpack.c.l.b16 %v33
    %v686 = vunpack.c.l.b16 %v34
    %v687 = vunpack.c.l.b16 %v35
    %v688 = vunpack.c.l.b16 %v36
    %v689 = vunpack.c.l.b16 %v37
    %v690 = vunpack.c.l.b16 %v38
    %v691 = vunpack.c.l.b16 %v39
    %v692 = vunpack.c.l.b16 %v40
    %v693 = vunpack.c.l.b16 %v41
    %v694 = vunpack.c.l.b16 %v42
    %v695 = vunpack.c.l.b16 %v43
    %v696 = vunpack.c.l.b16 %v44
    %v697 = vunpack.c.l.b16 %v45
    %v698 = vunpack.c.l.b16 %v46
    %v699 = vunpack.c.l.b16 %v47
    %v700 = vunpack.c.l.b16 %v48
    %v701 = vunpack.c.l.b16 %v49
    %v702 = vunpack.c.l.b16 %v50
    %v703 = vunpack.c.l.b16 %v51
    %v704 = vunpack.c.l.b16 %v52
    %v705 = vunpack.c.l.b16 %v53
    %v706 = vunpack.c.l.b16 %v54
    %v707 = vunpack.c.l.b16 %v55
    %v708 = vunpack.c.l.b16 %v56
    %v709 = vunpack.c.l.b16 %v57
    %v710 = vunpack.c.l.b16 %v58
    %v711 = vunpack.c.l.b16 %v59
    %v712 = vunpack.c.l.b16 %v60
    %v713 = vunpack.c.l.b16 %v61
    %v714 = vunpack.c.l.b16 %v62
    %v715 = vunpack.c.l.b16 %v63
    %v716 = vunpack.c.l.b16 %v64
    %v717 = vunpack.c.l.b16 %v65
    %v718 = vunpack.c.l.b16 %v66
    %v719 = vunpack.c.l.b16 %v67
    %v720 = vunpack.c.l.b16 %v68
    %v721 = vunpack.c.l.b16 %v69
    %v722 = vunpack.c.l.b16 %v70
    %v723 = vunpack.c.l.b16 %v71
    %v724 = vunpack.c.l.b16 %v72
    %v725 = vunpack.c.l.b16 %v73
    %v726 = vunpack.c.l.b16 %v74
    %v727 = vunpack.c.l.b16 %v75
    %v728 = vunpack.c.l.b16 %v76
    %v729 = vunpack.c.l.b16 %v77
    %v730 = vunpack.c.l.b16 %v78
    %v731 = vunpack.c.l.b16 %v79
    %v732 = vunpack.c.l.b16 %v80
    %v733 = vunpack.c.l.b16 %v81
    %v734 = vunpack.c.l.b16 %v82
    %v735 = vunpack.c.l.b16 %v83
    %v736 = vunpack.c.l.b16 %v84
    %v737 = vunpack.c.l.b16 %v85
    %v738 = vunpack.c.l.b16 %v86
    %v739 = vunpack.c.l.b16 %v87
    %v740 = vunpack.c.l.b16 %v88
    %v741 = vunpack.c.l.b16 %v89
    %v742 = vunpack.c.l.b16 %v90
    %v743 = vunpack.c.l.b16 %v91
    %v744 = vunpack.c.l.b16 %v92
    %v745 = vunpack.c.l.b16 %v93
    %v746 = vpack.c.b16 %v684, %v683
    %v747 = vpack.c.b16 %v686, %v685
    %v748 = vpack.c.b16 %v688, %v687
    %v749 = vpack.c.b16 %v690, %v689
    %v750 = vpack.c.b16 %v692, %v691
    %v751 = vpack.c.b16 %v694, %v693
    %v752 = vpack.c.b16 %v696, %v695
    %v753 = vpack.c.b16 %v698, %v697
    %v754 = vpack.c.b16 %v700, %v699
    %v755 = vpack.c.b16 %v702, %v701
    %v756 = vpack.c.b16 %v704, %v703
    %v757 = vpack.c.b16 %v706, %v705
    %v758 = vpack.c.b16 %v708, %v707
    %v759 = vpack.c.b16 %v710, %v709
    %v760 = vpack.c.b16 %v712, %v711
    %v761 = vpack.c.b16 %v714, %v713
    %v762 = vpack.c.b16 %v716, %v715
    %v763 = vpack.c.b16 %v718, %v717
    %v764 = vpack.c.b16 %v720, %v719
    %v765 = vpack.c.b16 %v722, %v721
    %v766 = vpack.c.b16 %v724, %v723
    %v767 = vpack.c.b16 %v726, %v725
    %v768 = vpack.c.b16 %v728, %v727
    %v769 = vpack.c.b16 %v730, %v729
    %v770 = vpack.c.b16 %v732, %v731
    %v771 = vpack.c.b16 %v734, %v733
    %v772 = vpack.c.b16 %v736, %v735
    %v773 = vpack.c.b16 %v738, %v737
    %v774 = vpack.c.b16 %v740, %v739
    %v775 = vpack.c.b16 %v742, %v741
    %v776 = vpack.c.b16 %v744, %v743
    %v777 = vpack.c.b16 %v745, %v745
    %v786 = vunpack.c.l.b16 %v94
    %v787 = vunpack.c.l.b16 %v95
    %v788 = vunpack.c.l.b16 %v96
    %v789 = vunpack.c.l.b16 %v97
    %v790 = vunpack.c.l.b16 %v98
    %v791 = vunpack.c.l.b16 %v99
    %v792 = vunpack.c.l.b16 %v100
    %v793 = vunpack.c.l.b16 %v101
    %v794 = vpack.c.b16 %v787, %v786
    %v795 = vpack.c.b16 %v789, %v788
    %v796 = vpack.c.b16 %v791, %v790
    %v797 = vpack.c.b16 %v793, %v792
    %v803 = vsel %vm355, %v746, 0
    %v806 = vsel %vm355, %v747, 0
    %v809 = vsel %vm355, %v748, 0
    %v812 = vsel %vm355, %v749, 0
    %v815 = vsel %vm355, %v750, 0
    %v818 = vsel %vm355, %v751, 0
    %v821 = vsel %vm355, %v752, 0
    %v824 = vsel %vm355, %v753, 0
    %v827 = vsel %vm355, %v754, 0
    %v830 = vsel %vm355, %v755, 0
    %v833 = vsel %vm355, %v756, 0
    %v836 = vsel %vm355, %v757, 0
    %v839 = vsel %vm355, %v758, 0
    %v842 = vsel %vm355, %v759, 0
    %v845 = vsel %vm355, %v760, 0
    %v848 = vsel %vm355, %v761, 0
    %v851 = vsel %vm355, %v762, 0
    %v854 = vsel %vm355, %v763, 0
    %v857 = vsel %vm355, %v764, 0
    %v860 = vsel %vm355, %v765, 0
    %v863 = vsel %vm355, %v766, 0
    %v866 = vsel %vm355, %v767, 0
    %v869 = vsel %vm355, %v768, 0
    %v872 = vsel %vm355, %v769, 0
    %v875 = vsel %vm355, %v770, 0
    %v878 = vsel %vm355, %v771, 0
    %v881 = vsel %vm355, %v772, 0
    %v884 = vsel %vm355, %v773, 0
    %v887 = vsel %vm355, %v774, 0
    %v890 = vsel %vm355, %v775, 0
    %v893 = vsel %vm355, %v776, 0
    %v896 = vsel %vm355, %v777, 0
    %898 = vmatpush.bf16.msra.mxu0 0
    %899 = vmatpush.bf16.msra.mxu0 0
    %900 = vmatpush.bf16.msra.mxu0 0
    %901 = vmatpush.bf16.msra.mxu0 0
    %902 = vmatpush.bf16.msra.mxu0 %v797
    %903 = vmatpush.bf16.msra.mxu0 %v796
    %904 = vmatpush.bf16.msra.mxu0 %v795
    %905 = vmatpush.bf16.msra.mxu0 %v794
    %906 = vmatmul.bf16.gmra.mxu0 %v803
    %v907 = vpop.f32.mrf.mxu0
    %v908 = vadd.f32 %v462, %v907
    %v909 = vpop.f32.mrf.mxu0
    %v910 = vadd.f32 %v464, %v909
    %911 = vmatmul.bf16.gmra.mxu0 %v806
    %v912 = vpop.f32.mrf.mxu0
    %v913 = vadd.f32 %v467, %v912
    %v914 = vpop.f32.mrf.mxu0
    %v915 = vadd.f32 %v469, %v914
    %916 = vmatmul.bf16.gmra.mxu0 %v809
    %v917 = vpop.f32.mrf.mxu0
    %v918 = vadd.f32 %v472, %v917
    %v919 = vpop.f32.mrf.mxu0
    %v920 = vadd.f32 %v474, %v919
    %921 = vmatmul.bf16.gmra.mxu0 %v812
    %v922 = vpop.f32.mrf.mxu0
    %v923 = vadd.f32 %v477, %v922
    %v924 = vpop.f32.mrf.mxu0
    %v925 = vadd.f32 %v479, %v924
    %926 = vmatmul.bf16.gmra.mxu0 %v815
    %v927 = vpop.f32.mrf.mxu0
    %v928 = vadd.f32 %v482, %v927
    %v929 = vpop.f32.mrf.mxu0
    %v930 = vadd.f32 %v484, %v929
    %931 = vmatmul.bf16.gmra.mxu0 %v818
    %v932 = vpop.f32.mrf.mxu0
    %v933 = vadd.f32 %v487, %v932
    %v934 = vpop.f32.mrf.mxu0
    %v935 = vadd.f32 %v489, %v934
    %936 = vmatmul.bf16.gmra.mxu0 %v821
    %v937 = vpop.f32.mrf.mxu0
    %v938 = vadd.f32 %v492, %v937
    %v939 = vpop.f32.mrf.mxu0
    %v940 = vadd.f32 %v494, %v939
    %941 = vmatmul.bf16.gmra.mxu0 %v824
    %v942 = vpop.f32.mrf.mxu0
    %v943 = vadd.f32 %v497, %v942
    %v944 = vpop.f32.mrf.mxu0
    %v945 = vadd.f32 %v499, %v944
    %946 = vmatmul.bf16.gmra.mxu0 %v827
    %v947 = vpop.f32.mrf.mxu0
    %v948 = vadd.f32 %v502, %v947
    %v949 = vpop.f32.mrf.mxu0
    %v950 = vadd.f32 %v504, %v949
    %951 = vmatmul.bf16.gmra.mxu0 %v830
    %v952 = vpop.f32.mrf.mxu0
    %v953 = vadd.f32 %v507, %v952
    %v954 = vpop.f32.mrf.mxu0
    %v955 = vadd.f32 %v509, %v954
    %956 = vmatmul.bf16.gmra.mxu0 %v833
    %v957 = vpop.f32.mrf.mxu0
    %v958 = vadd.f32 %v512, %v957
    %v959 = vpop.f32.mrf.mxu0
    %v960 = vadd.f32 %v514, %v959
    %961 = vmatmul.bf16.gmra.mxu0 %v836
    %v962 = vpop.f32.mrf.mxu0
    %v963 = vadd.f32 %v517, %v962
    %v964 = vpop.f32.mrf.mxu0
    %v965 = vadd.f32 %v519, %v964
    %966 = vmatmul.bf16.gmra.mxu0 %v839
    %v967 = vpop.f32.mrf.mxu0
    %v968 = vadd.f32 %v522, %v967
    %v969 = vpop.f32.mrf.mxu0
    %v970 = vadd.f32 %v524, %v969
    %971 = vmatmul.bf16.gmra.mxu0 %v842
    %v972 = vpop.f32.mrf.mxu0
    %v973 = vadd.f32 %v527, %v972
    %v974 = vpop.f32.mrf.mxu0
    %v975 = vadd.f32 %v529, %v974
    %976 = vmatmul.bf16.gmra.mxu0 %v845
    %v977 = vpop.f32.mrf.mxu0
    %v978 = vadd.f32 %v532, %v977
    %v979 = vpop.f32.mrf.mxu0
    %v980 = vadd.f32 %v534, %v979
    %981 = vmatmul.bf16.gmra.mxu0 %v848
    %v982 = vpop.f32.mrf.mxu0
    %v983 = vadd.f32 %v537, %v982
    %v984 = vpop.f32.mrf.mxu0
    %v985 = vadd.f32 %v539, %v984
    %986 = vmatmul.bf16.gmra.mxu0 %v851
    %v987 = vpop.f32.mrf.mxu0
    %v988 = vadd.f32 %v542, %v987
    %v989 = vpop.f32.mrf.mxu0
    %v990 = vadd.f32 %v544, %v989
    %991 = vmatmul.bf16.gmra.mxu0 %v854
    %v992 = vpop.f32.mrf.mxu0
    %v993 = vadd.f32 %v547, %v992
    %v994 = vpop.f32.mrf.mxu0
    %v995 = vadd.f32 %v549, %v994
    %996 = vmatmul.bf16.gmra.mxu0 %v857
    %v997 = vpop.f32.mrf.mxu0
    %v998 = vadd.f32 %v552, %v997
    %v999 = vpop.f32.mrf.mxu0
    %v1000 = vadd.f32 %v554, %v999
    %1001 = vmatmul.bf16.gmra.mxu0 %v860
    %v1002 = vpop.f32.mrf.mxu0
    %v1003 = vadd.f32 %v557, %v1002
    %v1004 = vpop.f32.mrf.mxu0
    %v1005 = vadd.f32 %v559, %v1004
    %1006 = vmatmul.bf16.gmra.mxu0 %v863
    %v1007 = vpop.f32.mrf.mxu0
    %v1008 = vadd.f32 %v562, %v1007
    %v1009 = vpop.f32.mrf.mxu0
    %v1010 = vadd.f32 %v564, %v1009
    %1011 = vmatmul.bf16.gmra.mxu0 %v866
    %v1012 = vpop.f32.mrf.mxu0
    %v1013 = vadd.f32 %v567, %v1012
    %v1014 = vpop.f32.mrf.mxu0
    %v1015 = vadd.f32 %v569, %v1014
    %1016 = vmatmul.bf16.gmra.mxu0 %v869
    %v1017 = vpop.f32.mrf.mxu0
    %v1018 = vadd.f32 %v572, %v1017
    %v1019 = vpop.f32.mrf.mxu0
    %v1020 = vadd.f32 %v574, %v1019
    %1021 = vmatmul.bf16.gmra.mxu0 %v872
    %v1022 = vpop.f32.mrf.mxu0
    %v1023 = vadd.f32 %v577, %v1022
    %v1024 = vpop.f32.mrf.mxu0
    %v1025 = vadd.f32 %v579, %v1024
    %1026 = vmatmul.bf16.gmra.mxu0 %v875
    %v1027 = vpop.f32.mrf.mxu0
    %v1028 = vadd.f32 %v582, %v1027
    %v1029 = vpop.f32.mrf.mxu0
    %v1030 = vadd.f32 %v584, %v1029
    %1031 = vmatmul.bf16.gmra.mxu0 %v878
    %v1032 = vpop.f32.mrf.mxu0
    %v1033 = vadd.f32 %v587, %v1032
    %v1034 = vpop.f32.mrf.mxu0
    %v1035 = vadd.f32 %v589, %v1034
    %1036 = vmatmul.bf16.gmra.mxu0 %v881
    %v1037 = vpop.f32.mrf.mxu0
    %v1038 = vadd.f32 %v592, %v1037
    %v1039 = vpop.f32.mrf.mxu0
    %v1040 = vadd.f32 %v594, %v1039
    %1041 = vmatmul.bf16.gmra.mxu0 %v884
    %v1042 = vpop.f32.mrf.mxu0
    %v1043 = vadd.f32 %v597, %v1042
    %v1044 = vpop.f32.mrf.mxu0
    %v1045 = vadd.f32 %v599, %v1044
    %1046 = vmatmul.bf16.gmra.mxu0 %v887
    %v1047 = vpop.f32.mrf.mxu0
    %v1048 = vadd.f32 %v602, %v1047
    %v1049 = vpop.f32.mrf.mxu0
    %v1050 = vadd.f32 %v604, %v1049
    %1051 = vmatmul.bf16.gmra.mxu0 %v890
    %v1052 = vpop.f32.mrf.mxu0
    %v1053 = vadd.f32 %v607, %v1052
    %v1054 = vpop.f32.mrf.mxu0
    %v1055 = vadd.f32 %v609, %v1054
    %1056 = vmatmul.bf16.gmra.mxu0 %v893
    %v1057 = vpop.f32.mrf.mxu0
    %v1058 = vadd.f32 %v612, %v1057
    %v1059 = vpop.f32.mrf.mxu0
    %v1060 = vadd.f32 %v614, %v1059
    %1061 = vmatmul.bf16.gmra.mxu0 %v896
    %v1062 = vpop.f32.mrf.mxu0
    %v1063 = vadd.f32 %v617, %v1062
    %v1064 = vpop.f32.mrf.mxu0
    %1065 = vdwg.mxu0
    %v1066 = vld [vmem:[%s4] sm:$0x1]
    %v1068 = vperm.slane %v1066, 0
    %v1070 = vadd.f32 %v908, %v1068
    %v1071 = vadd.f32 %v910, %v1068
    %v1072 = vadd.f32 %v913, %v1068
    %v1073 = vadd.f32 %v915, %v1068
    %v1074 = vadd.f32 %v918, %v1068
    %v1075 = vadd.f32 %v920, %v1068
    %v1076 = vadd.f32 %v923, %v1068
    %v1077 = vadd.f32 %v925, %v1068
    %v1078 = vadd.f32 %v928, %v1068
    %v1079 = vadd.f32 %v930, %v1068
    %v1080 = vadd.f32 %v933, %v1068
    %v1081 = vadd.f32 %v935, %v1068
    %v1082 = vadd.f32 %v938, %v1068
    %v1083 = vadd.f32 %v940, %v1068
    %v1084 = vadd.f32 %v943, %v1068
    %v1085 = vadd.f32 %v945, %v1068
    %v1086 = vadd.f32 %v948, %v1068
    %v1087 = vadd.f32 %v950, %v1068
    %v1088 = vadd.f32 %v953, %v1068
    %v1089 = vadd.f32 %v955, %v1068
    %v1090 = vadd.f32 %v958, %v1068
    %v1091 = vadd.f32 %v960, %v1068
    %v1092 = vadd.f32 %v963, %v1068
    %v1093 = vadd.f32 %v965, %v1068
    %v1094 = vadd.f32 %v968, %v1068
    %v1095 = vadd.f32 %v970, %v1068
    %v1096 = vadd.f32 %v973, %v1068
    %v1097 = vadd.f32 %v975, %v1068
    %v1098 = vadd.f32 %v978, %v1068
    %v1099 = vadd.f32 %v980, %v1068
    %v1100 = vadd.f32 %v983, %v1068
    %v1101 = vadd.f32 %v985, %v1068
    %v1102 = vadd.f32 %v988, %v1068
    %v1103 = vadd.f32 %v990, %v1068
    %v1104 = vadd.f32 %v993, %v1068
    %v1105 = vadd.f32 %v995, %v1068
    %v1106 = vadd.f32 %v998, %v1068
    %v1107 = vadd.f32 %v1000, %v1068
    %v1108 = vadd.f32 %v1003, %v1068
    %v1109 = vadd.f32 %v1005, %v1068
    %v1110 = vadd.f32 %v1008, %v1068
    %v1111 = vadd.f32 %v1010, %v1068
    %v1112 = vadd.f32 %v1013, %v1068
    %v1113 = vadd.f32 %v1015, %v1068
    %v1114 = vadd.f32 %v1018, %v1068
    %v1115 = vadd.f32 %v1020, %v1068
    %v1116 = vadd.f32 %v1023, %v1068
    %v1117 = vadd.f32 %v1025, %v1068
    %v1118 = vadd.f32 %v1028, %v1068
    %v1119 = vadd.f32 %v1030, %v1068
    %v1120 = vadd.f32 %v1033, %v1068
    %v1121 = vadd.f32 %v1035, %v1068
    %v1122 = vadd.f32 %v1038, %v1068
    %v1123 = vadd.f32 %v1040, %v1068
    %v1124 = vadd.f32 %v1043, %v1068
    %v1125 = vadd.f32 %v1045, %v1068
    %v1126 = vadd.f32 %v1048, %v1068
    %v1127 = vadd.f32 %v1050, %v1068
    %v1128 = vadd.f32 %v1053, %v1068
    %v1129 = vadd.f32 %v1055, %v1068
    %v1130 = vadd.f32 %v1058, %v1068
    %v1131 = vadd.f32 %v1060, %v1068
    %v1132 = vadd.f32 %v1063, %v1068
    %v1133 = vmax.f32 %v1070, 0.0
    %v1134 = vmax.f32 %v1071, 0.0
    %v1135 = vmax.f32 %v1072, 0.0
    %v1136 = vmax.f32 %v1073, 0.0
    %v1137 = vmax.f32 %v1074, 0.0
    %v1138 = vmax.f32 %v1075, 0.0
    %v1139 = vmax.f32 %v1076, 0.0
    %v1140 = vmax.f32 %v1077, 0.0
    %v1141 = vmax.f32 %v1078, 0.0
    %v1142 = vmax.f32 %v1079, 0.0
    %v1143 = vmax.f32 %v1080, 0.0
    %v1144 = vmax.f32 %v1081, 0.0
    %v1145 = vmax.f32 %v1082, 0.0
    %v1146 = vmax.f32 %v1083, 0.0
    %v1147 = vmax.f32 %v1084, 0.0
    %v1148 = vmax.f32 %v1085, 0.0
    %v1149 = vmax.f32 %v1086, 0.0
    %v1150 = vmax.f32 %v1087, 0.0
    %v1151 = vmax.f32 %v1088, 0.0
    %v1152 = vmax.f32 %v1089, 0.0
    %v1153 = vmax.f32 %v1090, 0.0
    %v1154 = vmax.f32 %v1091, 0.0
    %v1155 = vmax.f32 %v1092, 0.0
    %v1156 = vmax.f32 %v1093, 0.0
    %v1157 = vmax.f32 %v1094, 0.0
    %v1158 = vmax.f32 %v1095, 0.0
    %v1159 = vmax.f32 %v1096, 0.0
    %v1160 = vmax.f32 %v1097, 0.0
    %v1161 = vmax.f32 %v1098, 0.0
    %v1162 = vmax.f32 %v1099, 0.0
    %v1163 = vmax.f32 %v1100, 0.0
    %v1164 = vmax.f32 %v1101, 0.0
    %v1165 = vmax.f32 %v1102, 0.0
    %v1166 = vmax.f32 %v1103, 0.0
    %v1167 = vmax.f32 %v1104, 0.0
    %v1168 = vmax.f32 %v1105, 0.0
    %v1169 = vmax.f32 %v1106, 0.0
    %v1170 = vmax.f32 %v1107, 0.0
    %v1171 = vmax.f32 %v1108, 0.0
    %v1172 = vmax.f32 %v1109, 0.0
    %v1173 = vmax.f32 %v1110, 0.0
    %v1174 = vmax.f32 %v1111, 0.0
    %v1175 = vmax.f32 %v1112, 0.0
    %v1176 = vmax.f32 %v1113, 0.0
    %v1177 = vmax.f32 %v1114, 0.0
    %v1178 = vmax.f32 %v1115, 0.0
    %v1179 = vmax.f32 %v1116, 0.0
    %v1180 = vmax.f32 %v1117, 0.0
    %v1181 = vmax.f32 %v1118, 0.0
    %v1182 = vmax.f32 %v1119, 0.0
    %v1183 = vmax.f32 %v1120, 0.0
    %v1184 = vmax.f32 %v1121, 0.0
    %v1185 = vmax.f32 %v1122, 0.0
    %v1186 = vmax.f32 %v1123, 0.0
    %v1187 = vmax.f32 %v1124, 0.0
    %v1188 = vmax.f32 %v1125, 0.0
    %v1189 = vmax.f32 %v1126, 0.0
    %v1190 = vmax.f32 %v1127, 0.0
    %v1191 = vmax.f32 %v1128, 0.0
    %v1192 = vmax.f32 %v1129, 0.0
    %v1193 = vmax.f32 %v1130, 0.0
    %v1194 = vmax.f32 %v1131, 0.0
    %v1195 = vmax.f32 %v1132, 0.0
    %v1196 = vpack.c.bf16 %v1134, %v1133
    %v1197 = vpack.c.bf16 %v1136, %v1135
    %v1198 = vpack.c.bf16 %v1138, %v1137
    %v1199 = vpack.c.bf16 %v1140, %v1139
    %v1200 = vpack.c.bf16 %v1142, %v1141
    %v1201 = vpack.c.bf16 %v1144, %v1143
    %v1202 = vpack.c.bf16 %v1146, %v1145
    %v1203 = vpack.c.bf16 %v1148, %v1147
    %v1204 = vpack.c.bf16 %v1150, %v1149
    %v1205 = vpack.c.bf16 %v1152, %v1151
    %v1206 = vpack.c.bf16 %v1154, %v1153
    %v1207 = vpack.c.bf16 %v1156, %v1155
    %v1208 = vpack.c.bf16 %v1158, %v1157
    %v1209 = vpack.c.bf16 %v1160, %v1159
    %v1210 = vpack.c.bf16 %v1162, %v1161
    %v1211 = vpack.c.bf16 %v1164, %v1163
    %v1212 = vpack.c.bf16 %v1166, %v1165
    %v1213 = vpack.c.bf16 %v1168, %v1167
    %v1214 = vpack.c.bf16 %v1170, %v1169
    %v1215 = vpack.c.bf16 %v1172, %v1171
    %v1216 = vpack.c.bf16 %v1174, %v1173
    %v1217 = vpack.c.bf16 %v1176, %v1175
    %v1218 = vpack.c.bf16 %v1178, %v1177
    %v1219 = vpack.c.bf16 %v1180, %v1179
    %v1220 = vpack.c.bf16 %v1182, %v1181
    %v1221 = vpack.c.bf16 %v1184, %v1183
    %v1222 = vpack.c.bf16 %v1186, %v1185
    %v1223 = vpack.c.bf16 %v1188, %v1187
    %v1224 = vpack.c.bf16 %v1190, %v1189
    %v1225 = vpack.c.bf16 %v1192, %v1191
    %v1226 = vpack.c.bf16 %v1194, %v1193
    %v1227 = vpack.c.bf16 %v1195, %v1195
    %v1228 = vld [vmem:[%s5] sm:$0xf]
    %v1229 = vld [vmem:[%s5 + $0x4] sm:$0xf]
    %v1230 = vld [vmem:[%s5 + $0x8] sm:$0xf]
    %v1231 = vld [vmem:[%s5 + $0xc] sm:$0xf]
    %v1232 = vld [vmem:[%s5 + $0x10] sm:$0xf]
    %v1233 = vld [vmem:[%s5 + $0x14] sm:$0xf]
    %v1234 = vld [vmem:[%s5 + $0x18] sm:$0xf]
    %v1235 = vld [vmem:[%s5 + $0x1c] sm:$0xf]
    %v1236 = vld [vmem:[%s5 + $0x20] sm:$0xf]
    %v1237 = vld [vmem:[%s5 + $0x24] sm:$0xf]
    %v1238 = vld [vmem:[%s5 + $0x28] sm:$0xf]
    %v1239 = vld [vmem:[%s5 + $0x2c] sm:$0xf]
    %v1240 = vld [vmem:[%s5 + $0x30] sm:$0xf]
    %v1241 = vld [vmem:[%s5 + $0x34] sm:$0xf]
    %v1242 = vld [vmem:[%s5 + $0x38] sm:$0xf]
    %v1243 = vld [vmem:[%s5 + $0x3c] sm:$0xf]
    %v1244 = vld [vmem:[%s6] sm:$0x1]
    %v1246 = vperm.slane %v1244, 0
    %v1264 = vunpack.c.l.b16 %v1228
    %v1265 = vunpack.c.l.b16 %v1229
    %v1266 = vunpack.c.l.b16 %v1230
    %v1267 = vunpack.c.l.b16 %v1231
    %v1268 = vunpack.c.l.b16 %v1232
    %v1269 = vunpack.c.l.b16 %v1233
    %v1270 = vunpack.c.l.b16 %v1234
    %v1271 = vunpack.c.l.b16 %v1235
    %v1272 = vunpack.c.l.b16 %v1236
    %v1273 = vunpack.c.l.b16 %v1237
    %v1274 = vunpack.c.l.b16 %v1238
    %v1275 = vunpack.c.l.b16 %v1239
    %v1276 = vunpack.c.l.b16 %v1240
    %v1277 = vunpack.c.l.b16 %v1241
    %v1278 = vunpack.c.l.b16 %v1242
    %v1279 = vunpack.c.l.b16 %v1243
    %v1280 = vpack.c.b16 %v1265, %v1264
    %v1281 = vpack.c.b16 %v1267, %v1266
    %v1282 = vpack.c.b16 %v1269, %v1268
    %v1283 = vpack.c.b16 %v1271, %v1270
    %v1284 = vpack.c.b16 %v1273, %v1272
    %v1285 = vpack.c.b16 %v1275, %v1274
    %v1286 = vpack.c.b16 %v1277, %v1276
    %v1287 = vpack.c.b16 %v1279, %v1278
    %1296 = vmatpush.bf16.msra.mxu0 %v1287
    %1297 = vmatpush.bf16.msra.mxu0 %v1286
    %1298 = vmatpush.bf16.msra.mxu0 %v1285
    %1299 = vmatpush.bf16.msra.mxu0 %v1284
    %1300 = vmatpush.bf16.msra.mxu0 %v1283
    %1301 = vmatpush.bf16.msra.mxu0 %v1282
    %1302 = vmatpush.bf16.msra.mxu0 %v1281
    %1303 = vmatpush.bf16.msra.mxu0 %v1280
    %1304 = vmatmul.bf16.gmra.mxu0 %v1196
    %v1305 = vpop.f32.mrf.mxu0
    %v1306 = vadd.f32 %v1246, %v1305
    %v1307 = vpop.f32.mrf.mxu0
    %v1308 = vadd.f32 %v1246, %v1307
    %1309 = vmatmul.bf16.gmra.mxu0 %v1197
    %v1310 = vpop.f32.mrf.mxu0
    %v1311 = vadd.f32 %v1246, %v1310
    %v1312 = vpop.f32.mrf.mxu0
    %v1313 = vadd.f32 %v1246, %v1312
    %1314 = vmatmul.bf16.gmra.mxu0 %v1198
    %v1315 = vpop.f32.mrf.mxu0
    %v1316 = vadd.f32 %v1246, %v1315
    %v1317 = vpop.f32.mrf.mxu0
    %v1318 = vadd.f32 %v1246, %v1317
    %1319 = vmatmul.bf16.gmra.mxu0 %v1199
    %v1320 = vpop.f32.mrf.mxu0
    %v1321 = vadd.f32 %v1246, %v1320
    %v1322 = vpop.f32.mrf.mxu0
    %v1323 = vadd.f32 %v1246, %v1322
    %1324 = vmatmul.bf16.gmra.mxu0 %v1200
    %v1325 = vpop.f32.mrf.mxu0
    %v1326 = vadd.f32 %v1246, %v1325
    %v1327 = vpop.f32.mrf.mxu0
    %v1328 = vadd.f32 %v1246, %v1327
    %1329 = vmatmul.bf16.gmra.mxu0 %v1201
    %v1330 = vpop.f32.mrf.mxu0
    %v1331 = vadd.f32 %v1246, %v1330
    %v1332 = vpop.f32.mrf.mxu0
    %v1333 = vadd.f32 %v1246, %v1332
    %1334 = vmatmul.bf16.gmra.mxu0 %v1202
    %v1335 = vpop.f32.mrf.mxu0
    %v1336 = vadd.f32 %v1246, %v1335
    %v1337 = vpop.f32.mrf.mxu0
    %v1338 = vadd.f32 %v1246, %v1337
    %1339 = vmatmul.bf16.gmra.mxu0 %v1203
    %v1340 = vpop.f32.mrf.mxu0
    %v1341 = vadd.f32 %v1246, %v1340
    %v1342 = vpop.f32.mrf.mxu0
    %v1343 = vadd.f32 %v1246, %v1342
    %1344 = vmatmul.bf16.gmra.mxu0 %v1204
    %v1345 = vpop.f32.mrf.mxu0
    %v1346 = vadd.f32 %v1246, %v1345
    %v1347 = vpop.f32.mrf.mxu0
    %v1348 = vadd.f32 %v1246, %v1347
    %1349 = vmatmul.bf16.gmra.mxu0 %v1205
    %v1350 = vpop.f32.mrf.mxu0
    %v1351 = vadd.f32 %v1246, %v1350
    %v1352 = vpop.f32.mrf.mxu0
    %v1353 = vadd.f32 %v1246, %v1352
    %1354 = vmatmul.bf16.gmra.mxu0 %v1206
    %v1355 = vpop.f32.mrf.mxu0
    %v1356 = vadd.f32 %v1246, %v1355
    %v1357 = vpop.f32.mrf.mxu0
    %v1358 = vadd.f32 %v1246, %v1357
    %1359 = vmatmul.bf16.gmra.mxu0 %v1207
    %v1360 = vpop.f32.mrf.mxu0
    %v1361 = vadd.f32 %v1246, %v1360
    %v1362 = vpop.f32.mrf.mxu0
    %v1363 = vadd.f32 %v1246, %v1362
    %1364 = vmatmul.bf16.gmra.mxu0 %v1208
    %v1365 = vpop.f32.mrf.mxu0
    %v1366 = vadd.f32 %v1246, %v1365
    %v1367 = vpop.f32.mrf.mxu0
    %v1368 = vadd.f32 %v1246, %v1367
    %1369 = vmatmul.bf16.gmra.mxu0 %v1209
    %v1370 = vpop.f32.mrf.mxu0
    %v1371 = vadd.f32 %v1246, %v1370
    %v1372 = vpop.f32.mrf.mxu0
    %v1373 = vadd.f32 %v1246, %v1372
    %1374 = vmatmul.bf16.gmra.mxu0 %v1210
    %v1375 = vpop.f32.mrf.mxu0
    %v1376 = vadd.f32 %v1246, %v1375
    %v1377 = vpop.f32.mrf.mxu0
    %v1378 = vadd.f32 %v1246, %v1377
    %1379 = vmatmul.bf16.gmra.mxu0 %v1211
    %v1380 = vpop.f32.mrf.mxu0
    %v1381 = vadd.f32 %v1246, %v1380
    %v1382 = vpop.f32.mrf.mxu0
    %v1383 = vadd.f32 %v1246, %v1382
    %1384 = vmatmul.bf16.gmra.mxu0 %v1212
    %v1385 = vpop.f32.mrf.mxu0
    %v1386 = vadd.f32 %v1246, %v1385
    %v1387 = vpop.f32.mrf.mxu0
    %v1388 = vadd.f32 %v1246, %v1387
    %1389 = vmatmul.bf16.gmra.mxu0 %v1213
    %v1390 = vpop.f32.mrf.mxu0
    %v1391 = vadd.f32 %v1246, %v1390
    %v1392 = vpop.f32.mrf.mxu0
    %v1393 = vadd.f32 %v1246, %v1392
    %1394 = vmatmul.bf16.gmra.mxu0 %v1214
    %v1395 = vpop.f32.mrf.mxu0
    %v1396 = vadd.f32 %v1246, %v1395
    %v1397 = vpop.f32.mrf.mxu0
    %v1398 = vadd.f32 %v1246, %v1397
    %1399 = vmatmul.bf16.gmra.mxu0 %v1215
    %v1400 = vpop.f32.mrf.mxu0
    %v1401 = vadd.f32 %v1246, %v1400
    %v1402 = vpop.f32.mrf.mxu0
    %v1403 = vadd.f32 %v1246, %v1402
    %1404 = vmatmul.bf16.gmra.mxu0 %v1216
    %v1405 = vpop.f32.mrf.mxu0
    %v1406 = vadd.f32 %v1246, %v1405
    %v1407 = vpop.f32.mrf.mxu0
    %v1408 = vadd.f32 %v1246, %v1407
    %1409 = vmatmul.bf16.gmra.mxu0 %v1217
    %v1410 = vpop.f32.mrf.mxu0
    %v1411 = vadd.f32 %v1246, %v1410
    %v1412 = vpop.f32.mrf.mxu0
    %v1413 = vadd.f32 %v1246, %v1412
    %1414 = vmatmul.bf16.gmra.mxu0 %v1218
    %v1415 = vpop.f32.mrf.mxu0
    %v1416 = vadd.f32 %v1246, %v1415
    %v1417 = vpop.f32.mrf.mxu0
    %v1418 = vadd.f32 %v1246, %v1417
    %1419 = vmatmul.bf16.gmra.mxu0 %v1219
    %v1420 = vpop.f32.mrf.mxu0
    %v1421 = vadd.f32 %v1246, %v1420
    %v1422 = vpop.f32.mrf.mxu0
    %v1423 = vadd.f32 %v1246, %v1422
    %1424 = vmatmul.bf16.gmra.mxu0 %v1220
    %v1425 = vpop.f32.mrf.mxu0
    %v1426 = vadd.f32 %v1246, %v1425
    %v1427 = vpop.f32.mrf.mxu0
    %v1428 = vadd.f32 %v1246, %v1427
    %1429 = vmatmul.bf16.gmra.mxu0 %v1221
    %v1430 = vpop.f32.mrf.mxu0
    %v1431 = vadd.f32 %v1246, %v1430
    %v1432 = vpop.f32.mrf.mxu0
    %v1433 = vadd.f32 %v1246, %v1432
    %1434 = vmatmul.bf16.gmra.mxu0 %v1222
    %v1435 = vpop.f32.mrf.mxu0
    %v1436 = vadd.f32 %v1246, %v1435
    %v1437 = vpop.f32.mrf.mxu0
    %v1438 = vadd.f32 %v1246, %v1437
    %1439 = vmatmul.bf16.gmra.mxu0 %v1223
    %v1440 = vpop.f32.mrf.mxu0
    %v1441 = vadd.f32 %v1246, %v1440
    %v1442 = vpop.f32.mrf.mxu0
    %v1443 = vadd.f32 %v1246, %v1442
    %1444 = vmatmul.bf16.gmra.mxu0 %v1224
    %v1445 = vpop.f32.mrf.mxu0
    %v1446 = vadd.f32 %v1246, %v1445
    %v1447 = vpop.f32.mrf.mxu0
    %v1448 = vadd.f32 %v1246, %v1447
    %1449 = vmatmul.bf16.gmra.mxu0 %v1225
    %v1450 = vpop.f32.mrf.mxu0
    %v1451 = vadd.f32 %v1246, %v1450
    %v1452 = vpop.f32.mrf.mxu0
    %v1453 = vadd.f32 %v1246, %v1452
    %1454 = vmatmul.bf16.gmra.mxu0 %v1226
    %v1455 = vpop.f32.mrf.mxu0
    %v1456 = vadd.f32 %v1246, %v1455
    %v1457 = vpop.f32.mrf.mxu0
    %v1458 = vadd.f32 %v1246, %v1457
    %1459 = vmatmul.bf16.gmra.mxu0 %v1227
    %v1460 = vpop.f32.mrf.mxu0
    %v1461 = vadd.f32 %v1246, %v1460
    %v1462 = vpop.f32.mrf.mxu0
    %1463 = vdwg.mxu0
    %v1464 = vmax.f32 %v1306, 0.0
    %v1465 = vmax.f32 %v1308, 0.0
    %v1466 = vmax.f32 %v1311, 0.0
    %v1467 = vmax.f32 %v1313, 0.0
    %v1468 = vmax.f32 %v1316, 0.0
    %v1469 = vmax.f32 %v1318, 0.0
    %v1470 = vmax.f32 %v1321, 0.0
    %v1471 = vmax.f32 %v1323, 0.0
    %v1472 = vmax.f32 %v1326, 0.0
    %v1473 = vmax.f32 %v1328, 0.0
    %v1474 = vmax.f32 %v1331, 0.0
    %v1475 = vmax.f32 %v1333, 0.0
    %v1476 = vmax.f32 %v1336, 0.0
    %v1477 = vmax.f32 %v1338, 0.0
    %v1478 = vmax.f32 %v1341, 0.0
    %v1479 = vmax.f32 %v1343, 0.0
    %v1480 = vmax.f32 %v1346, 0.0
    %v1481 = vmax.f32 %v1348, 0.0
    %v1482 = vmax.f32 %v1351, 0.0
    %v1483 = vmax.f32 %v1353, 0.0
    %v1484 = vmax.f32 %v1356, 0.0
    %v1485 = vmax.f32 %v1358, 0.0
    %v1486 = vmax.f32 %v1361, 0.0
    %v1487 = vmax.f32 %v1363, 0.0
    %v1488 = vmax.f32 %v1366, 0.0
    %v1489 = vmax.f32 %v1368, 0.0
    %v1490 = vmax.f32 %v1371, 0.0
    %v1491 = vmax.f32 %v1373, 0.0
    %v1492 = vmax.f32 %v1376, 0.0
    %v1493 = vmax.f32 %v1378, 0.0
    %v1494 = vmax.f32 %v1381, 0.0
    %v1495 = vmax.f32 %v1383, 0.0
    %v1496 = vmax.f32 %v1386, 0.0
    %v1497 = vmax.f32 %v1388, 0.0
    %v1498 = vmax.f32 %v1391, 0.0
    %v1499 = vmax.f32 %v1393, 0.0
    %v1500 = vmax.f32 %v1396, 0.0
    %v1501 = vmax.f32 %v1398, 0.0
    %v1502 = vmax.f32 %v1401, 0.0
    %v1503 = vmax.f32 %v1403, 0.0
    %v1504 = vmax.f32 %v1406, 0.0
    %v1505 = vmax.f32 %v1408, 0.0
    %v1506 = vmax.f32 %v1411, 0.0
    %v1507 = vmax.f32 %v1413, 0.0
    %v1508 = vmax.f32 %v1416, 0.0
    %v1509 = vmax.f32 %v1418, 0.0
    %v1510 = vmax.f32 %v1421, 0.0
    %v1511 = vmax.f32 %v1423, 0.0
    %v1512 = vmax.f32 %v1426, 0.0
    %v1513 = vmax.f32 %v1428, 0.0
    %v1514 = vmax.f32 %v1431, 0.0
    %v1515 = vmax.f32 %v1433, 0.0
    %v1516 = vmax.f32 %v1436, 0.0
    %v1517 = vmax.f32 %v1438, 0.0
    %v1518 = vmax.f32 %v1441, 0.0
    %v1519 = vmax.f32 %v1443, 0.0
    %v1520 = vmax.f32 %v1446, 0.0
    %v1521 = vmax.f32 %v1448, 0.0
    %v1522 = vmax.f32 %v1451, 0.0
    %v1523 = vmax.f32 %v1453, 0.0
    %v1524 = vmax.f32 %v1456, 0.0
    %v1525 = vmax.f32 %v1458, 0.0
    %v1526 = vmax.f32 %v1461, 0.0
    %v1527 = vld [vmem:[%s7] sm:$0x1]
    %v1529 = vperm.slane %v1527, 0
    %v1531 = vmul.f32 %v1464, %v1529
    %v1532 = vmul.f32 %v1465, %v1529
    %v1533 = vmul.f32 %v1466, %v1529
    %v1534 = vmul.f32 %v1467, %v1529
    %v1535 = vmul.f32 %v1468, %v1529
    %v1536 = vmul.f32 %v1469, %v1529
    %v1537 = vmul.f32 %v1470, %v1529
    %v1538 = vmul.f32 %v1471, %v1529
    %v1539 = vmul.f32 %v1472, %v1529
    %v1540 = vmul.f32 %v1473, %v1529
    %v1541 = vmul.f32 %v1474, %v1529
    %v1542 = vmul.f32 %v1475, %v1529
    %v1543 = vmul.f32 %v1476, %v1529
    %v1544 = vmul.f32 %v1477, %v1529
    %v1545 = vmul.f32 %v1478, %v1529
    %v1546 = vmul.f32 %v1479, %v1529
    %v1547 = vmul.f32 %v1480, %v1529
    %v1548 = vmul.f32 %v1481, %v1529
    %v1549 = vmul.f32 %v1482, %v1529
    %v1550 = vmul.f32 %v1483, %v1529
    %v1551 = vmul.f32 %v1484, %v1529
    %v1552 = vmul.f32 %v1485, %v1529
    %v1553 = vmul.f32 %v1486, %v1529
    %v1554 = vmul.f32 %v1487, %v1529
    %v1555 = vmul.f32 %v1488, %v1529
    %v1556 = vmul.f32 %v1489, %v1529
    %v1557 = vmul.f32 %v1490, %v1529
    %v1558 = vmul.f32 %v1491, %v1529
    %v1559 = vmul.f32 %v1492, %v1529
    %v1560 = vmul.f32 %v1493, %v1529
    %v1561 = vmul.f32 %v1494, %v1529
    %v1562 = vmul.f32 %v1495, %v1529
    %v1563 = vmul.f32 %v1496, %v1529
    %v1564 = vmul.f32 %v1497, %v1529
    %v1565 = vmul.f32 %v1498, %v1529
    %v1566 = vmul.f32 %v1499, %v1529
    %v1567 = vmul.f32 %v1500, %v1529
    %v1568 = vmul.f32 %v1501, %v1529
    %v1569 = vmul.f32 %v1502, %v1529
    %v1570 = vmul.f32 %v1503, %v1529
    %v1571 = vmul.f32 %v1504, %v1529
    %v1572 = vmul.f32 %v1505, %v1529
    %v1573 = vmul.f32 %v1506, %v1529
    %v1574 = vmul.f32 %v1507, %v1529
    %v1575 = vmul.f32 %v1508, %v1529
    %v1576 = vmul.f32 %v1509, %v1529
    %v1577 = vmul.f32 %v1510, %v1529
    %v1578 = vmul.f32 %v1511, %v1529
    %v1579 = vmul.f32 %v1512, %v1529
    %v1580 = vmul.f32 %v1513, %v1529
    %v1581 = vmul.f32 %v1514, %v1529
    %v1582 = vmul.f32 %v1515, %v1529
    %v1583 = vmul.f32 %v1516, %v1529
    %v1584 = vmul.f32 %v1517, %v1529
    %v1585 = vmul.f32 %v1518, %v1529
    %v1586 = vmul.f32 %v1519, %v1529
    %v1587 = vmul.f32 %v1520, %v1529
    %v1588 = vmul.f32 %v1521, %v1529
    %v1589 = vmul.f32 %v1522, %v1529
    %v1590 = vmul.f32 %v1523, %v1529
    %v1591 = vmul.f32 %v1524, %v1529
    %v1592 = vmul.f32 %v1525, %v1529
    %v1593 = vmul.f32 %v1526, %v1529
    %v1594 = vsel %vm355, %v1531, 0.0
    %1595 = vadd.xlane.f32.xlu0 %v1594
    %v1596 = vpop.xlane.xlu0 %1595
    %v1597 = vsel %vm355, %v1532, 0.0
    %1598 = vadd.xlane.f32.xlu0 %v1597
    %v1599 = vpop.xlane.xlu0 %1598
    %v1600 = vsel %vm355, %v1533, 0.0
    %1601 = vadd.xlane.f32.xlu0 %v1600
    %v1602 = vpop.xlane.xlu0 %1601
    %v1603 = vsel %vm355, %v1534, 0.0
    %1604 = vadd.xlane.f32.xlu0 %v1603
    %v1605 = vpop.xlane.xlu0 %1604
    %v1606 = vsel %vm355, %v1535, 0.0
    %1607 = vadd.xlane.f32.xlu0 %v1606
    %v1608 = vpop.xlane.xlu0 %1607
    %v1609 = vsel %vm355, %v1536, 0.0
    %1610 = vadd.xlane.f32.xlu0 %v1609
    %v1611 = vpop.xlane.xlu0 %1610
    %v1612 = vsel %vm355, %v1537, 0.0
    %1613 = vadd.xlane.f32.xlu0 %v1612
    %v1614 = vpop.xlane.xlu0 %1613
    %v1615 = vsel %vm355, %v1538, 0.0
    %1616 = vadd.xlane.f32.xlu0 %v1615
    %v1617 = vpop.xlane.xlu0 %1616
    %v1618 = vsel %vm355, %v1539, 0.0
    %1619 = vadd.xlane.f32.xlu0 %v1618
    %v1620 = vpop.xlane.xlu0 %1619
    %v1621 = vsel %vm355, %v1540, 0.0
    %1622 = vadd.xlane.f32.xlu0 %v1621
    %v1623 = vpop.xlane.xlu0 %1622
    %v1624 = vsel %vm355, %v1541, 0.0
    %1625 = vadd.xlane.f32.xlu0 %v1624
    %v1626 = vpop.xlane.xlu0 %1625
    %v1627 = vsel %vm355, %v1542, 0.0
    %1628 = vadd.xlane.f32.xlu0 %v1627
    %v1629 = vpop.xlane.xlu0 %1628
    %v1630 = vsel %vm355, %v1543, 0.0
    %1631 = vadd.xlane.f32.xlu0 %v1630
    %v1632 = vpop.xlane.xlu0 %1631
    %v1633 = vsel %vm355, %v1544, 0.0
    %1634 = vadd.xlane.f32.xlu0 %v1633
    %v1635 = vpop.xlane.xlu0 %1634
    %v1636 = vsel %vm355, %v1545, 0.0
    %1637 = vadd.xlane.f32.xlu0 %v1636
    %v1638 = vpop.xlane.xlu0 %1637
    %v1639 = vsel %vm355, %v1546, 0.0
    %1640 = vadd.xlane.f32.xlu0 %v1639
    %v1641 = vpop.xlane.xlu0 %1640
    %v1642 = vsel %vm355, %v1547, 0.0
    %1643 = vadd.xlane.f32.xlu0 %v1642
    %v1644 = vpop.xlane.xlu0 %1643
    %v1645 = vsel %vm355, %v1548, 0.0
    %1646 = vadd.xlane.f32.xlu0 %v1645
    %v1647 = vpop.xlane.xlu0 %1646
    %v1648 = vsel %vm355, %v1549, 0.0
    %1649 = vadd.xlane.f32.xlu0 %v1648
    %v1650 = vpop.xlane.xlu0 %1649
    %v1651 = vsel %vm355, %v1550, 0.0
    %1652 = vadd.xlane.f32.xlu0 %v1651
    %v1653 = vpop.xlane.xlu0 %1652
    %v1654 = vsel %vm355, %v1551, 0.0
    %1655 = vadd.xlane.f32.xlu0 %v1654
    %v1656 = vpop.xlane.xlu0 %1655
    %v1657 = vsel %vm355, %v1552, 0.0
    %1658 = vadd.xlane.f32.xlu0 %v1657
    %v1659 = vpop.xlane.xlu0 %1658
    %v1660 = vsel %vm355, %v1553, 0.0
    %1661 = vadd.xlane.f32.xlu0 %v1660
    %v1662 = vpop.xlane.xlu0 %1661
    %v1663 = vsel %vm355, %v1554, 0.0
    %1664 = vadd.xlane.f32.xlu0 %v1663
    %v1665 = vpop.xlane.xlu0 %1664
    %v1666 = vsel %vm355, %v1555, 0.0
    %1667 = vadd.xlane.f32.xlu0 %v1666
    %v1668 = vpop.xlane.xlu0 %1667
    %v1669 = vsel %vm355, %v1556, 0.0
    %1670 = vadd.xlane.f32.xlu0 %v1669
    %v1671 = vpop.xlane.xlu0 %1670
    %v1672 = vsel %vm355, %v1557, 0.0
    %1673 = vadd.xlane.f32.xlu0 %v1672
    %v1674 = vpop.xlane.xlu0 %1673
    %v1675 = vsel %vm355, %v1558, 0.0
    %1676 = vadd.xlane.f32.xlu0 %v1675
    %v1677 = vpop.xlane.xlu0 %1676
    %v1678 = vsel %vm355, %v1559, 0.0
    %1679 = vadd.xlane.f32.xlu0 %v1678
    %v1680 = vpop.xlane.xlu0 %1679
    %v1681 = vsel %vm355, %v1560, 0.0
    %1682 = vadd.xlane.f32.xlu0 %v1681
    %v1683 = vpop.xlane.xlu0 %1682
    %v1684 = vsel %vm355, %v1561, 0.0
    %1685 = vadd.xlane.f32.xlu0 %v1684
    %v1686 = vpop.xlane.xlu0 %1685
    %v1687 = vsel %vm355, %v1562, 0.0
    %1688 = vadd.xlane.f32.xlu0 %v1687
    %v1689 = vpop.xlane.xlu0 %1688
    %v1690 = vsel %vm355, %v1563, 0.0
    %1691 = vadd.xlane.f32.xlu0 %v1690
    %v1692 = vpop.xlane.xlu0 %1691
    %v1693 = vsel %vm355, %v1564, 0.0
    %1694 = vadd.xlane.f32.xlu0 %v1693
    %v1695 = vpop.xlane.xlu0 %1694
    %v1696 = vsel %vm355, %v1565, 0.0
    %1697 = vadd.xlane.f32.xlu0 %v1696
    %v1698 = vpop.xlane.xlu0 %1697
    %v1699 = vsel %vm355, %v1566, 0.0
    %1700 = vadd.xlane.f32.xlu0 %v1699
    %v1701 = vpop.xlane.xlu0 %1700
    %v1702 = vsel %vm355, %v1567, 0.0
    %1703 = vadd.xlane.f32.xlu0 %v1702
    %v1704 = vpop.xlane.xlu0 %1703
    %v1705 = vsel %vm355, %v1568, 0.0
    %1706 = vadd.xlane.f32.xlu0 %v1705
    %v1707 = vpop.xlane.xlu0 %1706
    %v1708 = vsel %vm355, %v1569, 0.0
    %1709 = vadd.xlane.f32.xlu0 %v1708
    %v1710 = vpop.xlane.xlu0 %1709
    %v1711 = vsel %vm355, %v1570, 0.0
    %1712 = vadd.xlane.f32.xlu0 %v1711
    %v1713 = vpop.xlane.xlu0 %1712
    %v1714 = vsel %vm355, %v1571, 0.0
    %1715 = vadd.xlane.f32.xlu0 %v1714
    %v1716 = vpop.xlane.xlu0 %1715
    %v1717 = vsel %vm355, %v1572, 0.0
    %1718 = vadd.xlane.f32.xlu0 %v1717
    %v1719 = vpop.xlane.xlu0 %1718
    %v1720 = vsel %vm355, %v1573, 0.0
    %1721 = vadd.xlane.f32.xlu0 %v1720
    %v1722 = vpop.xlane.xlu0 %1721
    %v1723 = vsel %vm355, %v1574, 0.0
    %1724 = vadd.xlane.f32.xlu0 %v1723
    %v1725 = vpop.xlane.xlu0 %1724
    %v1726 = vsel %vm355, %v1575, 0.0
    %1727 = vadd.xlane.f32.xlu0 %v1726
    %v1728 = vpop.xlane.xlu0 %1727
    %v1729 = vsel %vm355, %v1576, 0.0
    %1730 = vadd.xlane.f32.xlu0 %v1729
    %v1731 = vpop.xlane.xlu0 %1730
    %v1732 = vsel %vm355, %v1577, 0.0
    %1733 = vadd.xlane.f32.xlu0 %v1732
    %v1734 = vpop.xlane.xlu0 %1733
    %v1735 = vsel %vm355, %v1578, 0.0
    %1736 = vadd.xlane.f32.xlu0 %v1735
    %v1737 = vpop.xlane.xlu0 %1736
    %v1738 = vsel %vm355, %v1579, 0.0
    %1739 = vadd.xlane.f32.xlu0 %v1738
    %v1740 = vpop.xlane.xlu0 %1739
    %v1741 = vsel %vm355, %v1580, 0.0
    %1742 = vadd.xlane.f32.xlu0 %v1741
    %v1743 = vpop.xlane.xlu0 %1742
    %v1744 = vsel %vm355, %v1581, 0.0
    %1745 = vadd.xlane.f32.xlu0 %v1744
    %v1746 = vpop.xlane.xlu0 %1745
    %v1747 = vsel %vm355, %v1582, 0.0
    %1748 = vadd.xlane.f32.xlu0 %v1747
    %v1749 = vpop.xlane.xlu0 %1748
    %v1750 = vsel %vm355, %v1583, 0.0
    %1751 = vadd.xlane.f32.xlu0 %v1750
    %v1752 = vpop.xlane.xlu0 %1751
    %v1753 = vsel %vm355, %v1584, 0.0
    %1754 = vadd.xlane.f32.xlu0 %v1753
    %v1755 = vpop.xlane.xlu0 %1754
    %v1756 = vsel %vm355, %v1585, 0.0
    %1757 = vadd.xlane.f32.xlu0 %v1756
    %v1758 = vpop.xlane.xlu0 %1757
    %v1759 = vsel %vm355, %v1586, 0.0
    %1760 = vadd.xlane.f32.xlu0 %v1759
    %v1761 = vpop.xlane.xlu0 %1760
    %v1762 = vsel %vm355, %v1587, 0.0
    %1763 = vadd.xlane.f32.xlu0 %v1762
    %v1764 = vpop.xlane.xlu0 %1763
    %v1765 = vsel %vm355, %v1588, 0.0
    %1766 = vadd.xlane.f32.xlu0 %v1765
    %v1767 = vpop.xlane.xlu0 %1766
    %v1768 = vsel %vm355, %v1589, 0.0
    %1769 = vadd.xlane.f32.xlu0 %v1768
    %v1770 = vpop.xlane.xlu0 %1769
    %v1771 = vsel %vm355, %v1590, 0.0
    %1772 = vadd.xlane.f32.xlu0 %v1771
    %v1773 = vpop.xlane.xlu0 %1772
    %v1774 = vsel %vm355, %v1591, 0.0
    %1775 = vadd.xlane.f32.xlu0 %v1774
    %v1776 = vpop.xlane.xlu0 %1775
    %v1777 = vsel %vm355, %v1592, 0.0
    %1778 = vadd.xlane.f32.xlu0 %v1777
    %v1779 = vpop.xlane.xlu0 %1778
    %v1780 = vsel %vm355, %v1593, 0.0
    %1781 = vadd.xlane.f32.xlu0 %v1780
    %v1782 = vpop.xlane.xlu0 %1781
    %v1846 = vperm.slane %v1596, 0
    %v1847 = vperm.slane %v1596, 1
    %v1848 = vperm.slane %v1596, 2
    %v1849 = vperm.slane %v1596, 3
    %v1850 = vperm.slane %v1596, 4
    %v1851 = vperm.slane %v1596, 5
    %v1852 = vperm.slane %v1596, 6
    %v1853 = vperm.slane %v1596, 7
    %v1854 = vperm.slane %v1599, 0
    %v1855 = vperm.slane %v1599, 1
    %v1856 = vperm.slane %v1599, 2
    %v1857 = vperm.slane %v1599, 3
    %v1858 = vperm.slane %v1599, 4
    %v1859 = vperm.slane %v1599, 5
    %v1860 = vperm.slane %v1599, 6
    %v1861 = vperm.slane %v1599, 7
    %v1862 = vperm.slane %v1602, 0
    %v1863 = vperm.slane %v1602, 1
    %v1864 = vperm.slane %v1602, 2
    %v1865 = vperm.slane %v1602, 3
    %v1866 = vperm.slane %v1602, 4
    %v1867 = vperm.slane %v1602, 5
    %v1868 = vperm.slane %v1602, 6
    %v1869 = vperm.slane %v1602, 7
    %v1870 = vperm.slane %v1605, 0
    %v1871 = vperm.slane %v1605, 1
    %v1872 = vperm.slane %v1605, 2
    %v1873 = vperm.slane %v1605, 3
    %v1874 = vperm.slane %v1605, 4
    %v1875 = vperm.slane %v1605, 5
    %v1876 = vperm.slane %v1605, 6
    %v1877 = vperm.slane %v1605, 7
    %v1878 = vperm.slane %v1608, 0
    %v1879 = vperm.slane %v1608, 1
    %v1880 = vperm.slane %v1608, 2
    %v1881 = vperm.slane %v1608, 3
    %v1882 = vperm.slane %v1608, 4
    %v1883 = vperm.slane %v1608, 5
    %v1884 = vperm.slane %v1608, 6
    %v1885 = vperm.slane %v1608, 7
    %v1886 = vperm.slane %v1611, 0
    %v1887 = vperm.slane %v1611, 1
    %v1888 = vperm.slane %v1611, 2
    %v1889 = vperm.slane %v1611, 3
    %v1890 = vperm.slane %v1611, 4
    %v1891 = vperm.slane %v1611, 5
    %v1892 = vperm.slane %v1611, 6
    %v1893 = vperm.slane %v1611, 7
    %v1894 = vperm.slane %v1614, 0
    %v1895 = vperm.slane %v1614, 1
    %v1896 = vperm.slane %v1614, 2
    %v1897 = vperm.slane %v1614, 3
    %v1898 = vperm.slane %v1614, 4
    %v1899 = vperm.slane %v1614, 5
    %v1900 = vperm.slane %v1614, 6
    %v1901 = vperm.slane %v1614, 7
    %v1902 = vperm.slane %v1617, 0
    %v1903 = vperm.slane %v1617, 1
    %v1904 = vperm.slane %v1617, 2
    %v1905 = vperm.slane %v1617, 3
    %v1906 = vperm.slane %v1617, 4
    %v1907 = vperm.slane %v1617, 5
    %v1908 = vperm.slane %v1617, 6
    %v1909 = vperm.slane %v1617, 7
    %v1910 = vperm.slane %v1620, 0
    %v1911 = vperm.slane %v1620, 1
    %v1912 = vperm.slane %v1620, 2
    %v1913 = vperm.slane %v1620, 3
    %v1914 = vperm.slane %v1620, 4
    %v1915 = vperm.slane %v1620, 5
    %v1916 = vperm.slane %v1620, 6
    %v1917 = vperm.slane %v1620, 7
    %v1918 = vperm.slane %v1623, 0
    %v1919 = vperm.slane %v1623, 1
    %v1920 = vperm.slane %v1623, 2
    %v1921 = vperm.slane %v1623, 3
    %v1922 = vperm.slane %v1623, 4
    %v1923 = vperm.slane %v1623, 5
    %v1924 = vperm.slane %v1623, 6
    %v1925 = vperm.slane %v1623, 7
    %v1926 = vperm.slane %v1626, 0
    %v1927 = vperm.slane %v1626, 1
    %v1928 = vperm.slane %v1626, 2
    %v1929 = vperm.slane %v1626, 3
    %v1930 = vperm.slane %v1626, 4
    %v1931 = vperm.slane %v1626, 5
    %v1932 = vperm.slane %v1626, 6
    %v1933 = vperm.slane %v1626, 7
    %v1934 = vperm.slane %v1629, 0
    %v1935 = vperm.slane %v1629, 1
    %v1936 = vperm.slane %v1629, 2
    %v1937 = vperm.slane %v1629, 3
    %v1938 = vperm.slane %v1629, 4
    %v1939 = vperm.slane %v1629, 5
    %v1940 = vperm.slane %v1629, 6
    %v1941 = vperm.slane %v1629, 7
    %v1942 = vperm.slane %v1632, 0
    %v1943 = vperm.slane %v1632, 1
    %v1944 = vperm.slane %v1632, 2
    %v1945 = vperm.slane %v1632, 3
    %v1946 = vperm.slane %v1632, 4
    %v1947 = vperm.slane %v1632, 5
    %v1948 = vperm.slane %v1632, 6
    %v1949 = vperm.slane %v1632, 7
    %v1950 = vperm.slane %v1635, 0
    %v1951 = vperm.slane %v1635, 1
    %v1952 = vperm.slane %v1635, 2
    %v1953 = vperm.slane %v1635, 3
    %v1954 = vperm.slane %v1635, 4
    %v1955 = vperm.slane %v1635, 5
    %v1956 = vperm.slane %v1635, 6
    %v1957 = vperm.slane %v1635, 7
    %v1958 = vperm.slane %v1638, 0
    %v1959 = vperm.slane %v1638, 1
    %v1960 = vperm.slane %v1638, 2
    %v1961 = vperm.slane %v1638, 3
    %v1962 = vperm.slane %v1638, 4
    %v1963 = vperm.slane %v1638, 5
    %v1964 = vperm.slane %v1638, 6
    %v1965 = vperm.slane %v1638, 7
    %v1966 = vperm.slane %v1641, 0
    %v1967 = vperm.slane %v1641, 1
    %v1968 = vperm.slane %v1641, 2
    %v1969 = vperm.slane %v1641, 3
    %v1970 = vperm.slane %v1641, 4
    %v1971 = vperm.slane %v1641, 5
    %v1972 = vperm.slane %v1641, 6
    %v1973 = vperm.slane %v1641, 7
    %v1974 = vperm.slane %v1644, 0
    %v1975 = vperm.slane %v1644, 1
    %v1976 = vperm.slane %v1644, 2
    %v1977 = vperm.slane %v1644, 3
    %v1978 = vperm.slane %v1644, 4
    %v1979 = vperm.slane %v1644, 5
    %v1980 = vperm.slane %v1644, 6
    %v1981 = vperm.slane %v1644, 7
    %v1982 = vperm.slane %v1647, 0
    %v1983 = vperm.slane %v1647, 1
    %v1984 = vperm.slane %v1647, 2
    %v1985 = vperm.slane %v1647, 3
    %v1986 = vperm.slane %v1647, 4
    %v1987 = vperm.slane %v1647, 5
    %v1988 = vperm.slane %v1647, 6
    %v1989 = vperm.slane %v1647, 7
    %v1990 = vperm.slane %v1650, 0
    %v1991 = vperm.slane %v1650, 1
    %v1992 = vperm.slane %v1650, 2
    %v1993 = vperm.slane %v1650, 3
    %v1994 = vperm.slane %v1650, 4
    %v1995 = vperm.slane %v1650, 5
    %v1996 = vperm.slane %v1650, 6
    %v1997 = vperm.slane %v1650, 7
    %v1998 = vperm.slane %v1653, 0
    %v1999 = vperm.slane %v1653, 1
    %v2000 = vperm.slane %v1653, 2
    %v2001 = vperm.slane %v1653, 3
    %v2002 = vperm.slane %v1653, 4
    %v2003 = vperm.slane %v1653, 5
    %v2004 = vperm.slane %v1653, 6
    %v2005 = vperm.slane %v1653, 7
    %v2006 = vperm.slane %v1656, 0
    %v2007 = vperm.slane %v1656, 1
    %v2008 = vperm.slane %v1656, 2
    %v2009 = vperm.slane %v1656, 3
    %v2010 = vperm.slane %v1656, 4
    %v2011 = vperm.slane %v1656, 5
    %v2012 = vperm.slane %v1656, 6
    %v2013 = vperm.slane %v1656, 7
    %v2014 = vperm.slane %v1659, 0
    %v2015 = vperm.slane %v1659, 1
    %v2016 = vperm.slane %v1659, 2
    %v2017 = vperm.slane %v1659, 3
    %v2018 = vperm.slane %v1659, 4
    %v2019 = vperm.slane %v1659, 5
    %v2020 = vperm.slane %v1659, 6
    %v2021 = vperm.slane %v1659, 7
    %v2022 = vperm.slane %v1662, 0
    %v2023 = vperm.slane %v1662, 1
    %v2024 = vperm.slane %v1662, 2
    %v2025 = vperm.slane %v1662, 3
    %v2026 = vperm.slane %v1662, 4
    %v2027 = vperm.slane %v1662, 5
    %v2028 = vperm.slane %v1662, 6
    %v2029 = vperm.slane %v1662, 7
    %v2030 = vperm.slane %v1665, 0
    %v2031 = vperm.slane %v1665, 1
    %v2032 = vperm.slane %v1665, 2
    %v2033 = vperm.slane %v1665, 3
    %v2034 = vperm.slane %v1665, 4
    %v2035 = vperm.slane %v1665, 5
    %v2036 = vperm.slane %v1665, 6
    %v2037 = vperm.slane %v1665, 7
    %v2038 = vperm.slane %v1668, 0
    %v2039 = vperm.slane %v1668, 1
    %v2040 = vperm.slane %v1668, 2
    %v2041 = vperm.slane %v1668, 3
    %v2042 = vperm.slane %v1668, 4
    %v2043 = vperm.slane %v1668, 5
    %v2044 = vperm.slane %v1668, 6
    %v2045 = vperm.slane %v1668, 7
    %v2046 = vperm.slane %v1671, 0
    %v2047 = vperm.slane %v1671, 1
    %v2048 = vperm.slane %v1671, 2
    %v2049 = vperm.slane %v1671, 3
    %v2050 = vperm.slane %v1671, 4
    %v2051 = vperm.slane %v1671, 5
    %v2052 = vperm.slane %v1671, 6
    %v2053 = vperm.slane %v1671, 7
    %v2054 = vperm.slane %v1674, 0
    %v2055 = vperm.slane %v1674, 1
    %v2056 = vperm.slane %v1674, 2
    %v2057 = vperm.slane %v1674, 3
    %v2058 = vperm.slane %v1674, 4
    %v2059 = vperm.slane %v1674, 5
    %v2060 = vperm.slane %v1674, 6
    %v2061 = vperm.slane %v1674, 7
    %v2062 = vperm.slane %v1677, 0
    %v2063 = vperm.slane %v1677, 1
    %v2064 = vperm.slane %v1677, 2
    %v2065 = vperm.slane %v1677, 3
    %v2066 = vperm.slane %v1677, 4
    %v2067 = vperm.slane %v1677, 5
    %v2068 = vperm.slane %v1677, 6
    %v2069 = vperm.slane %v1677, 7
    %v2070 = vperm.slane %v1680, 0
    %v2071 = vperm.slane %v1680, 1
    %v2072 = vperm.slane %v1680, 2
    %v2073 = vperm.slane %v1680, 3
    %v2074 = vperm.slane %v1680, 4
    %v2075 = vperm.slane %v1680, 5
    %v2076 = vperm.slane %v1680, 6
    %v2077 = vperm.slane %v1680, 7
    %v2078 = vperm.slane %v1683, 0
    %v2079 = vperm.slane %v1683, 1
    %v2080 = vperm.slane %v1683, 2
    %v2081 = vperm.slane %v1683, 3
    %v2082 = vperm.slane %v1683, 4
    %v2083 = vperm.slane %v1683, 5
    %v2084 = vperm.slane %v1683, 6
    %v2085 = vperm.slane %v1683, 7
    %v2086 = vperm.slane %v1686, 0
    %v2087 = vperm.slane %v1686, 1
    %v2088 = vperm.slane %v1686, 2
    %v2089 = vperm.slane %v1686, 3
    %v2090 = vperm.slane %v1686, 4
    %v2091 = vperm.slane %v1686, 5
    %v2092 = vperm.slane %v1686, 6
    %v2093 = vperm.slane %v1686, 7
    %v2094 = vperm.slane %v1689, 0
    %v2095 = vperm.slane %v1689, 1
    %v2096 = vperm.slane %v1689, 2
    %v2097 = vperm.slane %v1689, 3
    %v2098 = vperm.slane %v1689, 4
    %v2099 = vperm.slane %v1689, 5
    %v2100 = vperm.slane %v1689, 6
    %v2101 = vperm.slane %v1689, 7
    %v2102 = vperm.slane %v1692, 0
    %v2103 = vperm.slane %v1692, 1
    %v2104 = vperm.slane %v1692, 2
    %v2105 = vperm.slane %v1692, 3
    %v2106 = vperm.slane %v1692, 4
    %v2107 = vperm.slane %v1692, 5
    %v2108 = vperm.slane %v1692, 6
    %v2109 = vperm.slane %v1692, 7
    %v2110 = vperm.slane %v1695, 0
    %v2111 = vperm.slane %v1695, 1
    %v2112 = vperm.slane %v1695, 2
    %v2113 = vperm.slane %v1695, 3
    %v2114 = vperm.slane %v1695, 4
    %v2115 = vperm.slane %v1695, 5
    %v2116 = vperm.slane %v1695, 6
    %v2117 = vperm.slane %v1695, 7
    %v2118 = vperm.slane %v1698, 0
    %v2119 = vperm.slane %v1698, 1
    %v2120 = vperm.slane %v1698, 2
    %v2121 = vperm.slane %v1698, 3
    %v2122 = vperm.slane %v1698, 4
    %v2123 = vperm.slane %v1698, 5
    %v2124 = vperm.slane %v1698, 6
    %v2125 = vperm.slane %v1698, 7
    %v2126 = vperm.slane %v1701, 0
    %v2127 = vperm.slane %v1701, 1
    %v2128 = vperm.slane %v1701, 2
    %v2129 = vperm.slane %v1701, 3
    %v2130 = vperm.slane %v1701, 4
    %v2131 = vperm.slane %v1701, 5
    %v2132 = vperm.slane %v1701, 6
    %v2133 = vperm.slane %v1701, 7
    %v2134 = vperm.slane %v1704, 0
    %v2135 = vperm.slane %v1704, 1
    %v2136 = vperm.slane %v1704, 2
    %v2137 = vperm.slane %v1704, 3
    %v2138 = vperm.slane %v1704, 4
    %v2139 = vperm.slane %v1704, 5
    %v2140 = vperm.slane %v1704, 6
    %v2141 = vperm.slane %v1704, 7
    %v2142 = vperm.slane %v1707, 0
    %v2143 = vperm.slane %v1707, 1
    %v2144 = vperm.slane %v1707, 2
    %v2145 = vperm.slane %v1707, 3
    %v2146 = vperm.slane %v1707, 4
    %v2147 = vperm.slane %v1707, 5
    %v2148 = vperm.slane %v1707, 6
    %v2149 = vperm.slane %v1707, 7
    %v2150 = vperm.slane %v1710, 0
    %v2151 = vperm.slane %v1710, 1
    %v2152 = vperm.slane %v1710, 2
    %v2153 = vperm.slane %v1710, 3
    %v2154 = vperm.slane %v1710, 4
    %v2155 = vperm.slane %v1710, 5
    %v2156 = vperm.slane %v1710, 6
    %v2157 = vperm.slane %v1710, 7
    %v2158 = vperm.slane %v1713, 0
    %v2159 = vperm.slane %v1713, 1
    %v2160 = vperm.slane %v1713, 2
    %v2161 = vperm.slane %v1713, 3
    %v2162 = vperm.slane %v1713, 4
    %v2163 = vperm.slane %v1713, 5
    %v2164 = vperm.slane %v1713, 6
    %v2165 = vperm.slane %v1713, 7
    %v2166 = vperm.slane %v1716, 0
    %v2167 = vperm.slane %v1716, 1
    %v2168 = vperm.slane %v1716, 2
    %v2169 = vperm.slane %v1716, 3
    %v2170 = vperm.slane %v1716, 4
    %v2171 = vperm.slane %v1716, 5
    %v2172 = vperm.slane %v1716, 6
    %v2173 = vperm.slane %v1716, 7
    %v2174 = vperm.slane %v1719, 0
    %v2175 = vperm.slane %v1719, 1
    %v2176 = vperm.slane %v1719, 2
    %v2177 = vperm.slane %v1719, 3
    %v2178 = vperm.slane %v1719, 4
    %v2179 = vperm.slane %v1719, 5
    %v2180 = vperm.slane %v1719, 6
    %v2181 = vperm.slane %v1719, 7
    %v2182 = vperm.slane %v1722, 0
    %v2183 = vperm.slane %v1722, 1
    %v2184 = vperm.slane %v1722, 2
    %v2185 = vperm.slane %v1722, 3
    %v2186 = vperm.slane %v1722, 4
    %v2187 = vperm.slane %v1722, 5
    %v2188 = vperm.slane %v1722, 6
    %v2189 = vperm.slane %v1722, 7
    %v2190 = vperm.slane %v1725, 0
    %v2191 = vperm.slane %v1725, 1
    %v2192 = vperm.slane %v1725, 2
    %v2193 = vperm.slane %v1725, 3
    %v2194 = vperm.slane %v1725, 4
    %v2195 = vperm.slane %v1725, 5
    %v2196 = vperm.slane %v1725, 6
    %v2197 = vperm.slane %v1725, 7
    %v2198 = vperm.slane %v1728, 0
    %v2199 = vperm.slane %v1728, 1
    %v2200 = vperm.slane %v1728, 2
    %v2201 = vperm.slane %v1728, 3
    %v2202 = vperm.slane %v1728, 4
    %v2203 = vperm.slane %v1728, 5
    %v2204 = vperm.slane %v1728, 6
    %v2205 = vperm.slane %v1728, 7
    %v2206 = vperm.slane %v1731, 0
    %v2207 = vperm.slane %v1731, 1
    %v2208 = vperm.slane %v1731, 2
    %v2209 = vperm.slane %v1731, 3
    %v2210 = vperm.slane %v1731, 4
    %v2211 = vperm.slane %v1731, 5
    %v2212 = vperm.slane %v1731, 6
    %v2213 = vperm.slane %v1731, 7
    %v2214 = vperm.slane %v1734, 0
    %v2215 = vperm.slane %v1734, 1
    %v2216 = vperm.slane %v1734, 2
    %v2217 = vperm.slane %v1734, 3
    %v2218 = vperm.slane %v1734, 4
    %v2219 = vperm.slane %v1734, 5
    %v2220 = vperm.slane %v1734, 6
    %v2221 = vperm.slane %v1734, 7
    %v2222 = vperm.slane %v1737, 0
    %v2223 = vperm.slane %v1737, 1
    %v2224 = vperm.slane %v1737, 2
    %v2225 = vperm.slane %v1737, 3
    %v2226 = vperm.slane %v1737, 4
    %v2227 = vperm.slane %v1737, 5
    %v2228 = vperm.slane %v1737, 6
    %v2229 = vperm.slane %v1737, 7
    %v2230 = vperm.slane %v1740, 0
    %v2231 = vperm.slane %v1740, 1
    %v2232 = vperm.slane %v1740, 2
    %v2233 = vperm.slane %v1740, 3
    %v2234 = vperm.slane %v1740, 4
    %v2235 = vperm.slane %v1740, 5
    %v2236 = vperm.slane %v1740, 6
    %v2237 = vperm.slane %v1740, 7
    %v2238 = vperm.slane %v1743, 0
    %v2239 = vperm.slane %v1743, 1
    %v2240 = vperm.slane %v1743, 2
    %v2241 = vperm.slane %v1743, 3
    %v2242 = vperm.slane %v1743, 4
    %v2243 = vperm.slane %v1743, 5
    %v2244 = vperm.slane %v1743, 6
    %v2245 = vperm.slane %v1743, 7
    %v2246 = vperm.slane %v1746, 0
    %v2247 = vperm.slane %v1746, 1
    %v2248 = vperm.slane %v1746, 2
    %v2249 = vperm.slane %v1746, 3
    %v2250 = vperm.slane %v1746, 4
    %v2251 = vperm.slane %v1746, 5
    %v2252 = vperm.slane %v1746, 6
    %v2253 = vperm.slane %v1746, 7
    %v2254 = vperm.slane %v1749, 0
    %v2255 = vperm.slane %v1749, 1
    %v2256 = vperm.slane %v1749, 2
    %v2257 = vperm.slane %v1749, 3
    %v2258 = vperm.slane %v1749, 4
    %v2259 = vperm.slane %v1749, 5
    %v2260 = vperm.slane %v1749, 6
    %v2261 = vperm.slane %v1749, 7
    %v2262 = vperm.slane %v1752, 0
    %v2263 = vperm.slane %v1752, 1
    %v2264 = vperm.slane %v1752, 2
    %v2265 = vperm.slane %v1752, 3
    %v2266 = vperm.slane %v1752, 4
    %v2267 = vperm.slane %v1752, 5
    %v2268 = vperm.slane %v1752, 6
    %v2269 = vperm.slane %v1752, 7
    %v2270 = vperm.slane %v1755, 0
    %v2271 = vperm.slane %v1755, 1
    %v2272 = vperm.slane %v1755, 2
    %v2273 = vperm.slane %v1755, 3
    %v2274 = vperm.slane %v1755, 4
    %v2275 = vperm.slane %v1755, 5
    %v2276 = vperm.slane %v1755, 6
    %v2277 = vperm.slane %v1755, 7
    %v2278 = vperm.slane %v1758, 0
    %v2279 = vperm.slane %v1758, 1
    %v2280 = vperm.slane %v1758, 2
    %v2281 = vperm.slane %v1758, 3
    %v2282 = vperm.slane %v1758, 4
    %v2283 = vperm.slane %v1758, 5
    %v2284 = vperm.slane %v1758, 6
    %v2285 = vperm.slane %v1758, 7
    %v2286 = vperm.slane %v1761, 0
    %v2287 = vperm.slane %v1761, 1
    %v2288 = vperm.slane %v1761, 2
    %v2289 = vperm.slane %v1761, 3
    %v2290 = vperm.slane %v1761, 4
    %v2291 = vperm.slane %v1761, 5
    %v2292 = vperm.slane %v1761, 6
    %v2293 = vperm.slane %v1761, 7
    %v2294 = vperm.slane %v1764, 0
    %v2295 = vperm.slane %v1764, 1
    %v2296 = vperm.slane %v1764, 2
    %v2297 = vperm.slane %v1764, 3
    %v2298 = vperm.slane %v1764, 4
    %v2299 = vperm.slane %v1764, 5
    %v2300 = vperm.slane %v1764, 6
    %v2301 = vperm.slane %v1764, 7
    %v2302 = vperm.slane %v1767, 0
    %v2303 = vperm.slane %v1767, 1
    %v2304 = vperm.slane %v1767, 2
    %v2305 = vperm.slane %v1767, 3
    %v2306 = vperm.slane %v1767, 4
    %v2307 = vperm.slane %v1767, 5
    %v2308 = vperm.slane %v1767, 6
    %v2309 = vperm.slane %v1767, 7
    %v2310 = vperm.slane %v1770, 0
    %v2311 = vperm.slane %v1770, 1
    %v2312 = vperm.slane %v1770, 2
    %v2313 = vperm.slane %v1770, 3
    %v2314 = vperm.slane %v1770, 4
    %v2315 = vperm.slane %v1770, 5
    %v2316 = vperm.slane %v1770, 6
    %v2317 = vperm.slane %v1770, 7
    %v2318 = vperm.slane %v1773, 0
    %v2319 = vperm.slane %v1773, 1
    %v2320 = vperm.slane %v1773, 2
    %v2321 = vperm.slane %v1773, 3
    %v2322 = vperm.slane %v1773, 4
    %v2323 = vperm.slane %v1773, 5
    %v2324 = vperm.slane %v1773, 6
    %v2325 = vperm.slane %v1773, 7
    %v2326 = vperm.slane %v1776, 0
    %v2327 = vperm.slane %v1776, 1
    %v2328 = vperm.slane %v1776, 2
    %v2329 = vperm.slane %v1776, 3
    %v2330 = vperm.slane %v1776, 4
    %v2331 = vperm.slane %v1776, 5
    %v2332 = vperm.slane %v1776, 6
    %v2333 = vperm.slane %v1776, 7
    %v2334 = vperm.slane %v1779, 0
    %v2335 = vperm.slane %v1779, 1
    %v2336 = vperm.slane %v1779, 2
    %v2337 = vperm.slane %v1779, 3
    %v2338 = vperm.slane %v1779, 4
    %v2339 = vperm.slane %v1779, 5
    %v2340 = vperm.slane %v1779, 6
    %v2341 = vperm.slane %v1779, 7
    %v2342 = vperm.slane %v1782, 0
    %v2343 = vperm.slane %v1782, 1
    %v2344 = vperm.slane %v1782, 2
    %v2345 = vperm.slane %v1782, 3
    %v2346 = vperm.slane %v1782, 4
    %v2347 = vperm.slane %v1782, 5
    %v2348 = vperm.slane %v1782, 6
    %v2349 = vperm.slane %v1782, 7
    %2350 = vst [vmem:[#allocation1] ss:$9 sm:$0xff] %v1846
    %s2351 = scalar_lea.vmem [#allocation1], 1
    %2352 = vst [vmem:[%s2351] ss:$9 sm:$0xff] %v1847
    %s2353 = scalar_lea.vmem [#allocation1], 2
    %2354 = vst [vmem:[%s2353] ss:$9 sm:$0xff] %v1848
    %s2355 = scalar_lea.vmem [#allocation1], 3
    %2356 = vst [vmem:[%s2355] ss:$9 sm:$0xff] %v1849
    %s2357 = scalar_lea.vmem [#allocation1], 4
    %2358 = vst [vmem:[%s2357] ss:$9 sm:$0xff] %v1850
    %s2359 = scalar_lea.vmem [#allocation1], 5
    %2360 = vst [vmem:[%s2359] ss:$9 sm:$0xff] %v1851
    %s2361 = scalar_lea.vmem [#allocation1], 6
    %2362 = vst [vmem:[%s2361] ss:$9 sm:$0xff] %v1852
    %s2363 = scalar_lea.vmem [#allocation1], 7
    %2364 = vst [vmem:[%s2363] ss:$9 sm:$0xff] %v1853
    %v2365 = vld [vmem:[#allocation1] sm:$0xff]
    %2366 = vst [vmem:[#allocation1] ss:$9 sm:$0xff] %v1854
    %2367 = vst [vmem:[%s2351] ss:$9 sm:$0xff] %v1855
    %2368 = vst [vmem:[%s2353] ss:$9 sm:$0xff] %v1856
    %2369 = vst [vmem:[%s2355] ss:$9 sm:$0xff] %v1857
    %2370 = vst [vmem:[%s2357] ss:$9 sm:$0xff] %v1858
    %2371 = vst [vmem:[%s2359] ss:$9 sm:$0xff] %v1859
    %2372 = vst [vmem:[%s2361] ss:$9 sm:$0xff] %v1860
    %2373 = vst [vmem:[%s2363] ss:$9 sm:$0xff] %v1861
    %v2374 = vld [vmem:[#allocation1] sm:$0xff]
    %2375 = vst [vmem:[#allocation1] ss:$9 sm:$0xff] %v1862
    %2376 = vst [vmem:[%s2351] ss:$9 sm:$0xff] %v1863
    %2377 = vst [vmem:[%s2353] ss:$9 sm:$0xff] %v1864
    %2378 = vst [vmem:[%s2355] ss:$9 sm:$0xff] %v1865
    %2379 = vst [vmem:[%s2357] ss:$9 sm:$0xff] %v1866
    %2380 = vst [vmem:[%s2359] ss:$9 sm:$0xff] %v1867
    %2381 = vst [vmem:[%s2361] ss:$9 sm:$0xff] %v1868
    %2382 = vst [vmem:[%s2363] ss:$9 sm:$0xff] %v1869
    %v2383 = vld [vmem:[#allocation1] sm:$0xff]
    %2384 = vst [vmem:[#allocation1] ss:$9 sm:$0xff] %v1870
    %2385 = vst [vmem:[%s2351] ss:$9 sm:$0xff] %v1871
    %2386 = vst [vmem:[%s2353] ss:$9 sm:$0xff] %v1872
    %2387 = vst [vmem:[%s2355] ss:$9 sm:$0xff] %v1873
    %2388 = vst [vmem:[%s2357] ss:$9 sm:$0xff] %v1874
    %2389 = vst [vmem:[%s2359] ss:$9 sm:$0xff] %v1875
    %2390 = vst [vmem:[%s2361] ss:$9 sm:$0xff] %v1876
    %2391 = vst [vmem:[%s2363] ss:$9 sm:$0xff] %v1877
    %v2392 = vld [vmem:[#allocation1] sm:$0xff]
    %2393 = vst [vmem:[#allocation1] ss:$9 sm:$0xff] %v1878
    %2394 = vst [vmem:[%s2351] ss:$9 sm:$0xff] %v1879
    %2395 = vst [vmem:[%s2353] ss:$9 sm:$0xff] %v1880
    %2396 = vst [vmem:[%s2355] ss:$9 sm:$0xff] %v1881
    %2397 = vst [vmem:[%s2357] ss:$9 sm:$0xff] %v1882
    %2398 = vst [vmem:[%s2359] ss:$9 sm:$0xff] %v1883
    %2399 = vst [vmem:[%s2361] ss:$9 sm:$0xff] %v1884
    %2400 = vst [vmem:[%s2363] ss:$9 sm:$0xff] %v1885
    %v2401 = vld [vmem:[#allocation1] sm:$0xff]
    %2402 = vst [vmem:[#allocation1] ss:$9 sm:$0xff] %v1886
    %2403 = vst [vmem:[%s2351] ss:$9 sm:$0xff] %v1887
    %2404 = vst [vmem:[%s2353] ss:$9 sm:$0xff] %v1888
    %2405 = vst [vmem:[%s2355] ss:$9 sm:$0xff] %v1889
    %2406 = vst [vmem:[%s2357] ss:$9 sm:$0xff] %v1890
    %2407 = vst [vmem:[%s2359] ss:$9 sm:$0xff] %v1891
    %2408 = vst [vmem:[%s2361] ss:$9 sm:$0xff] %v1892
    %2409 = vst [vmem:[%s2363] ss:$9 sm:$0xff] %v1893
    %v2410 = vld [vmem:[#allocation1] sm:$0xff]
    %2411 = vst [vmem:[#allocation1] ss:$9 sm:$0xff] %v1894
    %2412 = vst [vmem:[%s2351] ss:$9 sm:$0xff] %v1895
    %2413 = vst [vmem:[%s2353] ss:$9 sm:$0xff] %v1896
    %2414 = vst [vmem:[%s2355] ss:$9 sm:$0xff] %v1897
    %2415 = vst [vmem:[%s2357] ss:$9 sm:$0xff] %v1898
    %2416 = vst [vmem:[%s2359] ss:$9 sm:$0xff] %v1899
    %2417 = vst [vmem:[%s2361] ss:$9 sm:$0xff] %v1900
    %2418 = vst [vmem:[%s2363] ss:$9 sm:$0xff] %v1901
    %v2419 = vld [vmem:[#allocation1] sm:$0xff]
    %2420 = vst [vmem:[#allocation1] ss:$9 sm:$0xff] %v1902
    %2421 = vst [vmem:[%s2351] ss:$9 sm:$0xff] %v1903
    %2422 = vst [vmem:[%s2353] ss:$9 sm:$0xff] %v1904
    %2423 = vst [vmem:[%s2355] ss:$9 sm:$0xff] %v1905
    %2424 = vst [vmem:[%s2357] ss:$9 sm:$0xff] %v1906
    %2425 = vst [vmem:[%s2359] ss:$9 sm:$0xff] %v1907
    %2426 = vst [vmem:[%s2361] ss:$9 sm:$0xff] %v1908
    %2427 = vst [vmem:[%s2363] ss:$9 sm:$0xff] %v1909
    %v2428 = vld [vmem:[#allocation1] sm:$0xff]
    %2429 = vst [vmem:[#allocation1] ss:$9 sm:$0xff] %v1910
    %2430 = vst [vmem:[%s2351] ss:$9 sm:$0xff] %v1911
    %2431 = vst [vmem:[%s2353] ss:$9 sm:$0xff] %v1912
    %2432 = vst [vmem:[%s2355] ss:$9 sm:$0xff] %v1913
    %2433 = vst [vmem:[%s2357] ss:$9 sm:$0xff] %v1914
    %2434 = vst [vmem:[%s2359] ss:$9 sm:$0xff] %v1915
    %2435 = vst [vmem:[%s2361] ss:$9 sm:$0xff] %v1916
    %2436 = vst [vmem:[%s2363] ss:$9 sm:$0xff] %v1917
    %v2437 = vld [vmem:[#allocation1] sm:$0xff]
    %2438 = vst [vmem:[#allocation1] ss:$9 sm:$0xff] %v1918
    %2439 = vst [vmem:[%s2351] ss:$9 sm:$0xff] %v1919
    %2440 = vst [vmem:[%s2353] ss:$9 sm:$0xff] %v1920
    %2441 = vst [vmem:[%s2355] ss:$9 sm:$0xff] %v1921
    %2442 = vst [vmem:[%s2357] ss:$9 sm:$0xff] %v1922
    %2443 = vst [vmem:[%s2359] ss:$9 sm:$0xff] %v1923
    %2444 = vst [vmem:[%s2361] ss:$9 sm:$0xff] %v1924
    %2445 = vst [vmem:[%s2363] ss:$9 sm:$0xff] %v1925
    %v2446 = vld [vmem:[#allocation1] sm:$0xff]
    %2447 = vst [vmem:[#allocation1] ss:$9 sm:$0xff] %v1926
    %2448 = vst [vmem:[%s2351] ss:$9 sm:$0xff] %v1927
    %2449 = vst [vmem:[%s2353] ss:$9 sm:$0xff] %v1928
    %2450 = vst [vmem:[%s2355] ss:$9 sm:$0xff] %v1929
    %2451 = vst [vmem:[%s2357] ss:$9 sm:$0xff] %v1930
    %2452 = vst [vmem:[%s2359] ss:$9 sm:$0xff] %v1931
    %2453 = vst [vmem:[%s2361] ss:$9 sm:$0xff] %v1932
    %2454 = vst [vmem:[%s2363] ss:$9 sm:$0xff] %v1933
    %v2455 = vld [vmem:[#allocation1] sm:$0xff]
    %2456 = vst [vmem:[#allocation1] ss:$9 sm:$0xff] %v1934
    %2457 = vst [vmem:[%s2351] ss:$9 sm:$0xff] %v1935
    %2458 = vst [vmem:[%s2353] ss:$9 sm:$0xff] %v1936
    %2459 = vst [vmem:[%s2355] ss:$9 sm:$0xff] %v1937
    %2460 = vst [vmem:[%s2357] ss:$9 sm:$0xff] %v1938
    %2461 = vst [vmem:[%s2359] ss:$9 sm:$0xff] %v1939
    %2462 = vst [vmem:[%s2361] ss:$9 sm:$0xff] %v1940
    %2463 = vst [vmem:[%s2363] ss:$9 sm:$0xff] %v1941
    %v2464 = vld [vmem:[#allocation1] sm:$0xff]
    %2465 = vst [vmem:[#allocation1] ss:$9 sm:$0xff] %v1942
    %2466 = vst [vmem:[%s2351] ss:$9 sm:$0xff] %v1943
    %2467 = vst [vmem:[%s2353] ss:$9 sm:$0xff] %v1944
    %2468 = vst [vmem:[%s2355] ss:$9 sm:$0xff] %v1945
    %2469 = vst [vmem:[%s2357] ss:$9 sm:$0xff] %v1946
    %2470 = vst [vmem:[%s2359] ss:$9 sm:$0xff] %v1947
    %2471 = vst [vmem:[%s2361] ss:$9 sm:$0xff] %v1948
    %2472 = vst [vmem:[%s2363] ss:$9 sm:$0xff] %v1949
    %v2473 = vld [vmem:[#allocation1] sm:$0xff]
    %2474 = vst [vmem:[#allocation1] ss:$9 sm:$0xff] %v1950
    %2475 = vst [vmem:[%s2351] ss:$9 sm:$0xff] %v1951
    %2476 = vst [vmem:[%s2353] ss:$9 sm:$0xff] %v1952
    %2477 = vst [vmem:[%s2355] ss:$9 sm:$0xff] %v1953
    %2478 = vst [vmem:[%s2357] ss:$9 sm:$0xff] %v1954
    %2479 = vst [vmem:[%s2359] ss:$9 sm:$0xff] %v1955
    %2480 = vst [vmem:[%s2361] ss:$9 sm:$0xff] %v1956
    %2481 = vst [vmem:[%s2363] ss:$9 sm:$0xff] %v1957
    %v2482 = vld [vmem:[#allocation1] sm:$0xff]
    %2483 = vst [vmem:[#allocation1] ss:$9 sm:$0xff] %v1958
    %2484 = vst [vmem:[%s2351] ss:$9 sm:$0xff] %v1959
    %2485 = vst [vmem:[%s2353] ss:$9 sm:$0xff] %v1960
    %2486 = vst [vmem:[%s2355] ss:$9 sm:$0xff] %v1961
    %2487 = vst [vmem:[%s2357] ss:$9 sm:$0xff] %v1962
    %2488 = vst [vmem:[%s2359] ss:$9 sm:$0xff] %v1963
    %2489 = vst [vmem:[%s2361] ss:$9 sm:$0xff] %v1964
    %2490 = vst [vmem:[%s2363] ss:$9 sm:$0xff] %v1965
    %v2491 = vld [vmem:[#allocation1] sm:$0xff]
    %2492 = vst [vmem:[#allocation1] ss:$9 sm:$0xff] %v1966
    %2493 = vst [vmem:[%s2351] ss:$9 sm:$0xff] %v1967
    %2494 = vst [vmem:[%s2353] ss:$9 sm:$0xff] %v1968
    %2495 = vst [vmem:[%s2355] ss:$9 sm:$0xff] %v1969
    %2496 = vst [vmem:[%s2357] ss:$9 sm:$0xff] %v1970
    %2497 = vst [vmem:[%s2359] ss:$9 sm:$0xff] %v1971
    %2498 = vst [vmem:[%s2361] ss:$9 sm:$0xff] %v1972
    %2499 = vst [vmem:[%s2363] ss:$9 sm:$0xff] %v1973
    %v2500 = vld [vmem:[#allocation1] sm:$0xff]
    %2501 = vst [vmem:[#allocation1] ss:$9 sm:$0xff] %v1974
    %2502 = vst [vmem:[%s2351] ss:$9 sm:$0xff] %v1975
    %2503 = vst [vmem:[%s2353] ss:$9 sm:$0xff] %v1976
    %2504 = vst [vmem:[%s2355] ss:$9 sm:$0xff] %v1977
    %2505 = vst [vmem:[%s2357] ss:$9 sm:$0xff] %v1978
    %2506 = vst [vmem:[%s2359] ss:$9 sm:$0xff] %v1979
    %2507 = vst [vmem:[%s2361] ss:$9 sm:$0xff] %v1980
    %2508 = vst [vmem:[%s2363] ss:$9 sm:$0xff] %v1981
    %v2509 = vld [vmem:[#allocation1] sm:$0xff]
    %2510 = vst [vmem:[#allocation1] ss:$9 sm:$0xff] %v1982
    %2511 = vst [vmem:[%s2351] ss:$9 sm:$0xff] %v1983
    %2512 = vst [vmem:[%s2353] ss:$9 sm:$0xff] %v1984
    %2513 = vst [vmem:[%s2355] ss:$9 sm:$0xff] %v1985
    %2514 = vst [vmem:[%s2357] ss:$9 sm:$0xff] %v1986
    %2515 = vst [vmem:[%s2359] ss:$9 sm:$0xff] %v1987
    %2516 = vst [vmem:[%s2361] ss:$9 sm:$0xff] %v1988
    %2517 = vst [vmem:[%s2363] ss:$9 sm:$0xff] %v1989
    %v2518 = vld [vmem:[#allocation1] sm:$0xff]
    %2519 = vst [vmem:[#allocation1] ss:$9 sm:$0xff] %v1990
    %2520 = vst [vmem:[%s2351] ss:$9 sm:$0xff] %v1991
    %2521 = vst [vmem:[%s2353] ss:$9 sm:$0xff] %v1992
    %2522 = vst [vmem:[%s2355] ss:$9 sm:$0xff] %v1993
    %2523 = vst [vmem:[%s2357] ss:$9 sm:$0xff] %v1994
    %2524 = vst [vmem:[%s2359] ss:$9 sm:$0xff] %v1995
    %2525 = vst [vmem:[%s2361] ss:$9 sm:$0xff] %v1996
    %2526 = vst [vmem:[%s2363] ss:$9 sm:$0xff] %v1997
    %v2527 = vld [vmem:[#allocation1] sm:$0xff]
    %2528 = vst [vmem:[#allocation1] ss:$9 sm:$0xff] %v1998
    %2529 = vst [vmem:[%s2351] ss:$9 sm:$0xff] %v1999
    %2530 = vst [vmem:[%s2353] ss:$9 sm:$0xff] %v2000
    %2531 = vst [vmem:[%s2355] ss:$9 sm:$0xff] %v2001
    %2532 = vst [vmem:[%s2357] ss:$9 sm:$0xff] %v2002
    %2533 = vst [vmem:[%s2359] ss:$9 sm:$0xff] %v2003
    %2534 = vst [vmem:[%s2361] ss:$9 sm:$0xff] %v2004
    %2535 = vst [vmem:[%s2363] ss:$9 sm:$0xff] %v2005
    %v2536 = vld [vmem:[#allocation1] sm:$0xff]
    %2537 = vst [vmem:[#allocation1] ss:$9 sm:$0xff] %v2006
    %2538 = vst [vmem:[%s2351] ss:$9 sm:$0xff] %v2007
    %2539 = vst [vmem:[%s2353] ss:$9 sm:$0xff] %v2008
    %2540 = vst [vmem:[%s2355] ss:$9 sm:$0xff] %v2009
    %2541 = vst [vmem:[%s2357] ss:$9 sm:$0xff] %v2010
    %2542 = vst [vmem:[%s2359] ss:$9 sm:$0xff] %v2011
    %2543 = vst [vmem:[%s2361] ss:$9 sm:$0xff] %v2012
    %2544 = vst [vmem:[%s2363] ss:$9 sm:$0xff] %v2013
    %v2545 = vld [vmem:[#allocation1] sm:$0xff]
    %2546 = vst [vmem:[#allocation1] ss:$9 sm:$0xff] %v2014
    %2547 = vst [vmem:[%s2351] ss:$9 sm:$0xff] %v2015
    %2548 = vst [vmem:[%s2353] ss:$9 sm:$0xff] %v2016
    %2549 = vst [vmem:[%s2355] ss:$9 sm:$0xff] %v2017
    %2550 = vst [vmem:[%s2357] ss:$9 sm:$0xff] %v2018
    %2551 = vst [vmem:[%s2359] ss:$9 sm:$0xff] %v2019
    %2552 = vst [vmem:[%s2361] ss:$9 sm:$0xff] %v2020
    %2553 = vst [vmem:[%s2363] ss:$9 sm:$0xff] %v2021
    %v2554 = vld [vmem:[#allocation1] sm:$0xff]
    %2555 = vst [vmem:[#allocation1] ss:$9 sm:$0xff] %v2022
    %2556 = vst [vmem:[%s2351] ss:$9 sm:$0xff] %v2023
    %2557 = vst [vmem:[%s2353] ss:$9 sm:$0xff] %v2024
    %2558 = vst [vmem:[%s2355] ss:$9 sm:$0xff] %v2025
    %2559 = vst [vmem:[%s2357] ss:$9 sm:$0xff] %v2026
    %2560 = vst [vmem:[%s2359] ss:$9 sm:$0xff] %v2027
    %2561 = vst [vmem:[%s2361] ss:$9 sm:$0xff] %v2028
    %2562 = vst [vmem:[%s2363] ss:$9 sm:$0xff] %v2029
    %v2563 = vld [vmem:[#allocation1] sm:$0xff]
    %2564 = vst [vmem:[#allocation1] ss:$9 sm:$0xff] %v2030
    %2565 = vst [vmem:[%s2351] ss:$9 sm:$0xff] %v2031
    %2566 = vst [vmem:[%s2353] ss:$9 sm:$0xff] %v2032
    %2567 = vst [vmem:[%s2355] ss:$9 sm:$0xff] %v2033
    %2568 = vst [vmem:[%s2357] ss:$9 sm:$0xff] %v2034
    %2569 = vst [vmem:[%s2359] ss:$9 sm:$0xff] %v2035
    %2570 = vst [vmem:[%s2361] ss:$9 sm:$0xff] %v2036
    %2571 = vst [vmem:[%s2363] ss:$9 sm:$0xff] %v2037
    %v2572 = vld [vmem:[#allocation1] sm:$0xff]
    %2573 = vst [vmem:[#allocation1] ss:$9 sm:$0xff] %v2038
    %2574 = vst [vmem:[%s2351] ss:$9 sm:$0xff] %v2039
    %2575 = vst [vmem:[%s2353] ss:$9 sm:$0xff] %v2040
    %2576 = vst [vmem:[%s2355] ss:$9 sm:$0xff] %v2041
    %2577 = vst [vmem:[%s2357] ss:$9 sm:$0xff] %v2042
    %2578 = vst [vmem:[%s2359] ss:$9 sm:$0xff] %v2043
    %2579 = vst [vmem:[%s2361] ss:$9 sm:$0xff] %v2044
    %2580 = vst [vmem:[%s2363] ss:$9 sm:$0xff] %v2045
    %v2581 = vld [vmem:[#allocation1] sm:$0xff]
    %2582 = vst [vmem:[#allocation1] ss:$9 sm:$0xff] %v2046
    %2583 = vst [vmem:[%s2351] ss:$9 sm:$0xff] %v2047
    %2584 = vst [vmem:[%s2353] ss:$9 sm:$0xff] %v2048
    %2585 = vst [vmem:[%s2355] ss:$9 sm:$0xff] %v2049
    %2586 = vst [vmem:[%s2357] ss:$9 sm:$0xff] %v2050
    %2587 = vst [vmem:[%s2359] ss:$9 sm:$0xff] %v2051
    %2588 = vst [vmem:[%s2361] ss:$9 sm:$0xff] %v2052
    %2589 = vst [vmem:[%s2363] ss:$9 sm:$0xff] %v2053
    %v2590 = vld [vmem:[#allocation1] sm:$0xff]
    %2591 = vst [vmem:[#allocation1] ss:$9 sm:$0xff] %v2054
    %2592 = vst [vmem:[%s2351] ss:$9 sm:$0xff] %v2055
    %2593 = vst [vmem:[%s2353] ss:$9 sm:$0xff] %v2056
    %2594 = vst [vmem:[%s2355] ss:$9 sm:$0xff] %v2057
    %2595 = vst [vmem:[%s2357] ss:$9 sm:$0xff] %v2058
    %2596 = vst [vmem:[%s2359] ss:$9 sm:$0xff] %v2059
    %2597 = vst [vmem:[%s2361] ss:$9 sm:$0xff] %v2060
    %2598 = vst [vmem:[%s2363] ss:$9 sm:$0xff] %v2061
    %v2599 = vld [vmem:[#allocation1] sm:$0xff]
    %2600 = vst [vmem:[#allocation1] ss:$9 sm:$0xff] %v2062
    %2601 = vst [vmem:[%s2351] ss:$9 sm:$0xff] %v2063
    %2602 = vst [vmem:[%s2353] ss:$9 sm:$0xff] %v2064
    %2603 = vst [vmem:[%s2355] ss:$9 sm:$0xff] %v2065
    %2604 = vst [vmem:[%s2357] ss:$9 sm:$0xff] %v2066
    %2605 = vst [vmem:[%s2359] ss:$9 sm:$0xff] %v2067
    %2606 = vst [vmem:[%s2361] ss:$9 sm:$0xff] %v2068
    %2607 = vst [vmem:[%s2363] ss:$9 sm:$0xff] %v2069
    %v2608 = vld [vmem:[#allocation1] sm:$0xff]
    %2609 = vst [vmem:[#allocation1] ss:$9 sm:$0xff] %v2070
    %2610 = vst [vmem:[%s2351] ss:$9 sm:$0xff] %v2071
    %2611 = vst [vmem:[%s2353] ss:$9 sm:$0xff] %v2072
    %2612 = vst [vmem:[%s2355] ss:$9 sm:$0xff] %v2073
    %2613 = vst [vmem:[%s2357] ss:$9 sm:$0xff] %v2074
    %2614 = vst [vmem:[%s2359] ss:$9 sm:$0xff] %v2075
    %2615 = vst [vmem:[%s2361] ss:$9 sm:$0xff] %v2076
    %2616 = vst [vmem:[%s2363] ss:$9 sm:$0xff] %v2077
    %v2617 = vld [vmem:[#allocation1] sm:$0xff]
    %2618 = vst [vmem:[#allocation1] ss:$9 sm:$0xff] %v2078
    %2619 = vst [vmem:[%s2351] ss:$9 sm:$0xff] %v2079
    %2620 = vst [vmem:[%s2353] ss:$9 sm:$0xff] %v2080
    %2621 = vst [vmem:[%s2355] ss:$9 sm:$0xff] %v2081
    %2622 = vst [vmem:[%s2357] ss:$9 sm:$0xff] %v2082
    %2623 = vst [vmem:[%s2359] ss:$9 sm:$0xff] %v2083
    %2624 = vst [vmem:[%s2361] ss:$9 sm:$0xff] %v2084
    %2625 = vst [vmem:[%s2363] ss:$9 sm:$0xff] %v2085
    %v2626 = vld [vmem:[#allocation1] sm:$0xff]
    %2627 = vst [vmem:[#allocation1] ss:$9 sm:$0xff] %v2086
    %2628 = vst [vmem:[%s2351] ss:$9 sm:$0xff] %v2087
    %2629 = vst [vmem:[%s2353] ss:$9 sm:$0xff] %v2088
    %2630 = vst [vmem:[%s2355] ss:$9 sm:$0xff] %v2089
    %2631 = vst [vmem:[%s2357] ss:$9 sm:$0xff] %v2090
    %2632 = vst [vmem:[%s2359] ss:$9 sm:$0xff] %v2091
    %2633 = vst [vmem:[%s2361] ss:$9 sm:$0xff] %v2092
    %2634 = vst [vmem:[%s2363] ss:$9 sm:$0xff] %v2093
    %v2635 = vld [vmem:[#allocation1] sm:$0xff]
    %2636 = vst [vmem:[#allocation1] ss:$9 sm:$0xff] %v2094
    %2637 = vst [vmem:[%s2351] ss:$9 sm:$0xff] %v2095
    %2638 = vst [vmem:[%s2353] ss:$9 sm:$0xff] %v2096
    %2639 = vst [vmem:[%s2355] ss:$9 sm:$0xff] %v2097
    %2640 = vst [vmem:[%s2357] ss:$9 sm:$0xff] %v2098
    %2641 = vst [vmem:[%s2359] ss:$9 sm:$0xff] %v2099
    %2642 = vst [vmem:[%s2361] ss:$9 sm:$0xff] %v2100
    %2643 = vst [vmem:[%s2363] ss:$9 sm:$0xff] %v2101
    %v2644 = vld [vmem:[#allocation1] sm:$0xff]
    %2645 = vst [vmem:[#allocation1] ss:$9 sm:$0xff] %v2102
    %2646 = vst [vmem:[%s2351] ss:$9 sm:$0xff] %v2103
    %2647 = vst [vmem:[%s2353] ss:$9 sm:$0xff] %v2104
    %2648 = vst [vmem:[%s2355] ss:$9 sm:$0xff] %v2105
    %2649 = vst [vmem:[%s2357] ss:$9 sm:$0xff] %v2106
    %2650 = vst [vmem:[%s2359] ss:$9 sm:$0xff] %v2107
    %2651 = vst [vmem:[%s2361] ss:$9 sm:$0xff] %v2108
    %2652 = vst [vmem:[%s2363] ss:$9 sm:$0xff] %v2109
    %v2653 = vld [vmem:[#allocation1] sm:$0xff]
    %2654 = vst [vmem:[#allocation1] ss:$9 sm:$0xff] %v2110
    %2655 = vst [vmem:[%s2351] ss:$9 sm:$0xff] %v2111
    %2656 = vst [vmem:[%s2353] ss:$9 sm:$0xff] %v2112
    %2657 = vst [vmem:[%s2355] ss:$9 sm:$0xff] %v2113
    %2658 = vst [vmem:[%s2357] ss:$9 sm:$0xff] %v2114
    %2659 = vst [vmem:[%s2359] ss:$9 sm:$0xff] %v2115
    %2660 = vst [vmem:[%s2361] ss:$9 sm:$0xff] %v2116
    %2661 = vst [vmem:[%s2363] ss:$9 sm:$0xff] %v2117
    %v2662 = vld [vmem:[#allocation1] sm:$0xff]
    %2663 = vst [vmem:[#allocation1] ss:$9 sm:$0xff] %v2118
    %2664 = vst [vmem:[%s2351] ss:$9 sm:$0xff] %v2119
    %2665 = vst [vmem:[%s2353] ss:$9 sm:$0xff] %v2120
    %2666 = vst [vmem:[%s2355] ss:$9 sm:$0xff] %v2121
    %2667 = vst [vmem:[%s2357] ss:$9 sm:$0xff] %v2122
    %2668 = vst [vmem:[%s2359] ss:$9 sm:$0xff] %v2123
    %2669 = vst [vmem:[%s2361] ss:$9 sm:$0xff] %v2124
    %2670 = vst [vmem:[%s2363] ss:$9 sm:$0xff] %v2125
    %v2671 = vld [vmem:[#allocation1] sm:$0xff]
    %2672 = vst [vmem:[#allocation1] ss:$9 sm:$0xff] %v2126
    %2673 = vst [vmem:[%s2351] ss:$9 sm:$0xff] %v2127
    %2674 = vst [vmem:[%s2353] ss:$9 sm:$0xff] %v2128
    %2675 = vst [vmem:[%s2355] ss:$9 sm:$0xff] %v2129
    %2676 = vst [vmem:[%s2357] ss:$9 sm:$0xff] %v2130
    %2677 = vst [vmem:[%s2359] ss:$9 sm:$0xff] %v2131
    %2678 = vst [vmem:[%s2361] ss:$9 sm:$0xff] %v2132
    %2679 = vst [vmem:[%s2363] ss:$9 sm:$0xff] %v2133
    %v2680 = vld [vmem:[#allocation1] sm:$0xff]
    %2681 = vst [vmem:[#allocation1] ss:$9 sm:$0xff] %v2134
    %2682 = vst [vmem:[%s2351] ss:$9 sm:$0xff] %v2135
    %2683 = vst [vmem:[%s2353] ss:$9 sm:$0xff] %v2136
    %2684 = vst [vmem:[%s2355] ss:$9 sm:$0xff] %v2137
    %2685 = vst [vmem:[%s2357] ss:$9 sm:$0xff] %v2138
    %2686 = vst [vmem:[%s2359] ss:$9 sm:$0xff] %v2139
    %2687 = vst [vmem:[%s2361] ss:$9 sm:$0xff] %v2140
    %2688 = vst [vmem:[%s2363] ss:$9 sm:$0xff] %v2141
    %v2689 = vld [vmem:[#allocation1] sm:$0xff]
    %2690 = vst [vmem:[#allocation1] ss:$9 sm:$0xff] %v2142
    %2691 = vst [vmem:[%s2351] ss:$9 sm:$0xff] %v2143
    %2692 = vst [vmem:[%s2353] ss:$9 sm:$0xff] %v2144
    %2693 = vst [vmem:[%s2355] ss:$9 sm:$0xff] %v2145
    %2694 = vst [vmem:[%s2357] ss:$9 sm:$0xff] %v2146
    %2695 = vst [vmem:[%s2359] ss:$9 sm:$0xff] %v2147
    %2696 = vst [vmem:[%s2361] ss:$9 sm:$0xff] %v2148
    %2697 = vst [vmem:[%s2363] ss:$9 sm:$0xff] %v2149
    %v2698 = vld [vmem:[#allocation1] sm:$0xff]
    %2699 = vst [vmem:[#allocation1] ss:$9 sm:$0xff] %v2150
    %2700 = vst [vmem:[%s2351] ss:$9 sm:$0xff] %v2151
    %2701 = vst [vmem:[%s2353] ss:$9 sm:$0xff] %v2152
    %2702 = vst [vmem:[%s2355] ss:$9 sm:$0xff] %v2153
    %2703 = vst [vmem:[%s2357] ss:$9 sm:$0xff] %v2154
    %2704 = vst [vmem:[%s2359] ss:$9 sm:$0xff] %v2155
    %2705 = vst [vmem:[%s2361] ss:$9 sm:$0xff] %v2156
    %2706 = vst [vmem:[%s2363] ss:$9 sm:$0xff] %v2157
    %v2707 = vld [vmem:[#allocation1] sm:$0xff]
    %2708 = vst [vmem:[#allocation1] ss:$9 sm:$0xff] %v2158
    %2709 = vst [vmem:[%s2351] ss:$9 sm:$0xff] %v2159
    %2710 = vst [vmem:[%s2353] ss:$9 sm:$0xff] %v2160
    %2711 = vst [vmem:[%s2355] ss:$9 sm:$0xff] %v2161
    %2712 = vst [vmem:[%s2357] ss:$9 sm:$0xff] %v2162
    %2713 = vst [vmem:[%s2359] ss:$9 sm:$0xff] %v2163
    %2714 = vst [vmem:[%s2361] ss:$9 sm:$0xff] %v2164
    %2715 = vst [vmem:[%s2363] ss:$9 sm:$0xff] %v2165
    %v2716 = vld [vmem:[#allocation1] sm:$0xff]
    %2717 = vst [vmem:[#allocation1] ss:$9 sm:$0xff] %v2166
    %2718 = vst [vmem:[%s2351] ss:$9 sm:$0xff] %v2167
    %2719 = vst [vmem:[%s2353] ss:$9 sm:$0xff] %v2168
    %2720 = vst [vmem:[%s2355] ss:$9 sm:$0xff] %v2169
    %2721 = vst [vmem:[%s2357] ss:$9 sm:$0xff] %v2170
    %2722 = vst [vmem:[%s2359] ss:$9 sm:$0xff] %v2171
    %2723 = vst [vmem:[%s2361] ss:$9 sm:$0xff] %v2172
    %2724 = vst [vmem:[%s2363] ss:$9 sm:$0xff] %v2173
    %v2725 = vld [vmem:[#allocation1] sm:$0xff]
    %2726 = vst [vmem:[#allocation1] ss:$9 sm:$0xff] %v2174
    %2727 = vst [vmem:[%s2351] ss:$9 sm:$0xff] %v2175
    %2728 = vst [vmem:[%s2353] ss:$9 sm:$0xff] %v2176
    %2729 = vst [vmem:[%s2355] ss:$9 sm:$0xff] %v2177
    %2730 = vst [vmem:[%s2357] ss:$9 sm:$0xff] %v2178
    %2731 = vst [vmem:[%s2359] ss:$9 sm:$0xff] %v2179
    %2732 = vst [vmem:[%s2361] ss:$9 sm:$0xff] %v2180
    %2733 = vst [vmem:[%s2363] ss:$9 sm:$0xff] %v2181
    %v2734 = vld [vmem:[#allocation1] sm:$0xff]
    %2735 = vst [vmem:[#allocation1] ss:$9 sm:$0xff] %v2182
    %2736 = vst [vmem:[%s2351] ss:$9 sm:$0xff] %v2183
    %2737 = vst [vmem:[%s2353] ss:$9 sm:$0xff] %v2184
    %2738 = vst [vmem:[%s2355] ss:$9 sm:$0xff] %v2185
    %2739 = vst [vmem:[%s2357] ss:$9 sm:$0xff] %v2186
    %2740 = vst [vmem:[%s2359] ss:$9 sm:$0xff] %v2187
    %2741 = vst [vmem:[%s2361] ss:$9 sm:$0xff] %v2188
    %2742 = vst [vmem:[%s2363] ss:$9 sm:$0xff] %v2189
    %v2743 = vld [vmem:[#allocation1] sm:$0xff]
    %2744 = vst [vmem:[#allocation1] ss:$9 sm:$0xff] %v2190
    %2745 = vst [vmem:[%s2351] ss:$9 sm:$0xff] %v2191
    %2746 = vst [vmem:[%s2353] ss:$9 sm:$0xff] %v2192
    %2747 = vst [vmem:[%s2355] ss:$9 sm:$0xff] %v2193
    %2748 = vst [vmem:[%s2357] ss:$9 sm:$0xff] %v2194
    %2749 = vst [vmem:[%s2359] ss:$9 sm:$0xff] %v2195
    %2750 = vst [vmem:[%s2361] ss:$9 sm:$0xff] %v2196
    %2751 = vst [vmem:[%s2363] ss:$9 sm:$0xff] %v2197
    %v2752 = vld [vmem:[#allocation1] sm:$0xff]
    %2753 = vst [vmem:[#allocation1] ss:$9 sm:$0xff] %v2198
    %2754 = vst [vmem:[%s2351] ss:$9 sm:$0xff] %v2199
    %2755 = vst [vmem:[%s2353] ss:$9 sm:$0xff] %v2200
    %2756 = vst [vmem:[%s2355] ss:$9 sm:$0xff] %v2201
    %2757 = vst [vmem:[%s2357] ss:$9 sm:$0xff] %v2202
    %2758 = vst [vmem:[%s2359] ss:$9 sm:$0xff] %v2203
    %2759 = vst [vmem:[%s2361] ss:$9 sm:$0xff] %v2204
    %2760 = vst [vmem:[%s2363] ss:$9 sm:$0xff] %v2205
    %v2761 = vld [vmem:[#allocation1] sm:$0xff]
    %2762 = vst [vmem:[#allocation1] ss:$9 sm:$0xff] %v2206
    %2763 = vst [vmem:[%s2351] ss:$9 sm:$0xff] %v2207
    %2764 = vst [vmem:[%s2353] ss:$9 sm:$0xff] %v2208
    %2765 = vst [vmem:[%s2355] ss:$9 sm:$0xff] %v2209
    %2766 = vst [vmem:[%s2357] ss:$9 sm:$0xff] %v2210
    %2767 = vst [vmem:[%s2359] ss:$9 sm:$0xff] %v2211
    %2768 = vst [vmem:[%s2361] ss:$9 sm:$0xff] %v2212
    %2769 = vst [vmem:[%s2363] ss:$9 sm:$0xff] %v2213
    %v2770 = vld [vmem:[#allocation1] sm:$0xff]
    %2771 = vst [vmem:[#allocation1] ss:$9 sm:$0xff] %v2214
    %2772 = vst [vmem:[%s2351] ss:$9 sm:$0xff] %v2215
    %2773 = vst [vmem:[%s2353] ss:$9 sm:$0xff] %v2216
    %2774 = vst [vmem:[%s2355] ss:$9 sm:$0xff] %v2217
    %2775 = vst [vmem:[%s2357] ss:$9 sm:$0xff] %v2218
    %2776 = vst [vmem:[%s2359] ss:$9 sm:$0xff] %v2219
    %2777 = vst [vmem:[%s2361] ss:$9 sm:$0xff] %v2220
    %2778 = vst [vmem:[%s2363] ss:$9 sm:$0xff] %v2221
    %v2779 = vld [vmem:[#allocation1] sm:$0xff]
    %2780 = vst [vmem:[#allocation1] ss:$9 sm:$0xff] %v2222
    %2781 = vst [vmem:[%s2351] ss:$9 sm:$0xff] %v2223
    %2782 = vst [vmem:[%s2353] ss:$9 sm:$0xff] %v2224
    %2783 = vst [vmem:[%s2355] ss:$9 sm:$0xff] %v2225
    %2784 = vst [vmem:[%s2357] ss:$9 sm:$0xff] %v2226
    %2785 = vst [vmem:[%s2359] ss:$9 sm:$0xff] %v2227
    %2786 = vst [vmem:[%s2361] ss:$9 sm:$0xff] %v2228
    %2787 = vst [vmem:[%s2363] ss:$9 sm:$0xff] %v2229
    %v2788 = vld [vmem:[#allocation1] sm:$0xff]
    %2789 = vst [vmem:[#allocation1] ss:$9 sm:$0xff] %v2230
    %2790 = vst [vmem:[%s2351] ss:$9 sm:$0xff] %v2231
    %2791 = vst [vmem:[%s2353] ss:$9 sm:$0xff] %v2232
    %2792 = vst [vmem:[%s2355] ss:$9 sm:$0xff] %v2233
    %2793 = vst [vmem:[%s2357] ss:$9 sm:$0xff] %v2234
    %2794 = vst [vmem:[%s2359] ss:$9 sm:$0xff] %v2235
    %2795 = vst [vmem:[%s2361] ss:$9 sm:$0xff] %v2236
    %2796 = vst [vmem:[%s2363] ss:$9 sm:$0xff] %v2237
    %v2797 = vld [vmem:[#allocation1] sm:$0xff]
    %2798 = vst [vmem:[#allocation1] ss:$9 sm:$0xff] %v2238
    %2799 = vst [vmem:[%s2351] ss:$9 sm:$0xff] %v2239
    %2800 = vst [vmem:[%s2353] ss:$9 sm:$0xff] %v2240
    %2801 = vst [vmem:[%s2355] ss:$9 sm:$0xff] %v2241
    %2802 = vst [vmem:[%s2357] ss:$9 sm:$0xff] %v2242
    %2803 = vst [vmem:[%s2359] ss:$9 sm:$0xff] %v2243
    %2804 = vst [vmem:[%s2361] ss:$9 sm:$0xff] %v2244
    %2805 = vst [vmem:[%s2363] ss:$9 sm:$0xff] %v2245
    %v2806 = vld [vmem:[#allocation1] sm:$0xff]
    %2807 = vst [vmem:[#allocation1] ss:$9 sm:$0xff] %v2246
    %2808 = vst [vmem:[%s2351] ss:$9 sm:$0xff] %v2247
    %2809 = vst [vmem:[%s2353] ss:$9 sm:$0xff] %v2248
    %2810 = vst [vmem:[%s2355] ss:$9 sm:$0xff] %v2249
    %2811 = vst [vmem:[%s2357] ss:$9 sm:$0xff] %v2250
    %2812 = vst [vmem:[%s2359] ss:$9 sm:$0xff] %v2251
    %2813 = vst [vmem:[%s2361] ss:$9 sm:$0xff] %v2252
    %2814 = vst [vmem:[%s2363] ss:$9 sm:$0xff] %v2253
    %v2815 = vld [vmem:[#allocation1] sm:$0xff]
    %2816 = vst [vmem:[#allocation1] ss:$9 sm:$0xff] %v2254
    %2817 = vst [vmem:[%s2351] ss:$9 sm:$0xff] %v2255
    %2818 = vst [vmem:[%s2353] ss:$9 sm:$0xff] %v2256
    %2819 = vst [vmem:[%s2355] ss:$9 sm:$0xff] %v2257
    %2820 = vst [vmem:[%s2357] ss:$9 sm:$0xff] %v2258
    %2821 = vst [vmem:[%s2359] ss:$9 sm:$0xff] %v2259
    %2822 = vst [vmem:[%s2361] ss:$9 sm:$0xff] %v2260
    %2823 = vst [vmem:[%s2363] ss:$9 sm:$0xff] %v2261
    %v2824 = vld [vmem:[#allocation1] sm:$0xff]
    %2825 = vst [vmem:[#allocation1] ss:$9 sm:$0xff] %v2262
    %2826 = vst [vmem:[%s2351] ss:$9 sm:$0xff] %v2263
    %2827 = vst [vmem:[%s2353] ss:$9 sm:$0xff] %v2264
    %2828 = vst [vmem:[%s2355] ss:$9 sm:$0xff] %v2265
    %2829 = vst [vmem:[%s2357] ss:$9 sm:$0xff] %v2266
    %2830 = vst [vmem:[%s2359] ss:$9 sm:$0xff] %v2267
    %2831 = vst [vmem:[%s2361] ss:$9 sm:$0xff] %v2268
    %2832 = vst [vmem:[%s2363] ss:$9 sm:$0xff] %v2269
    %v2833 = vld [vmem:[#allocation1] sm:$0xff]
    %2834 = vst [vmem:[#allocation1] ss:$9 sm:$0xff] %v2270
    %2835 = vst [vmem:[%s2351] ss:$9 sm:$0xff] %v2271
    %2836 = vst [vmem:[%s2353] ss:$9 sm:$0xff] %v2272
    %2837 = vst [vmem:[%s2355] ss:$9 sm:$0xff] %v2273
    %2838 = vst [vmem:[%s2357] ss:$9 sm:$0xff] %v2274
    %2839 = vst [vmem:[%s2359] ss:$9 sm:$0xff] %v2275
    %2840 = vst [vmem:[%s2361] ss:$9 sm:$0xff] %v2276
    %2841 = vst [vmem:[%s2363] ss:$9 sm:$0xff] %v2277
    %v2842 = vld [vmem:[#allocation1] sm:$0xff]
    %2843 = vst [vmem:[#allocation1] ss:$9 sm:$0xff] %v2278
    %2844 = vst [vmem:[%s2351] ss:$9 sm:$0xff] %v2279
    %2845 = vst [vmem:[%s2353] ss:$9 sm:$0xff] %v2280
    %2846 = vst [vmem:[%s2355] ss:$9 sm:$0xff] %v2281
    %2847 = vst [vmem:[%s2357] ss:$9 sm:$0xff] %v2282
    %2848 = vst [vmem:[%s2359] ss:$9 sm:$0xff] %v2283
    %2849 = vst [vmem:[%s2361] ss:$9 sm:$0xff] %v2284
    %2850 = vst [vmem:[%s2363] ss:$9 sm:$0xff] %v2285
    %v2851 = vld [vmem:[#allocation1] sm:$0xff]
    %2852 = vst [vmem:[#allocation1] ss:$9 sm:$0xff] %v2286
    %2853 = vst [vmem:[%s2351] ss:$9 sm:$0xff] %v2287
    %2854 = vst [vmem:[%s2353] ss:$9 sm:$0xff] %v2288
    %2855 = vst [vmem:[%s2355] ss:$9 sm:$0xff] %v2289
    %2856 = vst [vmem:[%s2357] ss:$9 sm:$0xff] %v2290
    %2857 = vst [vmem:[%s2359] ss:$9 sm:$0xff] %v2291
    %2858 = vst [vmem:[%s2361] ss:$9 sm:$0xff] %v2292
    %2859 = vst [vmem:[%s2363] ss:$9 sm:$0xff] %v2293
    %v2860 = vld [vmem:[#allocation1] sm:$0xff]
    %2861 = vst [vmem:[#allocation1] ss:$9 sm:$0xff] %v2294
    %2862 = vst [vmem:[%s2351] ss:$9 sm:$0xff] %v2295
    %2863 = vst [vmem:[%s2353] ss:$9 sm:$0xff] %v2296
    %2864 = vst [vmem:[%s2355] ss:$9 sm:$0xff] %v2297
    %2865 = vst [vmem:[%s2357] ss:$9 sm:$0xff] %v2298
    %2866 = vst [vmem:[%s2359] ss:$9 sm:$0xff] %v2299
    %2867 = vst [vmem:[%s2361] ss:$9 sm:$0xff] %v2300
    %2868 = vst [vmem:[%s2363] ss:$9 sm:$0xff] %v2301
    %v2869 = vld [vmem:[#allocation1] sm:$0xff]
    %2870 = vst [vmem:[#allocation1] ss:$9 sm:$0xff] %v2302
    %2871 = vst [vmem:[%s2351] ss:$9 sm:$0xff] %v2303
    %2872 = vst [vmem:[%s2353] ss:$9 sm:$0xff] %v2304
    %2873 = vst [vmem:[%s2355] ss:$9 sm:$0xff] %v2305
    %2874 = vst [vmem:[%s2357] ss:$9 sm:$0xff] %v2306
    %2875 = vst [vmem:[%s2359] ss:$9 sm:$0xff] %v2307
    %2876 = vst [vmem:[%s2361] ss:$9 sm:$0xff] %v2308
    %2877 = vst [vmem:[%s2363] ss:$9 sm:$0xff] %v2309
    %v2878 = vld [vmem:[#allocation1] sm:$0xff]
    %2879 = vst [vmem:[#allocation1] ss:$9 sm:$0xff] %v2310
    %2880 = vst [vmem:[%s2351] ss:$9 sm:$0xff] %v2311
    %2881 = vst [vmem:[%s2353] ss:$9 sm:$0xff] %v2312
    %2882 = vst [vmem:[%s2355] ss:$9 sm:$0xff] %v2313
    %2883 = vst [vmem:[%s2357] ss:$9 sm:$0xff] %v2314
    %2884 = vst [vmem:[%s2359] ss:$9 sm:$0xff] %v2315
    %2885 = vst [vmem:[%s2361] ss:$9 sm:$0xff] %v2316
    %2886 = vst [vmem:[%s2363] ss:$9 sm:$0xff] %v2317
    %v2887 = vld [vmem:[#allocation1] sm:$0xff]
    %2888 = vst [vmem:[#allocation1] ss:$9 sm:$0xff] %v2318
    %2889 = vst [vmem:[%s2351] ss:$9 sm:$0xff] %v2319
    %2890 = vst [vmem:[%s2353] ss:$9 sm:$0xff] %v2320
    %2891 = vst [vmem:[%s2355] ss:$9 sm:$0xff] %v2321
    %2892 = vst [vmem:[%s2357] ss:$9 sm:$0xff] %v2322
    %2893 = vst [vmem:[%s2359] ss:$9 sm:$0xff] %v2323
    %2894 = vst [vmem:[%s2361] ss:$9 sm:$0xff] %v2324
    %2895 = vst [vmem:[%s2363] ss:$9 sm:$0xff] %v2325
    %v2896 = vld [vmem:[#allocation1] sm:$0xff]
    %2897 = vst [vmem:[#allocation1] ss:$9 sm:$0xff] %v2326
    %2898 = vst [vmem:[%s2351] ss:$9 sm:$0xff] %v2327
    %2899 = vst [vmem:[%s2353] ss:$9 sm:$0xff] %v2328
    %2900 = vst [vmem:[%s2355] ss:$9 sm:$0xff] %v2329
    %2901 = vst [vmem:[%s2357] ss:$9 sm:$0xff] %v2330
    %2902 = vst [vmem:[%s2359] ss:$9 sm:$0xff] %v2331
    %2903 = vst [vmem:[%s2361] ss:$9 sm:$0xff] %v2332
    %2904 = vst [vmem:[%s2363] ss:$9 sm:$0xff] %v2333
    %v2905 = vld [vmem:[#allocation1] sm:$0xff]
    %2906 = vst [vmem:[#allocation1] ss:$9 sm:$0xff] %v2334
    %2907 = vst [vmem:[%s2351] ss:$9 sm:$0xff] %v2335
    %2908 = vst [vmem:[%s2353] ss:$9 sm:$0xff] %v2336
    %2909 = vst [vmem:[%s2355] ss:$9 sm:$0xff] %v2337
    %2910 = vst [vmem:[%s2357] ss:$9 sm:$0xff] %v2338
    %2911 = vst [vmem:[%s2359] ss:$9 sm:$0xff] %v2339
    %2912 = vst [vmem:[%s2361] ss:$9 sm:$0xff] %v2340
    %2913 = vst [vmem:[%s2363] ss:$9 sm:$0xff] %v2341
    %v2914 = vld [vmem:[#allocation1] sm:$0xff]
    %2915 = vst [vmem:[#allocation1] ss:$9 sm:$0xff] %v2342
    %2916 = vst [vmem:[%s2351] ss:$9 sm:$0xff] %v2343
    %2917 = vst [vmem:[%s2353] ss:$9 sm:$0xff] %v2344
    %2918 = vst [vmem:[%s2355] ss:$9 sm:$0xff] %v2345
    %2919 = vst [vmem:[%s2357] ss:$9 sm:$0xff] %v2346
    %2920 = vst [vmem:[%s2359] ss:$9 sm:$0xff] %v2347
    %2921 = vst [vmem:[%s2361] ss:$9 sm:$0xff] %v2348
    %2922 = vst [vmem:[%s2363] ss:$9 sm:$0xff] %v2349
    %v2923 = vld [vmem:[#allocation1] sm:$0xff]
    %2924 = vset.pattern.permute.xlu0 0
    %2925 = vperm.xlu0 %2924, %v2365
    %v2926 = vpop.permute.xlu0 %2925
    %2927 = vset.pattern.permute.xlu0 0
    %2928 = vperm.xlu0 %2927, %v2374
    %v2929 = vpop.permute.xlu0 %2928
    %2930 = vset.pattern.permute.xlu0 0
    %2931 = vperm.xlu0 %2930, %v2383
    %v2932 = vpop.permute.xlu0 %2931
    %2933 = vset.pattern.permute.xlu0 0
    %2934 = vperm.xlu0 %2933, %v2392
    %v2935 = vpop.permute.xlu0 %2934
    %2936 = vset.pattern.permute.xlu0 0
    %2937 = vperm.xlu0 %2936, %v2401
    %v2938 = vpop.permute.xlu0 %2937
    %2939 = vset.pattern.permute.xlu0 0
    %2940 = vperm.xlu0 %2939, %v2410
    %v2941 = vpop.permute.xlu0 %2940
    %2942 = vset.pattern.permute.xlu0 0
    %2943 = vperm.xlu0 %2942, %v2419
    %v2944 = vpop.permute.xlu0 %2943
    %2945 = vset.pattern.permute.xlu0 0
    %2946 = vperm.xlu0 %2945, %v2428
    %v2947 = vpop.permute.xlu0 %2946
    %2948 = vset.pattern.permute.xlu0 0
    %2949 = vperm.xlu0 %2948, %v2437
    %v2950 = vpop.permute.xlu0 %2949
    %2951 = vset.pattern.permute.xlu0 0
    %2952 = vperm.xlu0 %2951, %v2446
    %v2953 = vpop.permute.xlu0 %2952
    %2954 = vset.pattern.permute.xlu0 0
    %2955 = vperm.xlu0 %2954, %v2455
    %v2956 = vpop.permute.xlu0 %2955
    %2957 = vset.pattern.permute.xlu0 0
    %2958 = vperm.xlu0 %2957, %v2464
    %v2959 = vpop.permute.xlu0 %2958
    %2960 = vset.pattern.permute.xlu0 0
    %2961 = vperm.xlu0 %2960, %v2473
    %v2962 = vpop.permute.xlu0 %2961
    %2963 = vset.pattern.permute.xlu0 0
    %2964 = vperm.xlu0 %2963, %v2482
    %v2965 = vpop.permute.xlu0 %2964
    %2966 = vset.pattern.permute.xlu0 0
    %2967 = vperm.xlu0 %2966, %v2491
    %v2968 = vpop.permute.xlu0 %2967
    %2969 = vset.pattern.permute.xlu0 0
    %2970 = vperm.xlu0 %2969, %v2500
    %v2971 = vpop.permute.xlu0 %2970
    %2972 = vset.pattern.permute.xlu0 0
    %2973 = vperm.xlu0 %2972, %v2509
    %v2974 = vpop.permute.xlu0 %2973
    %2975 = vset.pattern.permute.xlu0 0
    %2976 = vperm.xlu0 %2975, %v2518
    %v2977 = vpop.permute.xlu0 %2976
    %2978 = vset.pattern.permute.xlu0 0
    %2979 = vperm.xlu0 %2978, %v2527
    %v2980 = vpop.permute.xlu0 %2979
    %2981 = vset.pattern.permute.xlu0 0
    %2982 = vperm.xlu0 %2981, %v2536
    %v2983 = vpop.permute.xlu0 %2982
    %2984 = vset.pattern.permute.xlu0 0
    %2985 = vperm.xlu0 %2984, %v2545
    %v2986 = vpop.permute.xlu0 %2985
    %2987 = vset.pattern.permute.xlu0 0
    %2988 = vperm.xlu0 %2987, %v2554
    %v2989 = vpop.permute.xlu0 %2988
    %2990 = vset.pattern.permute.xlu0 0
    %2991 = vperm.xlu0 %2990, %v2563
    %v2992 = vpop.permute.xlu0 %2991
    %2993 = vset.pattern.permute.xlu0 0
    %2994 = vperm.xlu0 %2993, %v2572
    %v2995 = vpop.permute.xlu0 %2994
    %2996 = vset.pattern.permute.xlu0 0
    %2997 = vperm.xlu0 %2996, %v2581
    %v2998 = vpop.permute.xlu0 %2997
    %2999 = vset.pattern.permute.xlu0 0
    %3000 = vperm.xlu0 %2999, %v2590
    %v3001 = vpop.permute.xlu0 %3000
    %3002 = vset.pattern.permute.xlu0 0
    %3003 = vperm.xlu0 %3002, %v2599
    %v3004 = vpop.permute.xlu0 %3003
    %3005 = vset.pattern.permute.xlu0 0
    %3006 = vperm.xlu0 %3005, %v2608
    %v3007 = vpop.permute.xlu0 %3006
    %3008 = vset.pattern.permute.xlu0 0
    %3009 = vperm.xlu0 %3008, %v2617
    %v3010 = vpop.permute.xlu0 %3009
    %3011 = vset.pattern.permute.xlu0 0
    %3012 = vperm.xlu0 %3011, %v2626
    %v3013 = vpop.permute.xlu0 %3012
    %3014 = vset.pattern.permute.xlu0 0
    %3015 = vperm.xlu0 %3014, %v2635
    %v3016 = vpop.permute.xlu0 %3015
    %3017 = vset.pattern.permute.xlu0 0
    %3018 = vperm.xlu0 %3017, %v2644
    %v3019 = vpop.permute.xlu0 %3018
    %3020 = vset.pattern.permute.xlu0 0
    %3021 = vperm.xlu0 %3020, %v2653
    %v3022 = vpop.permute.xlu0 %3021
    %3023 = vset.pattern.permute.xlu0 0
    %3024 = vperm.xlu0 %3023, %v2662
    %v3025 = vpop.permute.xlu0 %3024
    %3026 = vset.pattern.permute.xlu0 0
    %3027 = vperm.xlu0 %3026, %v2671
    %v3028 = vpop.permute.xlu0 %3027
    %3029 = vset.pattern.permute.xlu0 0
    %3030 = vperm.xlu0 %3029, %v2680
    %v3031 = vpop.permute.xlu0 %3030
    %3032 = vset.pattern.permute.xlu0 0
    %3033 = vperm.xlu0 %3032, %v2689
    %v3034 = vpop.permute.xlu0 %3033
    %3035 = vset.pattern.permute.xlu0 0
    %3036 = vperm.xlu0 %3035, %v2698
    %v3037 = vpop.permute.xlu0 %3036
    %3038 = vset.pattern.permute.xlu0 0
    %3039 = vperm.xlu0 %3038, %v2707
    %v3040 = vpop.permute.xlu0 %3039
    %3041 = vset.pattern.permute.xlu0 0
    %3042 = vperm.xlu0 %3041, %v2716
    %v3043 = vpop.permute.xlu0 %3042
    %3044 = vset.pattern.permute.xlu0 0
    %3045 = vperm.xlu0 %3044, %v2725
    %v3046 = vpop.permute.xlu0 %3045
    %3047 = vset.pattern.permute.xlu0 0
    %3048 = vperm.xlu0 %3047, %v2734
    %v3049 = vpop.permute.xlu0 %3048
    %3050 = vset.pattern.permute.xlu0 0
    %3051 = vperm.xlu0 %3050, %v2743
    %v3052 = vpop.permute.xlu0 %3051
    %3053 = vset.pattern.permute.xlu0 0
    %3054 = vperm.xlu0 %3053, %v2752
    %v3055 = vpop.permute.xlu0 %3054
    %3056 = vset.pattern.permute.xlu0 0
    %3057 = vperm.xlu0 %3056, %v2761
    %v3058 = vpop.permute.xlu0 %3057
    %3059 = vset.pattern.permute.xlu0 0
    %3060 = vperm.xlu0 %3059, %v2770
    %v3061 = vpop.permute.xlu0 %3060
    %3062 = vset.pattern.permute.xlu0 0
    %3063 = vperm.xlu0 %3062, %v2779
    %v3064 = vpop.permute.xlu0 %3063
    %3065 = vset.pattern.permute.xlu0 0
    %3066 = vperm.xlu0 %3065, %v2788
    %v3067 = vpop.permute.xlu0 %3066
    %3068 = vset.pattern.permute.xlu0 0
    %3069 = vperm.xlu0 %3068, %v2797
    %v3070 = vpop.permute.xlu0 %3069
    %3071 = vset.pattern.permute.xlu0 0
    %3072 = vperm.xlu0 %3071, %v2806
    %v3073 = vpop.permute.xlu0 %3072
    %3074 = vset.pattern.permute.xlu0 0
    %3075 = vperm.xlu0 %3074, %v2815
    %v3076 = vpop.permute.xlu0 %3075
    %3077 = vset.pattern.permute.xlu0 0
    %3078 = vperm.xlu0 %3077, %v2824
    %v3079 = vpop.permute.xlu0 %3078
    %3080 = vset.pattern.permute.xlu0 0
    %3081 = vperm.xlu0 %3080, %v2833
    %v3082 = vpop.permute.xlu0 %3081
    %3083 = vset.pattern.permute.xlu0 0
    %3084 = vperm.xlu0 %3083, %v2842
    %v3085 = vpop.permute.xlu0 %3084
    %3086 = vset.pattern.permute.xlu0 0
    %3087 = vperm.xlu0 %3086, %v2851
    %v3088 = vpop.permute.xlu0 %3087
    %3089 = vset.pattern.permute.xlu0 0
    %3090 = vperm.xlu0 %3089, %v2860
    %v3091 = vpop.permute.xlu0 %3090
    %3092 = vset.pattern.permute.xlu0 0
    %3093 = vperm.xlu0 %3092, %v2869
    %v3094 = vpop.permute.xlu0 %3093
    %3095 = vset.pattern.permute.xlu0 0
    %3096 = vperm.xlu0 %3095, %v2878
    %v3097 = vpop.permute.xlu0 %3096
    %3098 = vset.pattern.permute.xlu0 0
    %3099 = vperm.xlu0 %3098, %v2887
    %v3100 = vpop.permute.xlu0 %3099
    %3101 = vset.pattern.permute.xlu0 0
    %3102 = vperm.xlu0 %3101, %v2896
    %v3103 = vpop.permute.xlu0 %3102
    %3104 = vset.pattern.permute.xlu0 0
    %3105 = vperm.xlu0 %3104, %v2905
    %v3106 = vpop.permute.xlu0 %3105
    %3107 = vset.pattern.permute.xlu0 0
    %3108 = vperm.xlu0 %3107, %v2914
    %v3109 = vpop.permute.xlu0 %3108
    %3110 = vset.pattern.permute.xlu0 0
    %3111 = vperm.xlu0 %3110, %v2923
    %v3112 = vpop.permute.xlu0 %3111
    %v3113 = vlaneseq
    %v3114 = vand.u32 %v3113, 127
    %v3115 = vperm.slane %v2926, %v3114
    %v3116 = vadd.s32 %v3114, 4294967288
    %v3117 = vperm.slane %v2929, %v3116
    %vm3118 = vcmask 130112
    %v3119 = vsel %vm3118, %v3117, %v3115
    %v3120 = vadd.s32 %v3114, 4294967280
    %v3121 = vperm.slane %v2932, %v3120
    %vm3122 = vcmask 195712
    %v3123 = vsel %vm3122, %v3121, %v3119
    %v3124 = vadd.s32 %v3114, 4294967272
    %v3125 = vperm.slane %v2935, %v3124
    %vm3126 = vcmask 261312
    %v3127 = vsel %vm3126, %v3125, %v3123
    %v3128 = vadd.s32 %v3114, 4294967264
    %v3129 = vperm.slane %v2938, %v3128
    %vm3130 = vcmask 326912
    %v3131 = vsel %vm3130, %v3129, %v3127
    %v3132 = vadd.s32 %v3114, 4294967256
    %v3133 = vperm.slane %v2941, %v3132
    %vm3134 = vcmask 392512
    %v3135 = vsel %vm3134, %v3133, %v3131
    %v3136 = vadd.s32 %v3114, 4294967248
    %v3137 = vperm.slane %v2944, %v3136
    %vm3138 = vcmask 458112
    %v3139 = vsel %vm3138, %v3137, %v3135
    %v3140 = vadd.s32 %v3114, 4294967240
    %v3141 = vperm.slane %v2947, %v3140
    %vm3142 = vcmask 523712
    %v3143 = vsel %vm3142, %v3141, %v3139
    %v3144 = vadd.s32 %v3114, 4294967232
    %v3145 = vperm.slane %v2950, %v3144
    %vm3146 = vcmask 589312
    %v3147 = vsel %vm3146, %v3145, %v3143
    %v3148 = vadd.s32 %v3114, 4294967224
    %v3149 = vperm.slane %v2953, %v3148
    %vm3150 = vcmask 654912
    %v3151 = vsel %vm3150, %v3149, %v3147
    %v3152 = vadd.s32 %v3114, 4294967216
    %v3153 = vperm.slane %v2956, %v3152
    %vm3154 = vcmask 720512
    %v3155 = vsel %vm3154, %v3153, %v3151
    %v3156 = vadd.s32 %v3114, 4294967208
    %v3157 = vperm.slane %v2959, %v3156
    %vm3158 = vcmask 786112
    %v3159 = vsel %vm3158, %v3157, %v3155
    %v3160 = vadd.s32 %v3114, 4294967200
    %v3161 = vperm.slane %v2962, %v3160
    %vm3162 = vcmask 851712
    %v3163 = vsel %vm3162, %v3161, %v3159
    %v3164 = vadd.s32 %v3114, 4294967192
    %v3165 = vperm.slane %v2965, %v3164
    %vm3166 = vcmask 917312
    %v3167 = vsel %vm3166, %v3165, %v3163
    %v3168 = vadd.s32 %v3114, 4294967184
    %v3169 = vperm.slane %v2968, %v3168
    %vm3170 = vcmask 982912
    %v3171 = vsel %vm3170, %v3169, %v3167
    %v3172 = vadd.s32 %v3114, 4294967176
    %v3173 = vperm.slane %v2971, %v3172
    %vm3174 = vcmask 1048512
    %v3175 = vsel %vm3174, %v3173, %v3171
    %v3176 = vperm.slane %v2974, %v3114
    %v3177 = vperm.slane %v2977, %v3116
    %v3178 = vsel %vm3118, %v3177, %v3176
    %v3179 = vperm.slane %v2980, %v3120
    %v3180 = vsel %vm3122, %v3179, %v3178
    %v3181 = vperm.slane %v2983, %v3124
    %v3182 = vsel %vm3126, %v3181, %v3180
    %v3183 = vperm.slane %v2986, %v3128
    %v3184 = vsel %vm3130, %v3183, %v3182
    %v3185 = vperm.slane %v2989, %v3132
    %v3186 = vsel %vm3134, %v3185, %v3184
    %v3187 = vperm.slane %v2992, %v3136
    %v3188 = vsel %vm3138, %v3187, %v3186
    %v3189 = vperm.slane %v2995, %v3140
    %v3190 = vsel %vm3142, %v3189, %v3188
    %v3191 = vperm.slane %v2998, %v3144
    %v3192 = vsel %vm3146, %v3191, %v3190
    %v3193 = vperm.slane %v3001, %v3148
    %v3194 = vsel %vm3150, %v3193, %v3192
    %v3195 = vperm.slane %v3004, %v3152
    %v3196 = vsel %vm3154, %v3195, %v3194
    %v3197 = vperm.slane %v3007, %v3156
    %v3198 = vsel %vm3158, %v3197, %v3196
    %v3199 = vperm.slane %v3010, %v3160
    %v3200 = vsel %vm3162, %v3199, %v3198
    %v3201 = vperm.slane %v3013, %v3164
    %v3202 = vsel %vm3166, %v3201, %v3200
    %v3203 = vperm.slane %v3016, %v3168
    %v3204 = vsel %vm3170, %v3203, %v3202
    %v3205 = vperm.slane %v3019, %v3172
    %v3206 = vsel %vm3174, %v3205, %v3204
    %v3207 = vperm.slane %v3022, %v3114
    %v3208 = vperm.slane %v3025, %v3116
    %v3209 = vsel %vm3118, %v3208, %v3207
    %v3210 = vperm.slane %v3028, %v3120
    %v3211 = vsel %vm3122, %v3210, %v3209
    %v3212 = vperm.slane %v3031, %v3124
    %v3213 = vsel %vm3126, %v3212, %v3211
    %v3214 = vperm.slane %v3034, %v3128
    %v3215 = vsel %vm3130, %v3214, %v3213
    %v3216 = vperm.slane %v3037, %v3132
    %v3217 = vsel %vm3134, %v3216, %v3215
    %v3218 = vperm.slane %v3040, %v3136
    %v3219 = vsel %vm3138, %v3218, %v3217
    %v3220 = vperm.slane %v3043, %v3140
    %v3221 = vsel %vm3142, %v3220, %v3219
    %v3222 = vperm.slane %v3046, %v3144
    %v3223 = vsel %vm3146, %v3222, %v3221
    %v3224 = vperm.slane %v3049, %v3148
    %v3225 = vsel %vm3150, %v3224, %v3223
    %v3226 = vperm.slane %v3052, %v3152
    %v3227 = vsel %vm3154, %v3226, %v3225
    %v3228 = vperm.slane %v3055, %v3156
    %v3229 = vsel %vm3158, %v3228, %v3227
    %v3230 = vperm.slane %v3058, %v3160
    %v3231 = vsel %vm3162, %v3230, %v3229
    %v3232 = vperm.slane %v3061, %v3164
    %v3233 = vsel %vm3166, %v3232, %v3231
    %v3234 = vperm.slane %v3064, %v3168
    %v3235 = vsel %vm3170, %v3234, %v3233
    %v3236 = vperm.slane %v3067, %v3172
    %v3237 = vsel %vm3174, %v3236, %v3235
    %v3238 = vperm.slane %v3070, %v3114
    %v3239 = vperm.slane %v3073, %v3116
    %v3240 = vsel %vm3118, %v3239, %v3238
    %v3241 = vperm.slane %v3076, %v3120
    %v3242 = vsel %vm3122, %v3241, %v3240
    %v3243 = vperm.slane %v3079, %v3124
    %v3244 = vsel %vm3126, %v3243, %v3242
    %v3245 = vperm.slane %v3082, %v3128
    %v3246 = vsel %vm3130, %v3245, %v3244
    %v3247 = vperm.slane %v3085, %v3132
    %v3248 = vsel %vm3134, %v3247, %v3246
    %v3249 = vperm.slane %v3088, %v3136
    %v3250 = vsel %vm3138, %v3249, %v3248
    %v3251 = vperm.slane %v3091, %v3140
    %v3252 = vsel %vm3142, %v3251, %v3250
    %v3253 = vperm.slane %v3094, %v3144
    %v3254 = vsel %vm3146, %v3253, %v3252
    %v3255 = vperm.slane %v3097, %v3148
    %v3256 = vsel %vm3150, %v3255, %v3254
    %v3257 = vperm.slane %v3100, %v3152
    %v3258 = vsel %vm3154, %v3257, %v3256
    %v3259 = vperm.slane %v3103, %v3156
    %v3260 = vsel %vm3158, %v3259, %v3258
    %v3261 = vperm.slane %v3106, %v3160
    %v3262 = vsel %vm3162, %v3261, %v3260
    %v3263 = vperm.slane %v3109, %v3164
    %v3264 = vsel %vm3166, %v3263, %v3262
    %v3265 = vperm.slane %v3112, %v3168
    %v3266 = vsel %vm3170, %v3265, %v3264
    %v3267 = vrot.slane %v3206, 7
    %v3268 = vrot.slane %v3237, 6
    %v3269 = vrot.slane %v3266, 5
    %vm3270 = vcmask 1040384
    %v3271 = vsel %vm3270, %v3175, %v3267
    %vm3272 = vcmask 1042434
    %v3273 = vsel %vm3272, %v3268, %v3269
    %vm3274 = vcmask 1041408
    %v3275 = vsel %vm3274, %v3271, %v3273
    %v3277 = vlaneseq
    %vm3278 = vcmp.ge.s32.totalorder %v3277, 0
    %vm3279 = vcmp.lt.s32.totalorder %v3277, 504
    %vm3280 = vmand %vm3278, %vm3279
    %3281 = vst.msk [vmem:[#allocation2] sm:$0xf] %vm3280, %v3275
    // Predicated region
    $region34: #{tpu_custom_call.1} parent=1 // pred_check
      _
    $region35: #{tpu_custom_call.1} parent=1 // pred_check_branch
      %3283 = sbr.rel (0) target = $region37
    $region36: #{tpu_custom_call.1} parent=1 // pred_region
      %3285 = vsyncadd [#allocation3], 0
      %s3287 = sshll.u32 [#allocation2], 4
      %s3288 = int_to_ptr.vmem [resolvable:$true] %s3287
      %s3289 = sshll.u32 %s8, 4
      %s3290 = int_to_ptr.hbm [resolvable:$true] %s3289
      %3292 = dma.vmem_to_hbm [thread:$0]  %s3288, 64, %s3290, [#allocation3]
    $region37: #{tpu_custom_call.1} parent=1 // pred_fallthru
      _
    // Predicated region
    $region38: #{tpu_custom_call.1} parent=1 // pred_check
      _
    $region39: #{tpu_custom_call.1} parent=1 // pred_check_branch
      %3294 = sbr.rel (0) target = $region41
    $region40: #{tpu_custom_call.1} parent=1 // pred_region
      %3296 = dma.done [#allocation3], 64
    $region41: #{tpu_custom_call.1} parent=1 // pred_fallthru
      _
    %3297 = vsyncpa [#allocation3], 1

</llo_original>
